<compile_context>
chip_gen: v6e
topology: v6e:2x2x1
jax: 0.10.0
libtpu: 0.0.40
codegen_flags: <defaults>
</compile_context>

<pallas_src>
import jax
import jax.numpy as jnp
from jax.experimental import pallas as pl
from jax.experimental.pallas import tpu as pltpu


def gcn_kernel(a_ref, x_ref, w1_ref, b1_ref, w2_ref, b2_ref, out_ref):
    a = a_ref[...]                                   # (G, N, N)  f32
    x = x_ref[...]                                   # (G, N, in) f32
    g, n, in_feats = x.shape
    hid_feats = w1_ref.shape[1]

    # conv1 aggregate: per-graph A_hat @ X (batched MXU matmul).
    ax = jnp.einsum("gij,gjf->gif", a, x,
                    preferred_element_type=jnp.float32)          # (G, N, in)

    # conv1 weight + bias + ReLU on the stacked node dim: one dense MXU matmul and one
    # sublane-dense f32 VPU epilogue for all graphs at once.
    h1 = jnp.dot(ax.reshape(g * n, in_feats), w1_ref[...],
                 preferred_element_type=jnp.float32)             # (G*N, hid)
    h1 = jnp.maximum(h1 + b1_ref[...], 0.0)                      # f32 epilogue (v5e-safe)
    h1 = h1.reshape(g, n, hid_feats)

    # conv2 + mean_nodes folded:  out = (m @ H1) @ W2 + b2,  m = (1/N) * 1^T A_hat.
    # A_hat is symmetric (undirected graph, norm='both'), so the lane reduce over axis=-1
    # equals the exact column sum and leaves the node dim on sublanes, exactly the layout the
    # weighted readout reduce needs (VPU multiply + sublane reduce, no M=1 MXU matvecs).
    m = jnp.sum(a, axis=-1, keepdims=True) * (1.0 / n)           # (G, N, 1) f32
    mh1 = jnp.sum(m * h1, axis=1)                                # (G, hid)  f32

    # One dense matmul + bias for the whole batch; (G, 128) f32 block -> full dense store.
    out_ref[...] = jnp.dot(mh1, w2_ref[...],
                           preferred_element_type=jnp.float32) + b2_ref[...]


def _graphs_per_step(b_graphs):
    """All graphs in one step on single-TC chips; split 2 ways on v7x (2 TCs) when the
    resulting output block stays sublane-aligned (multiple of 8 graphs per step)."""
    try:
        kind = jax.devices()[0].device_kind.lower()
    except Exception:  # pragma: no cover - defensive
        kind = ""
    if ("v7" in kind or "7x" in kind) and b_graphs % 2 == 0 and (b_graphs // 2) % 8 == 0:
        return b_graphs // 2
    return b_graphs


def gcn_forward(a_hat, x, w1, b1, w2, b2):
    """a_hat: (B, N, N) f32, x: (B, N, in), w1: (in, hid), b1: (1, hid),
    w2: (hid, out), b2: (1, out). Returns (B, out) f32 graph readouts."""
    b_graphs, n, in_feats = x.shape
    hid_feats = w1.shape[1]
    out_feats = w2.shape[1]
    out_lanes = ((out_feats + 127) // 128) * 128     # pad readout to full 128-lane stores

    # One-time padding / reshape of the tiny parameters (outside the hot path).
    w2p = jnp.pad(w2.astype(jnp.float32), ((0, 0), (0, out_lanes - out_feats)))
    b2p = jnp.pad(b2.reshape(1, out_feats).astype(jnp.float32),
                  ((0, 0), (0, out_lanes - out_feats)))
    b1r = b1.reshape(1, hid_feats).astype(jnp.float32)

    chunk = _graphs_per_step(b_graphs)
    num_steps = b_graphs // chunk

    flops = (2 * b_graphs * n * n * in_feats          # A_hat @ X
             + 2 * b_graphs * n * in_feats * hid_feats  # @ W1
             + b_graphs * n * n                        # readout row m
             + 2 * b_graphs * n * hid_feats            # weighted readout reduce
             + 2 * b_graphs * hid_feats * out_lanes)   # @ W2
    bytes_accessed = 4 * (b_graphs * n * n + b_graphs * n * in_feats
                          + in_feats * hid_feats + hid_feats
                          + hid_feats * out_lanes + out_lanes
                          + b_graphs * out_lanes)

    out_full = pl.pallas_call(
        gcn_kernel,
        out_shape=jax.ShapeDtypeStruct((b_graphs, out_lanes), jnp.float32),
        grid_spec=pltpu.PrefetchScalarGridSpec(
            num_scalar_prefetch=0,
            grid=(num_steps,),                          # 1 step (2 on v7x)
            in_specs=[
                pl.BlockSpec((chunk, n, n), lambda c: (c, 0, 0)),          # A_hat chunk
                pl.BlockSpec((chunk, n, in_feats), lambda c: (c, 0, 0)),   # X chunk
                pl.BlockSpec((in_feats, hid_feats), lambda c: (0, 0)),     # W1
                pl.BlockSpec((1, hid_feats), lambda c: (0, 0)),            # b1
                pl.BlockSpec((hid_feats, out_lanes), lambda c: (0, 0)),    # W2 (lane-padded)
                pl.BlockSpec((1, out_lanes), lambda c: (0, 0)),            # b2 (lane-padded)
            ],
            out_specs=pl.BlockSpec((chunk, out_lanes), lambda c: (c, 0)),
        ),
        compiler_params=pltpu.CompilerParams(
            dimension_semantics=("parallel",),          # shards the (only) axis across v7x TCs
            vmem_limit_bytes=32 * 1024 * 1024,
        ),
        cost_estimate=pl.CostEstimate(flops=flops, transcendentals=0,
                                      bytes_accessed=bytes_accessed),
    )(a_hat.astype(jnp.float32), x.astype(jnp.float32), w1.astype(jnp.float32),
      b1r, w2p, b2p)

    return out_full[:, :out_feats]


def build_normalized_adjacency(key, n_nodes, p_edge=0.3):
    # Deterministic random undirected graph with self-loops (no zero degrees),
    # then symmetric normalization D^{-1/2} A D^{-1/2} (DGL GraphConv norm='both').
    upper = (jax.random.uniform(key, (n_nodes, n_nodes)) < p_edge).astype(jnp.float32)
    upper = jnp.triu(upper, k=1)
    a = upper + upper.T + jnp.eye(n_nodes, dtype=jnp.float32)
    deg = jnp.sum(a, axis=1)
    d_inv_sqrt = 1.0 / jnp.sqrt(deg)
    return a * d_inv_sqrt[:, None] * d_inv_sqrt[None, :]


if __name__ == "__main__":
    n_graphs = 16          # batched behind one pallas_call (two 8-graph steps on v7x)
    n_nodes = 64
    in_feats, hid_feats, out_feats = 16, 32, 8

    key = jax.random.PRNGKey(0)
    k_adj, k_x, k_w1, k_b1, k_w2, k_b2 = jax.random.split(key, 6)

    adj_keys = jax.random.split(k_adj, n_graphs)
    a_hat = jax.vmap(lambda k: build_normalized_adjacency(k, n_nodes))(adj_keys)
    x = jax.random.normal(k_x, (n_graphs, n_nodes, in_feats), dtype=jnp.float32)

    # Deterministic parameter init (Glorot-style scale), matching DGL GraphConv shapes.
    w1 = jax.random.normal(k_w1, (in_feats, hid_feats), dtype=jnp.float32) * (
        1.0 / jnp.sqrt(jnp.float32(in_feats))
    )
    b1 = jax.random.normal(k_b1, (1, hid_feats), dtype=jnp.float32) * 0.01
    w2 = jax.random.normal(k_w2, (hid_feats, out_feats), dtype=jnp.float32) * (
        1.0 / jnp.sqrt(jnp.float32(hid_feats))
    )
    b2 = jax.random.normal(k_b2, (1, out_feats), dtype=jnp.float32) * 0.01

    out = gcn_forward(a_hat, x, w1, b1, w2, b2)
    out = jax.block_until_ready(out)

    # Pure-JAX f32 reference of the ORIGINAL (unfused) formulation, per graph:
    #   H1 = relu(A_hat @ X @ W1 + b1); H2 = A_hat @ H1 @ W2 + b2; mean over nodes.
    h1_ref = jnp.maximum(jnp.einsum("bij,bjf->bif", a_hat, x) @ w1 + b1, 0.0)
    h2_ref = jnp.einsum("bij,bjf->bif", a_hat, h1_ref @ w2) + b2
    ref = jnp.mean(h2_ref, axis=1)  # (B, out_feats)

    assert out.shape == (n_graphs, out_feats)
    assert jnp.allclose(out, ref, atol=2e-2, rtol=2e-2)

    print("KERNEL_OK")
</pallas_src>

<mosaic_0001>
module attributes {stable_mosaic.version = 11 : i64} {
  func.func @gcn_kernel(%arg0: i32, %arg1: memref<16x64x64xf32, #tpu.memory_space<vmem>>, %arg2: memref<16x64x16xf32, #tpu.memory_space<vmem>>, %arg3: memref<16x32xf32, #tpu.memory_space<vmem>>, %arg4: memref<1x32xf32, #tpu.memory_space<vmem>>, %arg5: memref<32x128xf32, #tpu.memory_space<vmem>>, %arg6: memref<1x128xf32, #tpu.memory_space<vmem>>, %arg7: memref<16x128xf32, #tpu.memory_space<vmem>>) attributes {dimension_semantics = [#tpu.dimension_semantics<parallel>], iteration_bounds = array<i64: 1>, scalar_prefetch = 0 : i64, scratch_operands = 0 : i64, tpu.core_type = #tpu.core_type<tc>, window_params = [{transform_indices = @transform_0, window_bounds = array<i64: 16, 64, 64>}, {transform_indices = @transform_1, window_bounds = array<i64: 16, 64, 16>}, {pipeline_mode = #tpu.pipeline_mode<synchronous>, transform_indices = @transform_2, window_bounds = array<i64: 16, 32>}, {pipeline_mode = #tpu.pipeline_mode<synchronous>, transform_indices = @transform_3, window_bounds = array<i64: 1, 32>}, {pipeline_mode = #tpu.pipeline_mode<synchronous>, transform_indices = @transform_4, window_bounds = array<i64: 32, 128>}, {pipeline_mode = #tpu.pipeline_mode<synchronous>, transform_indices = @transform_5, window_bounds = array<i64: 1, 128>}, {transform_indices = @transform_6, window_bounds = array<i64: 16, 128>}]} {
    %c0 = arith.constant 0 : index
    %c0_0 = arith.constant 0 : index
    %c0_1 = arith.constant 0 : index
    %0 = vector.load %arg1[%c0, %c0_0, %c0_1] : memref<16x64x64xf32, #tpu.memory_space<vmem>>, vector<16x64x64xf32>
    %c0_2 = arith.constant 0 : index
    %c0_3 = arith.constant 0 : index
    %c0_4 = arith.constant 0 : index
    %1 = vector.load %arg2[%c0_2, %c0_3, %c0_4] : memref<16x64x16xf32, #tpu.memory_space<vmem>>, vector<16x64x16xf32>
    "tpu.trace_start"() <{level = 10 : i32, message = "gij,gjf->gif"}> : () -> ()
    %cst = arith.constant dense<0.000000e+00> : vector<16x64x16xf32>
    %2 = tpu.matmul %0, %1, %cst {dimension_numbers = #tpu.dot_dimension_numbers<[2], [1], [1], [2], [0, 0, 0, 1, 1, 2], [0], [0]>} : vector<16x64x64xf32>, vector<16x64x16xf32>, vector<16x64x16xf32> -> vector<16x64x16xf32>
    "tpu.trace_stop"() : () -> ()
    %3 = vector.shape_cast %2 : vector<16x64x16xf32> to vector<1024x16xf32>
    %c0_5 = arith.constant 0 : index
    %c0_6 = arith.constant 0 : index
    %4 = vector.load %arg3[%c0_5, %c0_6] : memref<16x32xf32, #tpu.memory_space<vmem>>, vector<16x32xf32>
    %cst_7 = arith.constant dense<0.000000e+00> : vector<1024x32xf32>
    %5 = tpu.matmul %3, %4, %cst_7 {dimension_numbers = #tpu.dot_dimension_numbers<[1], [0], [0], [1], [0, 0, 1, 1], [], []>} : vector<1024x16xf32>, vector<16x32xf32>, vector<1024x32xf32> -> vector<1024x32xf32>
    %c0_8 = arith.constant 0 : index
    %c0_9 = arith.constant 0 : index
    %6 = vector.load %arg4[%c0_8, %c0_9] : memref<1x32xf32, #tpu.memory_space<vmem>>, vector<1x32xf32>
    %7 = vector.broadcast %6 : vector<1x32xf32> to vector<1024x32xf32>
    %8 = arith.addf %5, %7 : vector<1024x32xf32>
    %cst_10 = arith.constant 0.000000e+00 : f32
    %9 = vector.broadcast %cst_10 : f32 to vector<1024x32xf32>
    %10 = arith.maximumf %8, %9 : vector<1024x32xf32>
    %11 = vector.shape_cast %10 : vector<1024x32xf32> to vector<16x64x32xf32>
    %cst_11 = arith.constant dense<0.000000e+00> : vector<16x64xf32>
    %12 = vector.multi_reduction <add>, %0, %cst_11 [2] : vector<16x64x64xf32> to vector<16x64xf32>
    %13 = vector.shape_cast %12 : vector<16x64xf32> to vector<16x64x1xf32>
    %cst_12 = arith.constant 1.562500e-02 : f32
    %14 = vector.broadcast %cst_12 : f32 to vector<16x64x1xf32>
    %15 = arith.mulf %13, %14 : vector<16x64x1xf32>
    %16 = vector.broadcast %15 : vector<16x64x1xf32> to vector<16x64x32xf32>
    %17 = arith.mulf %16, %11 : vector<16x64x32xf32>
    %cst_13 = arith.constant dense<0.000000e+00> : vector<16x32xf32>
    %18 = vector.multi_reduction <add>, %17, %cst_13 [1] : vector<16x64x32xf32> to vector<16x32xf32>
    %c0_14 = arith.constant 0 : index
    %c0_15 = arith.constant 0 : index
    %19 = vector.load %arg5[%c0_14, %c0_15] : memref<32x128xf32, #tpu.memory_space<vmem>>, vector<32x128xf32>
    %cst_16 = arith.constant dense<0.000000e+00> : vector<16x128xf32>
    %20 = tpu.matmul %18, %19, %cst_16 {dimension_numbers = #tpu.dot_dimension_numbers<[1], [0], [0], [1], [0, 0, 1, 1], [], []>} : vector<16x32xf32>, vector<32x128xf32>, vector<16x128xf32> -> vector<16x128xf32>
    %c0_17 = arith.constant 0 : index
    %c0_18 = arith.constant 0 : index
    %21 = vector.load %arg6[%c0_17, %c0_18] : memref<1x128xf32, #tpu.memory_space<vmem>>, vector<1x128xf32>
    %22 = vector.broadcast %21 : vector<1x128xf32> to vector<16x128xf32>
    %23 = arith.addf %20, %22 : vector<16x128xf32>
    %c0_19 = arith.constant 0 : index
    %c0_20 = arith.constant 0 : index
    %24 = vector.load %arg7[%c0_19, %c0_20] : memref<16x128xf32, #tpu.memory_space<vmem>>, vector<16x128xf32>
    tpu.vector_store %arg7[%c0_19, %c0_20], %23 {strides = array<i32>} : memref<16x128xf32, #tpu.memory_space<vmem>>, vector<16x128xf32>,
    return
  }
  func.func @transform_0(%arg0: i32) -> (i32, i32, i32) {
    %c0_i32 = arith.constant 0 : i32
    %c0_i32_0 = arith.constant 0 : i32
    %c0_i32_1 = arith.constant 0 : i32
    return %arg0, %c0_i32, %c0_i32_0 : i32, i32, i32
  }
  func.func @transform_1(%arg0: i32) -> (i32, i32, i32) {
    %c0_i32 = arith.constant 0 : i32
    %c0_i32_0 = arith.constant 0 : i32
    %c0_i32_1 = arith.constant 0 : i32
    return %arg0, %c0_i32, %c0_i32_0 : i32, i32, i32
  }
  func.func @transform_2(%arg0: i32) -> (i32, i32) {
    %c0_i32 = arith.constant 0 : i32
    %c0_i32_0 = arith.constant 0 : i32
    %c0_i32_1 = arith.constant 0 : i32
    return %c0_i32, %c0_i32_0 : i32, i32
  }
  func.func @transform_3(%arg0: i32) -> (i32, i32) {
    %c0_i32 = arith.constant 0 : i32
    %c0_i32_0 = arith.constant 0 : i32
    %c0_i32_1 = arith.constant 0 : i32
    return %c0_i32, %c0_i32_0 : i32, i32
  }
  func.func @transform_4(%arg0: i32) -> (i32, i32) {
    %c0_i32 = arith.constant 0 : i32
    %c0_i32_0 = arith.constant 0 : i32
    %c0_i32_1 = arith.constant 0 : i32
    return %c0_i32, %c0_i32_0 : i32, i32
  }
  func.func @transform_5(%arg0: i32) -> (i32, i32) {
    %c0_i32 = arith.constant 0 : i32
    %c0_i32_0 = arith.constant 0 : i32
    %c0_i32_1 = arith.constant 0 : i32
    return %c0_i32, %c0_i32_0 : i32, i32
  }
  func.func @transform_6(%arg0: i32) -> (i32, i32) {
    %c0_i32 = arith.constant 0 : i32
    %c0_i32_0 = arith.constant 0 : i32
    return %arg0, %c0_i32 : i32, i32
  }
}

</mosaic_0001>

<llo_original>
// kernel: tpu_custom_call.1
$region0: #{tpu_custom_call.1}
  #allocation0 [shape = 'u32[]', space=smem, size = 0x4, offset = 0x4, fixed_abs, tag = 'smem constant byte address 0x4 - core index']
  #allocation1 [shape = 'u32[144,128]{1,0:T(1,128)}', space=vmem, size = 0x12000, scoped, tag = 'internal scratch']
  %s0 = inlined_call_operand.vmem [shape: f32[16,64,64], index: 0, kind: input, shape index: {}]
  %s1 = inlined_call_operand.vmem [shape: f32[16,64,16], index: 1, kind: input, shape index: {}]
  %s2 = inlined_call_operand.vmem [shape: f32[16,32], index: 2, kind: input, shape index: {}]
  %s3 = inlined_call_operand.vmem [shape: f32[1,32], index: 3, kind: input, shape index: {}]
  %s4 = inlined_call_operand.vmem [shape: f32[32,128], index: 4, kind: input, shape index: {}]
  %s5 = inlined_call_operand.vmem [shape: f32[1,128], index: 5, kind: input, shape index: {}]
  %s6 = inlined_call_operand.hbm [shape: f32[16,128], index: 6, kind: output, shape index: {}]
  %s7 = sld [smem:[#allocation0]]
  $region34: #{tpu_custom_call.1} parent=0
    _
  %s9 = ssub.s32 1, %s7
  %s10 = scalar_select 0, %s9, %s7
  $region1: #{tpu_custom_call.1} parent=0
    #allocation2 [shape = 'u8[8192]{0}', space=vmem, size = 0x2000, scoped, tag = 'output window, operand 0, single buffered']
    #allocation3 [shape = 's32[1]{0}', space=sflag, size = 0x4, scoped, tag = 'scoped memory for tpu_custom_call.1']
    %11 = vsyncpa [#allocation3], 0
    // Predicated region
    $region2: #{tpu_custom_call.1} parent=1 // pred_check
      _
    $region3: #{tpu_custom_call.1} parent=1 // pred_check_branch
      %13 = sbr.rel (0) target = $region5
    $region4: #{tpu_custom_call.1} parent=1 // pred_region
      _
    $region5: #{tpu_custom_call.1} parent=1 // pred_fallthru
      _
    // Predicated region
    $region6: #{tpu_custom_call.1} parent=1 // pred_check
      _
    $region7: #{tpu_custom_call.1} parent=1 // pred_check_branch
      %15 = sbr.rel (0) target = $region9
    $region8: #{tpu_custom_call.1} parent=1 // pred_region
      _
    $region9: #{tpu_custom_call.1} parent=1 // pred_fallthru
      _
    // Predicated region
    $region10: #{tpu_custom_call.1} parent=1 // pred_check
      _
    $region11: #{tpu_custom_call.1} parent=1 // pred_check_branch
      %17 = sbr.rel (0) target = $region13
    $region12: #{tpu_custom_call.1} parent=1 // pred_region
      _
    $region13: #{tpu_custom_call.1} parent=1 // pred_fallthru
      _
    // Predicated region
    $region14: #{tpu_custom_call.1} parent=1 // pred_check
      _
    $region15: #{tpu_custom_call.1} parent=1 // pred_check_branch
      %19 = sbr.rel (0) target = $region17
    $region16: #{tpu_custom_call.1} parent=1 // pred_region
      _
    $region17: #{tpu_custom_call.1} parent=1 // pred_fallthru
      _
    // Predicated region
    $region18: #{tpu_custom_call.1} parent=1 // pred_check
      _
    $region19: #{tpu_custom_call.1} parent=1 // pred_check_branch
      %21 = sbr.rel (0) target = $region21
    $region20: #{tpu_custom_call.1} parent=1 // pred_region
      _
    $region21: #{tpu_custom_call.1} parent=1 // pred_fallthru
      _
    // Predicated region
    $region22: #{tpu_custom_call.1} parent=1 // pred_check
      _
    $region23: #{tpu_custom_call.1} parent=1 // pred_check_branch
      %23 = sbr.rel (0) target = $region25
    $region24: #{tpu_custom_call.1} parent=1 // pred_region
      _
    $region25: #{tpu_custom_call.1} parent=1 // pred_fallthru
      _
    %v24 = vld [vmem:[%s0] sm:$0xff]
    %v25 = vld [vmem:[%s0 + $0x8] sm:$0xff]
    %v26 = vld [vmem:[%s0 + $0x10] sm:$0xff]
    %v27 = vld [vmem:[%s0 + $0x18] sm:$0xff]
    %v28 = vld [vmem:[%s0 + $0x20] sm:$0xff]
    %v29 = vld [vmem:[%s0 + $0x28] sm:$0xff]
    %v30 = vld [vmem:[%s0 + $0x30] sm:$0xff]
    %v31 = vld [vmem:[%s0 + $0x38] sm:$0xff]
    %v32 = vld [vmem:[%s0 + $0x40] sm:$0xff]
    %v33 = vld [vmem:[%s0 + $0x48] sm:$0xff]
    %v34 = vld [vmem:[%s0 + $0x50] sm:$0xff]
    %v35 = vld [vmem:[%s0 + $0x58] sm:$0xff]
    %v36 = vld [vmem:[%s0 + $0x60] sm:$0xff]
    %v37 = vld [vmem:[%s0 + $0x68] sm:$0xff]
    %v38 = vld [vmem:[%s0 + $0x70] sm:$0xff]
    %v39 = vld [vmem:[%s0 + $0x78] sm:$0xff]
    %v40 = vld [vmem:[%s0 + $0x80] sm:$0xff]
    %v41 = vld [vmem:[%s0 + $0x88] sm:$0xff]
    %v42 = vld [vmem:[%s0 + $0x90] sm:$0xff]
    %v43 = vld [vmem:[%s0 + $0x98] sm:$0xff]
    %v44 = vld [vmem:[%s0 + $0xa0] sm:$0xff]
    %v45 = vld [vmem:[%s0 + $0xa8] sm:$0xff]
    %v46 = vld [vmem:[%s0 + $0xb0] sm:$0xff]
    %v47 = vld [vmem:[%s0 + $0xb8] sm:$0xff]
    %v48 = vld [vmem:[%s0 + $0xc0] sm:$0xff]
    %v49 = vld [vmem:[%s0 + $0xc8] sm:$0xff]
    %v50 = vld [vmem:[%s0 + $0xd0] sm:$0xff]
    %v51 = vld [vmem:[%s0 + $0xd8] sm:$0xff]
    %v52 = vld [vmem:[%s0 + $0xe0] sm:$0xff]
    %v53 = vld [vmem:[%s0 + $0xe8] sm:$0xff]
    %v54 = vld [vmem:[%s0 + $0xf0] sm:$0xff]
    %v55 = vld [vmem:[%s0 + $0xf8] sm:$0xff]
    %v56 = vld [vmem:[%s0 + $0x100] sm:$0xff]
    %v57 = vld [vmem:[%s0 + $0x108] sm:$0xff]
    %v58 = vld [vmem:[%s0 + $0x110] sm:$0xff]
    %v59 = vld [vmem:[%s0 + $0x118] sm:$0xff]
    %v60 = vld [vmem:[%s0 + $0x120] sm:$0xff]
    %v61 = vld [vmem:[%s0 + $0x128] sm:$0xff]
    %v62 = vld [vmem:[%s0 + $0x130] sm:$0xff]
    %v63 = vld [vmem:[%s0 + $0x138] sm:$0xff]
    %v64 = vld [vmem:[%s0 + $0x140] sm:$0xff]
    %v65 = vld [vmem:[%s0 + $0x148] sm:$0xff]
    %v66 = vld [vmem:[%s0 + $0x150] sm:$0xff]
    %v67 = vld [vmem:[%s0 + $0x158] sm:$0xff]
    %v68 = vld [vmem:[%s0 + $0x160] sm:$0xff]
    %v69 = vld [vmem:[%s0 + $0x168] sm:$0xff]
    %v70 = vld [vmem:[%s0 + $0x170] sm:$0xff]
    %v71 = vld [vmem:[%s0 + $0x178] sm:$0xff]
    %v72 = vld [vmem:[%s0 + $0x180] sm:$0xff]
    %v73 = vld [vmem:[%s0 + $0x188] sm:$0xff]
    %v74 = vld [vmem:[%s0 + $0x190] sm:$0xff]
    %v75 = vld [vmem:[%s0 + $0x198] sm:$0xff]
    %v76 = vld [vmem:[%s0 + $0x1a0] sm:$0xff]
    %v77 = vld [vmem:[%s0 + $0x1a8] sm:$0xff]
    %v78 = vld [vmem:[%s0 + $0x1b0] sm:$0xff]
    %v79 = vld [vmem:[%s0 + $0x1b8] sm:$0xff]
    %v80 = vld [vmem:[%s0 + $0x1c0] sm:$0xff]
    %v81 = vld [vmem:[%s0 + $0x1c8] sm:$0xff]
    %v82 = vld [vmem:[%s0 + $0x1d0] sm:$0xff]
    %v83 = vld [vmem:[%s0 + $0x1d8] sm:$0xff]
    %v84 = vld [vmem:[%s0 + $0x1e0] sm:$0xff]
    %v85 = vld [vmem:[%s0 + $0x1e8] sm:$0xff]
    %v86 = vld [vmem:[%s0 + $0x1f0] sm:$0xff]
    %v87 = vld [vmem:[%s0 + $0x1f8] sm:$0xff]
    %v88 = vld [vmem:[%s0 + $0x200] sm:$0xff]
    %v89 = vld [vmem:[%s0 + $0x208] sm:$0xff]
    %v90 = vld [vmem:[%s0 + $0x210] sm:$0xff]
    %v91 = vld [vmem:[%s0 + $0x218] sm:$0xff]
    %v92 = vld [vmem:[%s0 + $0x220] sm:$0xff]
    %v93 = vld [vmem:[%s0 + $0x228] sm:$0xff]
    %v94 = vld [vmem:[%s0 + $0x230] sm:$0xff]
    %v95 = vld [vmem:[%s0 + $0x238] sm:$0xff]
    %v96 = vld [vmem:[%s0 + $0x240] sm:$0xff]
    %v97 = vld [vmem:[%s0 + $0x248] sm:$0xff]
    %v98 = vld [vmem:[%s0 + $0x250] sm:$0xff]
    %v99 = vld [vmem:[%s0 + $0x258] sm:$0xff]
    %v100 = vld [vmem:[%s0 + $0x260] sm:$0xff]
    %v101 = vld [vmem:[%s0 + $0x268] sm:$0xff]
    %v102 = vld [vmem:[%s0 + $0x270] sm:$0xff]
    %v103 = vld [vmem:[%s0 + $0x278] sm:$0xff]
    %v104 = vld [vmem:[%s0 + $0x280] sm:$0xff]
    %v105 = vld [vmem:[%s0 + $0x288] sm:$0xff]
    %v106 = vld [vmem:[%s0 + $0x290] sm:$0xff]
    %v107 = vld [vmem:[%s0 + $0x298] sm:$0xff]
    %v108 = vld [vmem:[%s0 + $0x2a0] sm:$0xff]
    %v109 = vld [vmem:[%s0 + $0x2a8] sm:$0xff]
    %v110 = vld [vmem:[%s0 + $0x2b0] sm:$0xff]
    %v111 = vld [vmem:[%s0 + $0x2b8] sm:$0xff]
    %v112 = vld [vmem:[%s0 + $0x2c0] sm:$0xff]
    %v113 = vld [vmem:[%s0 + $0x2c8] sm:$0xff]
    %v114 = vld [vmem:[%s0 + $0x2d0] sm:$0xff]
    %v115 = vld [vmem:[%s0 + $0x2d8] sm:$0xff]
    %v116 = vld [vmem:[%s0 + $0x2e0] sm:$0xff]
    %v117 = vld [vmem:[%s0 + $0x2e8] sm:$0xff]
    %v118 = vld [vmem:[%s0 + $0x2f0] sm:$0xff]
    %v119 = vld [vmem:[%s0 + $0x2f8] sm:$0xff]
    %v120 = vld [vmem:[%s0 + $0x300] sm:$0xff]
    %v121 = vld [vmem:[%s0 + $0x308] sm:$0xff]
    %v122 = vld [vmem:[%s0 + $0x310] sm:$0xff]
    %v123 = vld [vmem:[%s0 + $0x318] sm:$0xff]
    %v124 = vld [vmem:[%s0 + $0x320] sm:$0xff]
    %v125 = vld [vmem:[%s0 + $0x328] sm:$0xff]
    %v126 = vld [vmem:[%s0 + $0x330] sm:$0xff]
    %v127 = vld [vmem:[%s0 + $0x338] sm:$0xff]
    %v128 = vld [vmem:[%s0 + $0x340] sm:$0xff]
    %v129 = vld [vmem:[%s0 + $0x348] sm:$0xff]
    %v130 = vld [vmem:[%s0 + $0x350] sm:$0xff]
    %v131 = vld [vmem:[%s0 + $0x358] sm:$0xff]
    %v132 = vld [vmem:[%s0 + $0x360] sm:$0xff]
    %v133 = vld [vmem:[%s0 + $0x368] sm:$0xff]
    %v134 = vld [vmem:[%s0 + $0x370] sm:$0xff]
    %v135 = vld [vmem:[%s0 + $0x378] sm:$0xff]
    %v136 = vld [vmem:[%s0 + $0x380] sm:$0xff]
    %v137 = vld [vmem:[%s0 + $0x388] sm:$0xff]
    %v138 = vld [vmem:[%s0 + $0x390] sm:$0xff]
    %v139 = vld [vmem:[%s0 + $0x398] sm:$0xff]
    %v140 = vld [vmem:[%s0 + $0x3a0] sm:$0xff]
    %v141 = vld [vmem:[%s0 + $0x3a8] sm:$0xff]
    %v142 = vld [vmem:[%s0 + $0x3b0] sm:$0xff]
    %v143 = vld [vmem:[%s0 + $0x3b8] sm:$0xff]
    %v144 = vld [vmem:[%s0 + $0x3c0] sm:$0xff]
    %v145 = vld [vmem:[%s0 + $0x3c8] sm:$0xff]
    %v146 = vld [vmem:[%s0 + $0x3d0] sm:$0xff]
    %v147 = vld [vmem:[%s0 + $0x3d8] sm:$0xff]
    %v148 = vld [vmem:[%s0 + $0x3e0] sm:$0xff]
    %v149 = vld [vmem:[%s0 + $0x3e8] sm:$0xff]
    %v150 = vld [vmem:[%s0 + $0x3f0] sm:$0xff]
    %v151 = vld [vmem:[%s0 + $0x3f8] sm:$0xff]
    %v152 = vld [vmem:[%s1] sm:$0xff]
    %v153 = vld [vmem:[%s1 + $0x8] sm:$0xff]
    %v154 = vld [vmem:[%s1 + $0x10] sm:$0xff]
    %v155 = vld [vmem:[%s1 + $0x18] sm:$0xff]
    %v156 = vld [vmem:[%s1 + $0x20] sm:$0xff]
    %v157 = vld [vmem:[%s1 + $0x28] sm:$0xff]
    %v158 = vld [vmem:[%s1 + $0x30] sm:$0xff]
    %v159 = vld [vmem:[%s1 + $0x38] sm:$0xff]
    %v160 = vld [vmem:[%s1 + $0x40] sm:$0xff]
    %v161 = vld [vmem:[%s1 + $0x48] sm:$0xff]
    %v162 = vld [vmem:[%s1 + $0x50] sm:$0xff]
    %v163 = vld [vmem:[%s1 + $0x58] sm:$0xff]
    %v164 = vld [vmem:[%s1 + $0x60] sm:$0xff]
    %v165 = vld [vmem:[%s1 + $0x68] sm:$0xff]
    %v166 = vld [vmem:[%s1 + $0x70] sm:$0xff]
    %v167 = vld [vmem:[%s1 + $0x78] sm:$0xff]
    %v168 = vld [vmem:[%s1 + $0x80] sm:$0xff]
    %v169 = vld [vmem:[%s1 + $0x88] sm:$0xff]
    %v170 = vld [vmem:[%s1 + $0x90] sm:$0xff]
    %v171 = vld [vmem:[%s1 + $0x98] sm:$0xff]
    %v172 = vld [vmem:[%s1 + $0xa0] sm:$0xff]
    %v173 = vld [vmem:[%s1 + $0xa8] sm:$0xff]
    %v174 = vld [vmem:[%s1 + $0xb0] sm:$0xff]
    %v175 = vld [vmem:[%s1 + $0xb8] sm:$0xff]
    %v176 = vld [vmem:[%s1 + $0xc0] sm:$0xff]
    %v177 = vld [vmem:[%s1 + $0xc8] sm:$0xff]
    %v178 = vld [vmem:[%s1 + $0xd0] sm:$0xff]
    %v179 = vld [vmem:[%s1 + $0xd8] sm:$0xff]
    %v180 = vld [vmem:[%s1 + $0xe0] sm:$0xff]
    %v181 = vld [vmem:[%s1 + $0xe8] sm:$0xff]
    %v182 = vld [vmem:[%s1 + $0xf0] sm:$0xff]
    %v183 = vld [vmem:[%s1 + $0xf8] sm:$0xff]
    %v184 = vld [vmem:[%s1 + $0x100] sm:$0xff]
    %v185 = vld [vmem:[%s1 + $0x108] sm:$0xff]
    %v186 = vld [vmem:[%s1 + $0x110] sm:$0xff]
    %v187 = vld [vmem:[%s1 + $0x118] sm:$0xff]
    %v188 = vld [vmem:[%s1 + $0x120] sm:$0xff]
    %v189 = vld [vmem:[%s1 + $0x128] sm:$0xff]
    %v190 = vld [vmem:[%s1 + $0x130] sm:$0xff]
    %v191 = vld [vmem:[%s1 + $0x138] sm:$0xff]
    %v192 = vld [vmem:[%s1 + $0x140] sm:$0xff]
    %v193 = vld [vmem:[%s1 + $0x148] sm:$0xff]
    %v194 = vld [vmem:[%s1 + $0x150] sm:$0xff]
    %v195 = vld [vmem:[%s1 + $0x158] sm:$0xff]
    %v196 = vld [vmem:[%s1 + $0x160] sm:$0xff]
    %v197 = vld [vmem:[%s1 + $0x168] sm:$0xff]
    %v198 = vld [vmem:[%s1 + $0x170] sm:$0xff]
    %v199 = vld [vmem:[%s1 + $0x178] sm:$0xff]
    %v200 = vld [vmem:[%s1 + $0x180] sm:$0xff]
    %v201 = vld [vmem:[%s1 + $0x188] sm:$0xff]
    %v202 = vld [vmem:[%s1 + $0x190] sm:$0xff]
    %v203 = vld [vmem:[%s1 + $0x198] sm:$0xff]
    %v204 = vld [vmem:[%s1 + $0x1a0] sm:$0xff]
    %v205 = vld [vmem:[%s1 + $0x1a8] sm:$0xff]
    %v206 = vld [vmem:[%s1 + $0x1b0] sm:$0xff]
    %v207 = vld [vmem:[%s1 + $0x1b8] sm:$0xff]
    %v208 = vld [vmem:[%s1 + $0x1c0] sm:$0xff]
    %v209 = vld [vmem:[%s1 + $0x1c8] sm:$0xff]
    %v210 = vld [vmem:[%s1 + $0x1d0] sm:$0xff]
    %v211 = vld [vmem:[%s1 + $0x1d8] sm:$0xff]
    %v212 = vld [vmem:[%s1 + $0x1e0] sm:$0xff]
    %v213 = vld [vmem:[%s1 + $0x1e8] sm:$0xff]
    %v214 = vld [vmem:[%s1 + $0x1f0] sm:$0xff]
    %v215 = vld [vmem:[%s1 + $0x1f8] sm:$0xff]
    %v216 = vld [vmem:[%s1 + $0x200] sm:$0xff]
    %v217 = vld [vmem:[%s1 + $0x208] sm:$0xff]
    %v218 = vld [vmem:[%s1 + $0x210] sm:$0xff]
    %v219 = vld [vmem:[%s1 + $0x218] sm:$0xff]
    %v220 = vld [vmem:[%s1 + $0x220] sm:$0xff]
    %v221 = vld [vmem:[%s1 + $0x228] sm:$0xff]
    %v222 = vld [vmem:[%s1 + $0x230] sm:$0xff]
    %v223 = vld [vmem:[%s1 + $0x238] sm:$0xff]
    %v224 = vld [vmem:[%s1 + $0x240] sm:$0xff]
    %v225 = vld [vmem:[%s1 + $0x248] sm:$0xff]
    %v226 = vld [vmem:[%s1 + $0x250] sm:$0xff]
    %v227 = vld [vmem:[%s1 + $0x258] sm:$0xff]
    %v228 = vld [vmem:[%s1 + $0x260] sm:$0xff]
    %v229 = vld [vmem:[%s1 + $0x268] sm:$0xff]
    %v230 = vld [vmem:[%s1 + $0x270] sm:$0xff]
    %v231 = vld [vmem:[%s1 + $0x278] sm:$0xff]
    %v232 = vld [vmem:[%s1 + $0x280] sm:$0xff]
    %v233 = vld [vmem:[%s1 + $0x288] sm:$0xff]
    %v234 = vld [vmem:[%s1 + $0x290] sm:$0xff]
    %v235 = vld [vmem:[%s1 + $0x298] sm:$0xff]
    %v236 = vld [vmem:[%s1 + $0x2a0] sm:$0xff]
    %v237 = vld [vmem:[%s1 + $0x2a8] sm:$0xff]
    %v238 = vld [vmem:[%s1 + $0x2b0] sm:$0xff]
    %v239 = vld [vmem:[%s1 + $0x2b8] sm:$0xff]
    %v240 = vld [vmem:[%s1 + $0x2c0] sm:$0xff]
    %v241 = vld [vmem:[%s1 + $0x2c8] sm:$0xff]
    %v242 = vld [vmem:[%s1 + $0x2d0] sm:$0xff]
    %v243 = vld [vmem:[%s1 + $0x2d8] sm:$0xff]
    %v244 = vld [vmem:[%s1 + $0x2e0] sm:$0xff]
    %v245 = vld [vmem:[%s1 + $0x2e8] sm:$0xff]
    %v246 = vld [vmem:[%s1 + $0x2f0] sm:$0xff]
    %v247 = vld [vmem:[%s1 + $0x2f8] sm:$0xff]
    %v248 = vld [vmem:[%s1 + $0x300] sm:$0xff]
    %v249 = vld [vmem:[%s1 + $0x308] sm:$0xff]
    %v250 = vld [vmem:[%s1 + $0x310] sm:$0xff]
    %v251 = vld [vmem:[%s1 + $0x318] sm:$0xff]
    %v252 = vld [vmem:[%s1 + $0x320] sm:$0xff]
    %v253 = vld [vmem:[%s1 + $0x328] sm:$0xff]
    %v254 = vld [vmem:[%s1 + $0x330] sm:$0xff]
    %v255 = vld [vmem:[%s1 + $0x338] sm:$0xff]
    %v256 = vld [vmem:[%s1 + $0x340] sm:$0xff]
    %v257 = vld [vmem:[%s1 + $0x348] sm:$0xff]
    %v258 = vld [vmem:[%s1 + $0x350] sm:$0xff]
    %v259 = vld [vmem:[%s1 + $0x358] sm:$0xff]
    %v260 = vld [vmem:[%s1 + $0x360] sm:$0xff]
    %v261 = vld [vmem:[%s1 + $0x368] sm:$0xff]
    %v262 = vld [vmem:[%s1 + $0x370] sm:$0xff]
    %v263 = vld [vmem:[%s1 + $0x378] sm:$0xff]
    %v264 = vld [vmem:[%s1 + $0x380] sm:$0xff]
    %v265 = vld [vmem:[%s1 + $0x388] sm:$0xff]
    %v266 = vld [vmem:[%s1 + $0x390] sm:$0xff]
    %v267 = vld [vmem:[%s1 + $0x398] sm:$0xff]
    %v268 = vld [vmem:[%s1 + $0x3a0] sm:$0xff]
    %v269 = vld [vmem:[%s1 + $0x3a8] sm:$0xff]
    %v270 = vld [vmem:[%s1 + $0x3b0] sm:$0xff]
    %v271 = vld [vmem:[%s1 + $0x3b8] sm:$0xff]
    %v272 = vld [vmem:[%s1 + $0x3c0] sm:$0xff]
    %v273 = vld [vmem:[%s1 + $0x3c8] sm:$0xff]
    %v274 = vld [vmem:[%s1 + $0x3d0] sm:$0xff]
    %v275 = vld [vmem:[%s1 + $0x3d8] sm:$0xff]
    %v276 = vld [vmem:[%s1 + $0x3e0] sm:$0xff]
    %v277 = vld [vmem:[%s1 + $0x3e8] sm:$0xff]
    %v278 = vld [vmem:[%s1 + $0x3f0] sm:$0xff]
    %v279 = vld [vmem:[%s1 + $0x3f8] sm:$0xff]
    %vm280 = vcmask 523264
    %v282 = vsel %vm280, %v24, 0
    %v285 = vsel %vm280, %v25, 0
    %v288 = vsel %vm280, %v26, 0
    %v291 = vsel %vm280, %v27, 0
    %v294 = vsel %vm280, %v28, 0
    %v297 = vsel %vm280, %v29, 0
    %v300 = vsel %vm280, %v30, 0
    %v303 = vsel %vm280, %v31, 0
    %305 = vmatprep.subr.mxu0 0.0
    %306 = vmatpush1.msra.mxu0 0.0
    %307 = vmatprep.subr.mxu0 0.0
    %308 = vmatpush1.msra.mxu0 0.0
    %309 = vmatprep.subr.mxu0 0.0
    %310 = vmatpush1.msra.mxu0 0.0
    %311 = vmatprep.subr.mxu0 0.0
    %312 = vmatpush1.msra.mxu0 0.0
    %313 = vmatprep.subr.mxu0 0.0
    %314 = vmatpush1.msra.mxu0 0.0
    %315 = vmatprep.subr.mxu0 0.0
    %316 = vmatpush1.msra.mxu0 0.0
    %317 = vmatprep.subr.mxu0 0.0
    %318 = vmatpush1.msra.mxu0 0.0
    %319 = vmatprep.subr.mxu0 0.0
    %320 = vmatpush1.msra.mxu0 0.0
    %321 = vmatprep.subr.mxu0 0.0
    %322 = vmatpush1.msra.mxu0 %v159
    %323 = vmatprep.subr.mxu0 0.0
    %324 = vmatpush1.msra.mxu0 %v158
    %325 = vmatprep.subr.mxu0 0.0
    %326 = vmatpush1.msra.mxu0 %v157
    %327 = vmatprep.subr.mxu0 0.0
    %328 = vmatpush1.msra.mxu0 %v156
    %329 = vmatprep.subr.mxu0 0.0
    %330 = vmatpush1.msra.mxu0 %v155
    %331 = vmatprep.subr.mxu0 0.0
    %332 = vmatpush1.msra.mxu0 %v154
    %333 = vmatprep.subr.mxu0 0.0
    %334 = vmatpush1.msra.mxu0 %v153
    %335 = vmatprep.subr.mxu0 0.0
    %336 = vmatpush1.msra.mxu0 %v152
    %337 = vmatprep.subr.mxu0 0.0
    %338 = vmatpush2.msra.mxu0 0.0
    %339 = vmatprep.subr.mxu0 0.0
    %340 = vmatpush2.msra.mxu0 0.0
    %341 = vmatprep.subr.mxu0 0.0
    %342 = vmatpush2.msra.mxu0 0.0
    %343 = vmatprep.subr.mxu0 0.0
    %344 = vmatpush2.msra.mxu0 0.0
    %345 = vmatprep.subr.mxu0 0.0
    %346 = vmatpush2.msra.mxu0 0.0
    %347 = vmatprep.subr.mxu0 0.0
    %348 = vmatpush2.msra.mxu0 0.0
    %349 = vmatprep.subr.mxu0 0.0
    %350 = vmatpush2.msra.mxu0 0.0
    %351 = vmatprep.subr.mxu0 0.0
    %352 = vmatpush2.msra.mxu0 0.0
    %353 = vmatprep.subr.mxu0 0.0
    %354 = vmatpush2.msra.mxu0 0.0
    %355 = vmatprep.subr.mxu0 0.0
    %356 = vmatpush2.msra.mxu0 0.0
    %357 = vmatprep.subr.mxu0 0.0
    %358 = vmatpush2.msra.mxu0 0.0
    %359 = vmatprep.subr.mxu0 0.0
    %360 = vmatpush2.msra.mxu0 0.0
    %361 = vmatprep.subr.mxu0 0.0
    %362 = vmatpush2.msra.mxu0 0.0
    %363 = vmatprep.subr.mxu0 0.0
    %364 = vmatpush2.msra.mxu0 0.0
    %365 = vmatprep.subr.mxu0 0.0
    %366 = vmatpush2.msra.mxu0 0.0
    %367 = vmatprep.subr.mxu0 0.0
    %368 = vmatpush2.msra.mxu0 0.0
    %369 = vmatprep.mubr.f32.mxu0 0.0
    %370 = vmatmul.mubr.f32.gmra.mxu0 %v282
    %v371 = vpop.f32.mrf.mxu0
    %v372 = vadd.f32 0.0, %v371
    %v373 = vpop.f32.mrf.mxu0
    %374 = vmatprep.mubr.f32.mxu0 0.0
    %375 = vmatmul.mubr.f32.gmra.mxu0 %v285
    %v376 = vpop.f32.mrf.mxu0
    %v377 = vadd.f32 0.0, %v376
    %v378 = vpop.f32.mrf.mxu0
    %379 = vmatprep.mubr.f32.mxu0 0.0
    %380 = vmatmul.mubr.f32.gmra.mxu0 %v288
    %v381 = vpop.f32.mrf.mxu0
    %v382 = vadd.f32 0.0, %v381
    %v383 = vpop.f32.mrf.mxu0
    %384 = vmatprep.mubr.f32.mxu0 0.0
    %385 = vmatmul.mubr.f32.gmra.mxu0 %v291
    %v386 = vpop.f32.mrf.mxu0
    %v387 = vadd.f32 0.0, %v386
    %v388 = vpop.f32.mrf.mxu0
    %389 = vmatprep.mubr.f32.mxu0 0.0
    %390 = vmatmul.mubr.f32.gmra.mxu0 %v294
    %v391 = vpop.f32.mrf.mxu0
    %v392 = vadd.f32 0.0, %v391
    %v393 = vpop.f32.mrf.mxu0
    %394 = vmatprep.mubr.f32.mxu0 0.0
    %395 = vmatmul.mubr.f32.gmra.mxu0 %v297
    %v396 = vpop.f32.mrf.mxu0
    %v397 = vadd.f32 0.0, %v396
    %v398 = vpop.f32.mrf.mxu0
    %399 = vmatprep.mubr.f32.mxu0 0.0
    %400 = vmatmul.mubr.f32.gmra.mxu0 %v300
    %v401 = vpop.f32.mrf.mxu0
    %v402 = vadd.f32 0.0, %v401
    %v403 = vpop.f32.mrf.mxu0
    %404 = vmatprep.mubr.f32.mxu0 0.0
    %405 = vmatmul.mubr.f32.gmra.mxu0 %v303
    %v406 = vpop.f32.mrf.mxu0
    %v407 = vadd.f32 0.0, %v406
    %v408 = vpop.f32.mrf.mxu0
    %409 = vdwg.mxu0
    %v411 = vsel %vm280, %v32, 0
    %v414 = vsel %vm280, %v33, 0
    %v417 = vsel %vm280, %v34, 0
    %v420 = vsel %vm280, %v35, 0
    %v423 = vsel %vm280, %v36, 0
    %v426 = vsel %vm280, %v37, 0
    %v429 = vsel %vm280, %v38, 0
    %v432 = vsel %vm280, %v39, 0
    %434 = vmatprep.subr.mxu0 0.0
    %435 = vmatpush1.msra.mxu0 0.0
    %436 = vmatprep.subr.mxu0 0.0
    %437 = vmatpush1.msra.mxu0 0.0
    %438 = vmatprep.subr.mxu0 0.0
    %439 = vmatpush1.msra.mxu0 0.0
    %440 = vmatprep.subr.mxu0 0.0
    %441 = vmatpush1.msra.mxu0 0.0
    %442 = vmatprep.subr.mxu0 0.0
    %443 = vmatpush1.msra.mxu0 0.0
    %444 = vmatprep.subr.mxu0 0.0
    %445 = vmatpush1.msra.mxu0 0.0
    %446 = vmatprep.subr.mxu0 0.0
    %447 = vmatpush1.msra.mxu0 0.0
    %448 = vmatprep.subr.mxu0 0.0
    %449 = vmatpush1.msra.mxu0 0.0
    %450 = vmatprep.subr.mxu0 0.0
    %451 = vmatpush1.msra.mxu0 %v167
    %452 = vmatprep.subr.mxu0 0.0
    %453 = vmatpush1.msra.mxu0 %v166
    %454 = vmatprep.subr.mxu0 0.0
    %455 = vmatpush1.msra.mxu0 %v165
    %456 = vmatprep.subr.mxu0 0.0
    %457 = vmatpush1.msra.mxu0 %v164
    %458 = vmatprep.subr.mxu0 0.0
    %459 = vmatpush1.msra.mxu0 %v163
    %460 = vmatprep.subr.mxu0 0.0
    %461 = vmatpush1.msra.mxu0 %v162
    %462 = vmatprep.subr.mxu0 0.0
    %463 = vmatpush1.msra.mxu0 %v161
    %464 = vmatprep.subr.mxu0 0.0
    %465 = vmatpush1.msra.mxu0 %v160
    %466 = vmatprep.subr.mxu0 0.0
    %467 = vmatpush2.msra.mxu0 0.0
    %468 = vmatprep.subr.mxu0 0.0
    %469 = vmatpush2.msra.mxu0 0.0
    %470 = vmatprep.subr.mxu0 0.0
    %471 = vmatpush2.msra.mxu0 0.0
    %472 = vmatprep.subr.mxu0 0.0
    %473 = vmatpush2.msra.mxu0 0.0
    %474 = vmatprep.subr.mxu0 0.0
    %475 = vmatpush2.msra.mxu0 0.0
    %476 = vmatprep.subr.mxu0 0.0
    %477 = vmatpush2.msra.mxu0 0.0
    %478 = vmatprep.subr.mxu0 0.0
    %479 = vmatpush2.msra.mxu0 0.0
    %480 = vmatprep.subr.mxu0 0.0
    %481 = vmatpush2.msra.mxu0 0.0
    %482 = vmatprep.subr.mxu0 0.0
    %483 = vmatpush2.msra.mxu0 0.0
    %484 = vmatprep.subr.mxu0 0.0
    %485 = vmatpush2.msra.mxu0 0.0
    %486 = vmatprep.subr.mxu0 0.0
    %487 = vmatpush2.msra.mxu0 0.0
    %488 = vmatprep.subr.mxu0 0.0
    %489 = vmatpush2.msra.mxu0 0.0
    %490 = vmatprep.subr.mxu0 0.0
    %491 = vmatpush2.msra.mxu0 0.0
    %492 = vmatprep.subr.mxu0 0.0
    %493 = vmatpush2.msra.mxu0 0.0
    %494 = vmatprep.subr.mxu0 0.0
    %495 = vmatpush2.msra.mxu0 0.0
    %496 = vmatprep.subr.mxu0 0.0
    %497 = vmatpush2.msra.mxu0 0.0
    %498 = vmatprep.mubr.f32.mxu0 0.0
    %499 = vmatmul.mubr.f32.gmra.mxu0 %v411
    %v500 = vpop.f32.mrf.mxu0
    %v501 = vadd.f32 0.0, %v500
    %v502 = vpop.f32.mrf.mxu0
    %503 = vmatprep.mubr.f32.mxu0 0.0
    %504 = vmatmul.mubr.f32.gmra.mxu0 %v414
    %v505 = vpop.f32.mrf.mxu0
    %v506 = vadd.f32 0.0, %v505
    %v507 = vpop.f32.mrf.mxu0
    %508 = vmatprep.mubr.f32.mxu0 0.0
    %509 = vmatmul.mubr.f32.gmra.mxu0 %v417
    %v510 = vpop.f32.mrf.mxu0
    %v511 = vadd.f32 0.0, %v510
    %v512 = vpop.f32.mrf.mxu0
    %513 = vmatprep.mubr.f32.mxu0 0.0
    %514 = vmatmul.mubr.f32.gmra.mxu0 %v420
    %v515 = vpop.f32.mrf.mxu0
    %v516 = vadd.f32 0.0, %v515
    %v517 = vpop.f32.mrf.mxu0
    %518 = vmatprep.mubr.f32.mxu0 0.0
    %519 = vmatmul.mubr.f32.gmra.mxu0 %v423
    %v520 = vpop.f32.mrf.mxu0
    %v521 = vadd.f32 0.0, %v520
    %v522 = vpop.f32.mrf.mxu0
    %523 = vmatprep.mubr.f32.mxu0 0.0
    %524 = vmatmul.mubr.f32.gmra.mxu0 %v426
    %v525 = vpop.f32.mrf.mxu0
    %v526 = vadd.f32 0.0, %v525
    %v527 = vpop.f32.mrf.mxu0
    %528 = vmatprep.mubr.f32.mxu0 0.0
    %529 = vmatmul.mubr.f32.gmra.mxu0 %v429
    %v530 = vpop.f32.mrf.mxu0
    %v531 = vadd.f32 0.0, %v530
    %v532 = vpop.f32.mrf.mxu0
    %533 = vmatprep.mubr.f32.mxu0 0.0
    %534 = vmatmul.mubr.f32.gmra.mxu0 %v432
    %v535 = vpop.f32.mrf.mxu0
    %v536 = vadd.f32 0.0, %v535
    %v537 = vpop.f32.mrf.mxu0
    %538 = vdwg.mxu0
    %v540 = vsel %vm280, %v40, 0
    %v543 = vsel %vm280, %v41, 0
    %v546 = vsel %vm280, %v42, 0
    %v549 = vsel %vm280, %v43, 0
    %v552 = vsel %vm280, %v44, 0
    %v555 = vsel %vm280, %v45, 0
    %v558 = vsel %vm280, %v46, 0
    %v561 = vsel %vm280, %v47, 0
    %563 = vmatprep.subr.mxu0 0.0
    %564 = vmatpush1.msra.mxu0 0.0
    %565 = vmatprep.subr.mxu0 0.0
    %566 = vmatpush1.msra.mxu0 0.0
    %567 = vmatprep.subr.mxu0 0.0
    %568 = vmatpush1.msra.mxu0 0.0
    %569 = vmatprep.subr.mxu0 0.0
    %570 = vmatpush1.msra.mxu0 0.0
    %571 = vmatprep.subr.mxu0 0.0
    %572 = vmatpush1.msra.mxu0 0.0
    %573 = vmatprep.subr.mxu0 0.0
    %574 = vmatpush1.msra.mxu0 0.0
    %575 = vmatprep.subr.mxu0 0.0
    %576 = vmatpush1.msra.mxu0 0.0
    %577 = vmatprep.subr.mxu0 0.0
    %578 = vmatpush1.msra.mxu0 0.0
    %579 = vmatprep.subr.mxu0 0.0
    %580 = vmatpush1.msra.mxu0 %v175
    %581 = vmatprep.subr.mxu0 0.0
    %582 = vmatpush1.msra.mxu0 %v174
    %583 = vmatprep.subr.mxu0 0.0
    %584 = vmatpush1.msra.mxu0 %v173
    %585 = vmatprep.subr.mxu0 0.0
    %586 = vmatpush1.msra.mxu0 %v172
    %587 = vmatprep.subr.mxu0 0.0
    %588 = vmatpush1.msra.mxu0 %v171
    %589 = vmatprep.subr.mxu0 0.0
    %590 = vmatpush1.msra.mxu0 %v170
    %591 = vmatprep.subr.mxu0 0.0
    %592 = vmatpush1.msra.mxu0 %v169
    %593 = vmatprep.subr.mxu0 0.0
    %594 = vmatpush1.msra.mxu0 %v168
    %595 = vmatprep.subr.mxu0 0.0
    %596 = vmatpush2.msra.mxu0 0.0
    %597 = vmatprep.subr.mxu0 0.0
    %598 = vmatpush2.msra.mxu0 0.0
    %599 = vmatprep.subr.mxu0 0.0
    %600 = vmatpush2.msra.mxu0 0.0
    %601 = vmatprep.subr.mxu0 0.0
    %602 = vmatpush2.msra.mxu0 0.0
    %603 = vmatprep.subr.mxu0 0.0
    %604 = vmatpush2.msra.mxu0 0.0
    %605 = vmatprep.subr.mxu0 0.0
    %606 = vmatpush2.msra.mxu0 0.0
    %607 = vmatprep.subr.mxu0 0.0
    %608 = vmatpush2.msra.mxu0 0.0
    %609 = vmatprep.subr.mxu0 0.0
    %610 = vmatpush2.msra.mxu0 0.0
    %611 = vmatprep.subr.mxu0 0.0
    %612 = vmatpush2.msra.mxu0 0.0
    %613 = vmatprep.subr.mxu0 0.0
    %614 = vmatpush2.msra.mxu0 0.0
    %615 = vmatprep.subr.mxu0 0.0
    %616 = vmatpush2.msra.mxu0 0.0
    %617 = vmatprep.subr.mxu0 0.0
    %618 = vmatpush2.msra.mxu0 0.0
    %619 = vmatprep.subr.mxu0 0.0
    %620 = vmatpush2.msra.mxu0 0.0
    %621 = vmatprep.subr.mxu0 0.0
    %622 = vmatpush2.msra.mxu0 0.0
    %623 = vmatprep.subr.mxu0 0.0
    %624 = vmatpush2.msra.mxu0 0.0
    %625 = vmatprep.subr.mxu0 0.0
    %626 = vmatpush2.msra.mxu0 0.0
    %627 = vmatprep.mubr.f32.mxu0 0.0
    %628 = vmatmul.mubr.f32.gmra.mxu0 %v540
    %v629 = vpop.f32.mrf.mxu0
    %v630 = vadd.f32 0.0, %v629
    %v631 = vpop.f32.mrf.mxu0
    %632 = vmatprep.mubr.f32.mxu0 0.0
    %633 = vmatmul.mubr.f32.gmra.mxu0 %v543
    %v634 = vpop.f32.mrf.mxu0
    %v635 = vadd.f32 0.0, %v634
    %v636 = vpop.f32.mrf.mxu0
    %637 = vmatprep.mubr.f32.mxu0 0.0
    %638 = vmatmul.mubr.f32.gmra.mxu0 %v546
    %v639 = vpop.f32.mrf.mxu0
    %v640 = vadd.f32 0.0, %v639
    %v641 = vpop.f32.mrf.mxu0
    %642 = vmatprep.mubr.f32.mxu0 0.0
    %643 = vmatmul.mubr.f32.gmra.mxu0 %v549
    %v644 = vpop.f32.mrf.mxu0
    %v645 = vadd.f32 0.0, %v644
    %v646 = vpop.f32.mrf.mxu0
    %647 = vmatprep.mubr.f32.mxu0 0.0
    %648 = vmatmul.mubr.f32.gmra.mxu0 %v552
    %v649 = vpop.f32.mrf.mxu0
    %v650 = vadd.f32 0.0, %v649
    %v651 = vpop.f32.mrf.mxu0
    %652 = vmatprep.mubr.f32.mxu0 0.0
    %653 = vmatmul.mubr.f32.gmra.mxu0 %v555
    %v654 = vpop.f32.mrf.mxu0
    %v655 = vadd.f32 0.0, %v654
    %v656 = vpop.f32.mrf.mxu0
    %657 = vmatprep.mubr.f32.mxu0 0.0
    %658 = vmatmul.mubr.f32.gmra.mxu0 %v558
    %v659 = vpop.f32.mrf.mxu0
    %v660 = vadd.f32 0.0, %v659
    %v661 = vpop.f32.mrf.mxu0
    %662 = vmatprep.mubr.f32.mxu0 0.0
    %663 = vmatmul.mubr.f32.gmra.mxu0 %v561
    %v664 = vpop.f32.mrf.mxu0
    %v665 = vadd.f32 0.0, %v664
    %v666 = vpop.f32.mrf.mxu0
    %667 = vdwg.mxu0
    %v669 = vsel %vm280, %v48, 0
    %v672 = vsel %vm280, %v49, 0
    %v675 = vsel %vm280, %v50, 0
    %v678 = vsel %vm280, %v51, 0
    %v681 = vsel %vm280, %v52, 0
    %v684 = vsel %vm280, %v53, 0
    %v687 = vsel %vm280, %v54, 0
    %v690 = vsel %vm280, %v55, 0
    %692 = vmatprep.subr.mxu0 0.0
    %693 = vmatpush1.msra.mxu0 0.0
    %694 = vmatprep.subr.mxu0 0.0
    %695 = vmatpush1.msra.mxu0 0.0
    %696 = vmatprep.subr.mxu0 0.0
    %697 = vmatpush1.msra.mxu0 0.0
    %698 = vmatprep.subr.mxu0 0.0
    %699 = vmatpush1.msra.mxu0 0.0
    %700 = vmatprep.subr.mxu0 0.0
    %701 = vmatpush1.msra.mxu0 0.0
    %702 = vmatprep.subr.mxu0 0.0
    %703 = vmatpush1.msra.mxu0 0.0
    %704 = vmatprep.subr.mxu0 0.0
    %705 = vmatpush1.msra.mxu0 0.0
    %706 = vmatprep.subr.mxu0 0.0
    %707 = vmatpush1.msra.mxu0 0.0
    %708 = vmatprep.subr.mxu0 0.0
    %709 = vmatpush1.msra.mxu0 %v183
    %710 = vmatprep.subr.mxu0 0.0
    %711 = vmatpush1.msra.mxu0 %v182
    %712 = vmatprep.subr.mxu0 0.0
    %713 = vmatpush1.msra.mxu0 %v181
    %714 = vmatprep.subr.mxu0 0.0
    %715 = vmatpush1.msra.mxu0 %v180
    %716 = vmatprep.subr.mxu0 0.0
    %717 = vmatpush1.msra.mxu0 %v179
    %718 = vmatprep.subr.mxu0 0.0
    %719 = vmatpush1.msra.mxu0 %v178
    %720 = vmatprep.subr.mxu0 0.0
    %721 = vmatpush1.msra.mxu0 %v177
    %722 = vmatprep.subr.mxu0 0.0
    %723 = vmatpush1.msra.mxu0 %v176
    %724 = vmatprep.subr.mxu0 0.0
    %725 = vmatpush2.msra.mxu0 0.0
    %726 = vmatprep.subr.mxu0 0.0
    %727 = vmatpush2.msra.mxu0 0.0
    %728 = vmatprep.subr.mxu0 0.0
    %729 = vmatpush2.msra.mxu0 0.0
    %730 = vmatprep.subr.mxu0 0.0
    %731 = vmatpush2.msra.mxu0 0.0
    %732 = vmatprep.subr.mxu0 0.0
    %733 = vmatpush2.msra.mxu0 0.0
    %734 = vmatprep.subr.mxu0 0.0
    %735 = vmatpush2.msra.mxu0 0.0
    %736 = vmatprep.subr.mxu0 0.0
    %737 = vmatpush2.msra.mxu0 0.0
    %738 = vmatprep.subr.mxu0 0.0
    %739 = vmatpush2.msra.mxu0 0.0
    %740 = vmatprep.subr.mxu0 0.0
    %741 = vmatpush2.msra.mxu0 0.0
    %742 = vmatprep.subr.mxu0 0.0
    %743 = vmatpush2.msra.mxu0 0.0
    %744 = vmatprep.subr.mxu0 0.0
    %745 = vmatpush2.msra.mxu0 0.0
    %746 = vmatprep.subr.mxu0 0.0
    %747 = vmatpush2.msra.mxu0 0.0
    %748 = vmatprep.subr.mxu0 0.0
    %749 = vmatpush2.msra.mxu0 0.0
    %750 = vmatprep.subr.mxu0 0.0
    %751 = vmatpush2.msra.mxu0 0.0
    %752 = vmatprep.subr.mxu0 0.0
    %753 = vmatpush2.msra.mxu0 0.0
    %754 = vmatprep.subr.mxu0 0.0
    %755 = vmatpush2.msra.mxu0 0.0
    %756 = vmatprep.mubr.f32.mxu0 0.0
    %757 = vmatmul.mubr.f32.gmra.mxu0 %v669
    %v758 = vpop.f32.mrf.mxu0
    %v759 = vadd.f32 0.0, %v758
    %v760 = vpop.f32.mrf.mxu0
    %761 = vmatprep.mubr.f32.mxu0 0.0
    %762 = vmatmul.mubr.f32.gmra.mxu0 %v672
    %v763 = vpop.f32.mrf.mxu0
    %v764 = vadd.f32 0.0, %v763
    %v765 = vpop.f32.mrf.mxu0
    %766 = vmatprep.mubr.f32.mxu0 0.0
    %767 = vmatmul.mubr.f32.gmra.mxu0 %v675
    %v768 = vpop.f32.mrf.mxu0
    %v769 = vadd.f32 0.0, %v768
    %v770 = vpop.f32.mrf.mxu0
    %771 = vmatprep.mubr.f32.mxu0 0.0
    %772 = vmatmul.mubr.f32.gmra.mxu0 %v678
    %v773 = vpop.f32.mrf.mxu0
    %v774 = vadd.f32 0.0, %v773
    %v775 = vpop.f32.mrf.mxu0
    %776 = vmatprep.mubr.f32.mxu0 0.0
    %777 = vmatmul.mubr.f32.gmra.mxu0 %v681
    %v778 = vpop.f32.mrf.mxu0
    %v779 = vadd.f32 0.0, %v778
    %v780 = vpop.f32.mrf.mxu0
    %781 = vmatprep.mubr.f32.mxu0 0.0
    %782 = vmatmul.mubr.f32.gmra.mxu0 %v684
    %v783 = vpop.f32.mrf.mxu0
    %v784 = vadd.f32 0.0, %v783
    %v785 = vpop.f32.mrf.mxu0
    %786 = vmatprep.mubr.f32.mxu0 0.0
    %787 = vmatmul.mubr.f32.gmra.mxu0 %v687
    %v788 = vpop.f32.mrf.mxu0
    %v789 = vadd.f32 0.0, %v788
    %v790 = vpop.f32.mrf.mxu0
    %791 = vmatprep.mubr.f32.mxu0 0.0
    %792 = vmatmul.mubr.f32.gmra.mxu0 %v690
    %v793 = vpop.f32.mrf.mxu0
    %v794 = vadd.f32 0.0, %v793
    %v795 = vpop.f32.mrf.mxu0
    %796 = vdwg.mxu0
    %v798 = vsel %vm280, %v56, 0
    %v801 = vsel %vm280, %v57, 0
    %v804 = vsel %vm280, %v58, 0
    %v807 = vsel %vm280, %v59, 0
    %v810 = vsel %vm280, %v60, 0
    %v813 = vsel %vm280, %v61, 0
    %v816 = vsel %vm280, %v62, 0
    %v819 = vsel %vm280, %v63, 0
    %821 = vmatprep.subr.mxu0 0.0
    %822 = vmatpush1.msra.mxu0 0.0
    %823 = vmatprep.subr.mxu0 0.0
    %824 = vmatpush1.msra.mxu0 0.0
    %825 = vmatprep.subr.mxu0 0.0
    %826 = vmatpush1.msra.mxu0 0.0
    %827 = vmatprep.subr.mxu0 0.0
    %828 = vmatpush1.msra.mxu0 0.0
    %829 = vmatprep.subr.mxu0 0.0
    %830 = vmatpush1.msra.mxu0 0.0
    %831 = vmatprep.subr.mxu0 0.0
    %832 = vmatpush1.msra.mxu0 0.0
    %833 = vmatprep.subr.mxu0 0.0
    %834 = vmatpush1.msra.mxu0 0.0
    %835 = vmatprep.subr.mxu0 0.0
    %836 = vmatpush1.msra.mxu0 0.0
    %837 = vmatprep.subr.mxu0 0.0
    %838 = vmatpush1.msra.mxu0 %v191
    %839 = vmatprep.subr.mxu0 0.0
    %840 = vmatpush1.msra.mxu0 %v190
    %841 = vmatprep.subr.mxu0 0.0
    %842 = vmatpush1.msra.mxu0 %v189
    %843 = vmatprep.subr.mxu0 0.0
    %844 = vmatpush1.msra.mxu0 %v188
    %845 = vmatprep.subr.mxu0 0.0
    %846 = vmatpush1.msra.mxu0 %v187
    %847 = vmatprep.subr.mxu0 0.0
    %848 = vmatpush1.msra.mxu0 %v186
    %849 = vmatprep.subr.mxu0 0.0
    %850 = vmatpush1.msra.mxu0 %v185
    %851 = vmatprep.subr.mxu0 0.0
    %852 = vmatpush1.msra.mxu0 %v184
    %853 = vmatprep.subr.mxu0 0.0
    %854 = vmatpush2.msra.mxu0 0.0
    %855 = vmatprep.subr.mxu0 0.0
    %856 = vmatpush2.msra.mxu0 0.0
    %857 = vmatprep.subr.mxu0 0.0
    %858 = vmatpush2.msra.mxu0 0.0
    %859 = vmatprep.subr.mxu0 0.0
    %860 = vmatpush2.msra.mxu0 0.0
    %861 = vmatprep.subr.mxu0 0.0
    %862 = vmatpush2.msra.mxu0 0.0
    %863 = vmatprep.subr.mxu0 0.0
    %864 = vmatpush2.msra.mxu0 0.0
    %865 = vmatprep.subr.mxu0 0.0
    %866 = vmatpush2.msra.mxu0 0.0
    %867 = vmatprep.subr.mxu0 0.0
    %868 = vmatpush2.msra.mxu0 0.0
    %869 = vmatprep.subr.mxu0 0.0
    %870 = vmatpush2.msra.mxu0 0.0
    %871 = vmatprep.subr.mxu0 0.0
    %872 = vmatpush2.msra.mxu0 0.0
    %873 = vmatprep.subr.mxu0 0.0
    %874 = vmatpush2.msra.mxu0 0.0
    %875 = vmatprep.subr.mxu0 0.0
    %876 = vmatpush2.msra.mxu0 0.0
    %877 = vmatprep.subr.mxu0 0.0
    %878 = vmatpush2.msra.mxu0 0.0
    %879 = vmatprep.subr.mxu0 0.0
    %880 = vmatpush2.msra.mxu0 0.0
    %881 = vmatprep.subr.mxu0 0.0
    %882 = vmatpush2.msra.mxu0 0.0
    %883 = vmatprep.subr.mxu0 0.0
    %884 = vmatpush2.msra.mxu0 0.0
    %885 = vmatprep.mubr.f32.mxu0 0.0
    %886 = vmatmul.mubr.f32.gmra.mxu0 %v798
    %v887 = vpop.f32.mrf.mxu0
    %v888 = vadd.f32 0.0, %v887
    %v889 = vpop.f32.mrf.mxu0
    %890 = vmatprep.mubr.f32.mxu0 0.0
    %891 = vmatmul.mubr.f32.gmra.mxu0 %v801
    %v892 = vpop.f32.mrf.mxu0
    %v893 = vadd.f32 0.0, %v892
    %v894 = vpop.f32.mrf.mxu0
    %895 = vmatprep.mubr.f32.mxu0 0.0
    %896 = vmatmul.mubr.f32.gmra.mxu0 %v804
    %v897 = vpop.f32.mrf.mxu0
    %v898 = vadd.f32 0.0, %v897
    %v899 = vpop.f32.mrf.mxu0
    %900 = vmatprep.mubr.f32.mxu0 0.0
    %901 = vmatmul.mubr.f32.gmra.mxu0 %v807
    %v902 = vpop.f32.mrf.mxu0
    %v903 = vadd.f32 0.0, %v902
    %v904 = vpop.f32.mrf.mxu0
    %905 = vmatprep.mubr.f32.mxu0 0.0
    %906 = vmatmul.mubr.f32.gmra.mxu0 %v810
    %v907 = vpop.f32.mrf.mxu0
    %v908 = vadd.f32 0.0, %v907
    %v909 = vpop.f32.mrf.mxu0
    %910 = vmatprep.mubr.f32.mxu0 0.0
    %911 = vmatmul.mubr.f32.gmra.mxu0 %v813
    %v912 = vpop.f32.mrf.mxu0
    %v913 = vadd.f32 0.0, %v912
    %v914 = vpop.f32.mrf.mxu0
    %915 = vmatprep.mubr.f32.mxu0 0.0
    %916 = vmatmul.mubr.f32.gmra.mxu0 %v816
    %v917 = vpop.f32.mrf.mxu0
    %v918 = vadd.f32 0.0, %v917
    %v919 = vpop.f32.mrf.mxu0
    %920 = vmatprep.mubr.f32.mxu0 0.0
    %921 = vmatmul.mubr.f32.gmra.mxu0 %v819
    %v922 = vpop.f32.mrf.mxu0
    %v923 = vadd.f32 0.0, %v922
    %v924 = vpop.f32.mrf.mxu0
    %925 = vdwg.mxu0
    %v927 = vsel %vm280, %v64, 0
    %v930 = vsel %vm280, %v65, 0
    %v933 = vsel %vm280, %v66, 0
    %v936 = vsel %vm280, %v67, 0
    %v939 = vsel %vm280, %v68, 0
    %v942 = vsel %vm280, %v69, 0
    %v945 = vsel %vm280, %v70, 0
    %v948 = vsel %vm280, %v71, 0
    %950 = vmatprep.subr.mxu0 0.0
    %951 = vmatpush1.msra.mxu0 0.0
    %952 = vmatprep.subr.mxu0 0.0
    %953 = vmatpush1.msra.mxu0 0.0
    %954 = vmatprep.subr.mxu0 0.0
    %955 = vmatpush1.msra.mxu0 0.0
    %956 = vmatprep.subr.mxu0 0.0
    %957 = vmatpush1.msra.mxu0 0.0
    %958 = vmatprep.subr.mxu0 0.0
    %959 = vmatpush1.msra.mxu0 0.0
    %960 = vmatprep.subr.mxu0 0.0
    %961 = vmatpush1.msra.mxu0 0.0
    %962 = vmatprep.subr.mxu0 0.0
    %963 = vmatpush1.msra.mxu0 0.0
    %964 = vmatprep.subr.mxu0 0.0
    %965 = vmatpush1.msra.mxu0 0.0
    %966 = vmatprep.subr.mxu0 0.0
    %967 = vmatpush1.msra.mxu0 %v199
    %968 = vmatprep.subr.mxu0 0.0
    %969 = vmatpush1.msra.mxu0 %v198
    %970 = vmatprep.subr.mxu0 0.0
    %971 = vmatpush1.msra.mxu0 %v197
    %972 = vmatprep.subr.mxu0 0.0
    %973 = vmatpush1.msra.mxu0 %v196
    %974 = vmatprep.subr.mxu0 0.0
    %975 = vmatpush1.msra.mxu0 %v195
    %976 = vmatprep.subr.mxu0 0.0
    %977 = vmatpush1.msra.mxu0 %v194
    %978 = vmatprep.subr.mxu0 0.0
    %979 = vmatpush1.msra.mxu0 %v193
    %980 = vmatprep.subr.mxu0 0.0
    %981 = vmatpush1.msra.mxu0 %v192
    %982 = vmatprep.subr.mxu0 0.0
    %983 = vmatpush2.msra.mxu0 0.0
    %984 = vmatprep.subr.mxu0 0.0
    %985 = vmatpush2.msra.mxu0 0.0
    %986 = vmatprep.subr.mxu0 0.0
    %987 = vmatpush2.msra.mxu0 0.0
    %988 = vmatprep.subr.mxu0 0.0
    %989 = vmatpush2.msra.mxu0 0.0
    %990 = vmatprep.subr.mxu0 0.0
    %991 = vmatpush2.msra.mxu0 0.0
    %992 = vmatprep.subr.mxu0 0.0
    %993 = vmatpush2.msra.mxu0 0.0
    %994 = vmatprep.subr.mxu0 0.0
    %995 = vmatpush2.msra.mxu0 0.0
    %996 = vmatprep.subr.mxu0 0.0
    %997 = vmatpush2.msra.mxu0 0.0
    %998 = vmatprep.subr.mxu0 0.0
    %999 = vmatpush2.msra.mxu0 0.0
    %1000 = vmatprep.subr.mxu0 0.0
    %1001 = vmatpush2.msra.mxu0 0.0
    %1002 = vmatprep.subr.mxu0 0.0
    %1003 = vmatpush2.msra.mxu0 0.0
    %1004 = vmatprep.subr.mxu0 0.0
    %1005 = vmatpush2.msra.mxu0 0.0
    %1006 = vmatprep.subr.mxu0 0.0
    %1007 = vmatpush2.msra.mxu0 0.0
    %1008 = vmatprep.subr.mxu0 0.0
    %1009 = vmatpush2.msra.mxu0 0.0
    %1010 = vmatprep.subr.mxu0 0.0
    %1011 = vmatpush2.msra.mxu0 0.0
    %1012 = vmatprep.subr.mxu0 0.0
    %1013 = vmatpush2.msra.mxu0 0.0
    %1014 = vmatprep.mubr.f32.mxu0 0.0
    %1015 = vmatmul.mubr.f32.gmra.mxu0 %v927
    %v1016 = vpop.f32.mrf.mxu0
    %v1017 = vadd.f32 0.0, %v1016
    %v1018 = vpop.f32.mrf.mxu0
    %1019 = vmatprep.mubr.f32.mxu0 0.0
    %1020 = vmatmul.mubr.f32.gmra.mxu0 %v930
    %v1021 = vpop.f32.mrf.mxu0
    %v1022 = vadd.f32 0.0, %v1021
    %v1023 = vpop.f32.mrf.mxu0
    %1024 = vmatprep.mubr.f32.mxu0 0.0
    %1025 = vmatmul.mubr.f32.gmra.mxu0 %v933
    %v1026 = vpop.f32.mrf.mxu0
    %v1027 = vadd.f32 0.0, %v1026
    %v1028 = vpop.f32.mrf.mxu0
    %1029 = vmatprep.mubr.f32.mxu0 0.0
    %1030 = vmatmul.mubr.f32.gmra.mxu0 %v936
    %v1031 = vpop.f32.mrf.mxu0
    %v1032 = vadd.f32 0.0, %v1031
    %v1033 = vpop.f32.mrf.mxu0
    %1034 = vmatprep.mubr.f32.mxu0 0.0
    %1035 = vmatmul.mubr.f32.gmra.mxu0 %v939
    %v1036 = vpop.f32.mrf.mxu0
    %v1037 = vadd.f32 0.0, %v1036
    %v1038 = vpop.f32.mrf.mxu0
    %1039 = vmatprep.mubr.f32.mxu0 0.0
    %1040 = vmatmul.mubr.f32.gmra.mxu0 %v942
    %v1041 = vpop.f32.mrf.mxu0
    %v1042 = vadd.f32 0.0, %v1041
    %v1043 = vpop.f32.mrf.mxu0
    %1044 = vmatprep.mubr.f32.mxu0 0.0
    %1045 = vmatmul.mubr.f32.gmra.mxu0 %v945
    %v1046 = vpop.f32.mrf.mxu0
    %v1047 = vadd.f32 0.0, %v1046
    %v1048 = vpop.f32.mrf.mxu0
    %1049 = vmatprep.mubr.f32.mxu0 0.0
    %1050 = vmatmul.mubr.f32.gmra.mxu0 %v948
    %v1051 = vpop.f32.mrf.mxu0
    %v1052 = vadd.f32 0.0, %v1051
    %v1053 = vpop.f32.mrf.mxu0
    %1054 = vdwg.mxu0
    %v1056 = vsel %vm280, %v72, 0
    %v1059 = vsel %vm280, %v73, 0
    %v1062 = vsel %vm280, %v74, 0
    %v1065 = vsel %vm280, %v75, 0
    %v1068 = vsel %vm280, %v76, 0
    %v1071 = vsel %vm280, %v77, 0
    %v1074 = vsel %vm280, %v78, 0
    %v1077 = vsel %vm280, %v79, 0
    %1079 = vmatprep.subr.mxu0 0.0
    %1080 = vmatpush1.msra.mxu0 0.0
    %1081 = vmatprep.subr.mxu0 0.0
    %1082 = vmatpush1.msra.mxu0 0.0
    %1083 = vmatprep.subr.mxu0 0.0
    %1084 = vmatpush1.msra.mxu0 0.0
    %1085 = vmatprep.subr.mxu0 0.0
    %1086 = vmatpush1.msra.mxu0 0.0
    %1087 = vmatprep.subr.mxu0 0.0
    %1088 = vmatpush1.msra.mxu0 0.0
    %1089 = vmatprep.subr.mxu0 0.0
    %1090 = vmatpush1.msra.mxu0 0.0
    %1091 = vmatprep.subr.mxu0 0.0
    %1092 = vmatpush1.msra.mxu0 0.0
    %1093 = vmatprep.subr.mxu0 0.0
    %1094 = vmatpush1.msra.mxu0 0.0
    %1095 = vmatprep.subr.mxu0 0.0
    %1096 = vmatpush1.msra.mxu0 %v207
    %1097 = vmatprep.subr.mxu0 0.0
    %1098 = vmatpush1.msra.mxu0 %v206
    %1099 = vmatprep.subr.mxu0 0.0
    %1100 = vmatpush1.msra.mxu0 %v205
    %1101 = vmatprep.subr.mxu0 0.0
    %1102 = vmatpush1.msra.mxu0 %v204
    %1103 = vmatprep.subr.mxu0 0.0
    %1104 = vmatpush1.msra.mxu0 %v203
    %1105 = vmatprep.subr.mxu0 0.0
    %1106 = vmatpush1.msra.mxu0 %v202
    %1107 = vmatprep.subr.mxu0 0.0
    %1108 = vmatpush1.msra.mxu0 %v201
    %1109 = vmatprep.subr.mxu0 0.0
    %1110 = vmatpush1.msra.mxu0 %v200
    %1111 = vmatprep.subr.mxu0 0.0
    %1112 = vmatpush2.msra.mxu0 0.0
    %1113 = vmatprep.subr.mxu0 0.0
    %1114 = vmatpush2.msra.mxu0 0.0
    %1115 = vmatprep.subr.mxu0 0.0
    %1116 = vmatpush2.msra.mxu0 0.0
    %1117 = vmatprep.subr.mxu0 0.0
    %1118 = vmatpush2.msra.mxu0 0.0
    %1119 = vmatprep.subr.mxu0 0.0
    %1120 = vmatpush2.msra.mxu0 0.0
    %1121 = vmatprep.subr.mxu0 0.0
    %1122 = vmatpush2.msra.mxu0 0.0
    %1123 = vmatprep.subr.mxu0 0.0
    %1124 = vmatpush2.msra.mxu0 0.0
    %1125 = vmatprep.subr.mxu0 0.0
    %1126 = vmatpush2.msra.mxu0 0.0
    %1127 = vmatprep.subr.mxu0 0.0
    %1128 = vmatpush2.msra.mxu0 0.0
    %1129 = vmatprep.subr.mxu0 0.0
    %1130 = vmatpush2.msra.mxu0 0.0
    %1131 = vmatprep.subr.mxu0 0.0
    %1132 = vmatpush2.msra.mxu0 0.0
    %1133 = vmatprep.subr.mxu0 0.0
    %1134 = vmatpush2.msra.mxu0 0.0
    %1135 = vmatprep.subr.mxu0 0.0
    %1136 = vmatpush2.msra.mxu0 0.0
    %1137 = vmatprep.subr.mxu0 0.0
    %1138 = vmatpush2.msra.mxu0 0.0
    %1139 = vmatprep.subr.mxu0 0.0
    %1140 = vmatpush2.msra.mxu0 0.0
    %1141 = vmatprep.subr.mxu0 0.0
    %1142 = vmatpush2.msra.mxu0 0.0
    %1143 = vmatprep.mubr.f32.mxu0 0.0
    %1144 = vmatmul.mubr.f32.gmra.mxu0 %v1056
    %v1145 = vpop.f32.mrf.mxu0
    %v1146 = vadd.f32 0.0, %v1145
    %v1147 = vpop.f32.mrf.mxu0
    %1148 = vmatprep.mubr.f32.mxu0 0.0
    %1149 = vmatmul.mubr.f32.gmra.mxu0 %v1059
    %v1150 = vpop.f32.mrf.mxu0
    %v1151 = vadd.f32 0.0, %v1150
    %v1152 = vpop.f32.mrf.mxu0
    %1153 = vmatprep.mubr.f32.mxu0 0.0
    %1154 = vmatmul.mubr.f32.gmra.mxu0 %v1062
    %v1155 = vpop.f32.mrf.mxu0
    %v1156 = vadd.f32 0.0, %v1155
    %v1157 = vpop.f32.mrf.mxu0
    %1158 = vmatprep.mubr.f32.mxu0 0.0
    %1159 = vmatmul.mubr.f32.gmra.mxu0 %v1065
    %v1160 = vpop.f32.mrf.mxu0
    %v1161 = vadd.f32 0.0, %v1160
    %v1162 = vpop.f32.mrf.mxu0
    %1163 = vmatprep.mubr.f32.mxu0 0.0
    %1164 = vmatmul.mubr.f32.gmra.mxu0 %v1068
    %v1165 = vpop.f32.mrf.mxu0
    %v1166 = vadd.f32 0.0, %v1165
    %v1167 = vpop.f32.mrf.mxu0
    %1168 = vmatprep.mubr.f32.mxu0 0.0
    %1169 = vmatmul.mubr.f32.gmra.mxu0 %v1071
    %v1170 = vpop.f32.mrf.mxu0
    %v1171 = vadd.f32 0.0, %v1170
    %v1172 = vpop.f32.mrf.mxu0
    %1173 = vmatprep.mubr.f32.mxu0 0.0
    %1174 = vmatmul.mubr.f32.gmra.mxu0 %v1074
    %v1175 = vpop.f32.mrf.mxu0
    %v1176 = vadd.f32 0.0, %v1175
    %v1177 = vpop.f32.mrf.mxu0
    %1178 = vmatprep.mubr.f32.mxu0 0.0
    %1179 = vmatmul.mubr.f32.gmra.mxu0 %v1077
    %v1180 = vpop.f32.mrf.mxu0
    %v1181 = vadd.f32 0.0, %v1180
    %v1182 = vpop.f32.mrf.mxu0
    %1183 = vdwg.mxu0
    %v1185 = vsel %vm280, %v80, 0
    %v1188 = vsel %vm280, %v81, 0
    %v1191 = vsel %vm280, %v82, 0
    %v1194 = vsel %vm280, %v83, 0
    %v1197 = vsel %vm280, %v84, 0
    %v1200 = vsel %vm280, %v85, 0
    %v1203 = vsel %vm280, %v86, 0
    %v1206 = vsel %vm280, %v87, 0
    %1208 = vmatprep.subr.mxu0 0.0
    %1209 = vmatpush1.msra.mxu0 0.0
    %1210 = vmatprep.subr.mxu0 0.0
    %1211 = vmatpush1.msra.mxu0 0.0
    %1212 = vmatprep.subr.mxu0 0.0
    %1213 = vmatpush1.msra.mxu0 0.0
    %1214 = vmatprep.subr.mxu0 0.0
    %1215 = vmatpush1.msra.mxu0 0.0
    %1216 = vmatprep.subr.mxu0 0.0
    %1217 = vmatpush1.msra.mxu0 0.0
    %1218 = vmatprep.subr.mxu0 0.0
    %1219 = vmatpush1.msra.mxu0 0.0
    %1220 = vmatprep.subr.mxu0 0.0
    %1221 = vmatpush1.msra.mxu0 0.0
    %1222 = vmatprep.subr.mxu0 0.0
    %1223 = vmatpush1.msra.mxu0 0.0
    %1224 = vmatprep.subr.mxu0 0.0
    %1225 = vmatpush1.msra.mxu0 %v215
    %1226 = vmatprep.subr.mxu0 0.0
    %1227 = vmatpush1.msra.mxu0 %v214
    %1228 = vmatprep.subr.mxu0 0.0
    %1229 = vmatpush1.msra.mxu0 %v213
    %1230 = vmatprep.subr.mxu0 0.0
    %1231 = vmatpush1.msra.mxu0 %v212
    %1232 = vmatprep.subr.mxu0 0.0
    %1233 = vmatpush1.msra.mxu0 %v211
    %1234 = vmatprep.subr.mxu0 0.0
    %1235 = vmatpush1.msra.mxu0 %v210
    %1236 = vmatprep.subr.mxu0 0.0
    %1237 = vmatpush1.msra.mxu0 %v209
    %1238 = vmatprep.subr.mxu0 0.0
    %1239 = vmatpush1.msra.mxu0 %v208
    %1240 = vmatprep.subr.mxu0 0.0
    %1241 = vmatpush2.msra.mxu0 0.0
    %1242 = vmatprep.subr.mxu0 0.0
    %1243 = vmatpush2.msra.mxu0 0.0
    %1244 = vmatprep.subr.mxu0 0.0
    %1245 = vmatpush2.msra.mxu0 0.0
    %1246 = vmatprep.subr.mxu0 0.0
    %1247 = vmatpush2.msra.mxu0 0.0
    %1248 = vmatprep.subr.mxu0 0.0
    %1249 = vmatpush2.msra.mxu0 0.0
    %1250 = vmatprep.subr.mxu0 0.0
    %1251 = vmatpush2.msra.mxu0 0.0
    %1252 = vmatprep.subr.mxu0 0.0
    %1253 = vmatpush2.msra.mxu0 0.0
    %1254 = vmatprep.subr.mxu0 0.0
    %1255 = vmatpush2.msra.mxu0 0.0
    %1256 = vmatprep.subr.mxu0 0.0
    %1257 = vmatpush2.msra.mxu0 0.0
    %1258 = vmatprep.subr.mxu0 0.0
    %1259 = vmatpush2.msra.mxu0 0.0
    %1260 = vmatprep.subr.mxu0 0.0
    %1261 = vmatpush2.msra.mxu0 0.0
    %1262 = vmatprep.subr.mxu0 0.0
    %1263 = vmatpush2.msra.mxu0 0.0
    %1264 = vmatprep.subr.mxu0 0.0
    %1265 = vmatpush2.msra.mxu0 0.0
    %1266 = vmatprep.subr.mxu0 0.0
    %1267 = vmatpush2.msra.mxu0 0.0
    %1268 = vmatprep.subr.mxu0 0.0
    %1269 = vmatpush2.msra.mxu0 0.0
    %1270 = vmatprep.subr.mxu0 0.0
    %1271 = vmatpush2.msra.mxu0 0.0
    %1272 = vmatprep.mubr.f32.mxu0 0.0
    %1273 = vmatmul.mubr.f32.gmra.mxu0 %v1185
    %v1274 = vpop.f32.mrf.mxu0
    %v1275 = vadd.f32 0.0, %v1274
    %v1276 = vpop.f32.mrf.mxu0
    %1277 = vmatprep.mubr.f32.mxu0 0.0
    %1278 = vmatmul.mubr.f32.gmra.mxu0 %v1188
    %v1279 = vpop.f32.mrf.mxu0
    %v1280 = vadd.f32 0.0, %v1279
    %v1281 = vpop.f32.mrf.mxu0
    %1282 = vmatprep.mubr.f32.mxu0 0.0
    %1283 = vmatmul.mubr.f32.gmra.mxu0 %v1191
    %v1284 = vpop.f32.mrf.mxu0
    %v1285 = vadd.f32 0.0, %v1284
    %v1286 = vpop.f32.mrf.mxu0
    %1287 = vmatprep.mubr.f32.mxu0 0.0
    %1288 = vmatmul.mubr.f32.gmra.mxu0 %v1194
    %v1289 = vpop.f32.mrf.mxu0
    %v1290 = vadd.f32 0.0, %v1289
    %v1291 = vpop.f32.mrf.mxu0
    %1292 = vmatprep.mubr.f32.mxu0 0.0
    %1293 = vmatmul.mubr.f32.gmra.mxu0 %v1197
    %v1294 = vpop.f32.mrf.mxu0
    %v1295 = vadd.f32 0.0, %v1294
    %v1296 = vpop.f32.mrf.mxu0
    %1297 = vmatprep.mubr.f32.mxu0 0.0
    %1298 = vmatmul.mubr.f32.gmra.mxu0 %v1200
    %v1299 = vpop.f32.mrf.mxu0
    %v1300 = vadd.f32 0.0, %v1299
    %v1301 = vpop.f32.mrf.mxu0
    %1302 = vmatprep.mubr.f32.mxu0 0.0
    %1303 = vmatmul.mubr.f32.gmra.mxu0 %v1203
    %v1304 = vpop.f32.mrf.mxu0
    %v1305 = vadd.f32 0.0, %v1304
    %v1306 = vpop.f32.mrf.mxu0
    %1307 = vmatprep.mubr.f32.mxu0 0.0
    %1308 = vmatmul.mubr.f32.gmra.mxu0 %v1206
    %v1309 = vpop.f32.mrf.mxu0
    %v1310 = vadd.f32 0.0, %v1309
    %v1311 = vpop.f32.mrf.mxu0
    %1312 = vdwg.mxu0
    %v1314 = vsel %vm280, %v88, 0
    %v1317 = vsel %vm280, %v89, 0
    %v1320 = vsel %vm280, %v90, 0
    %v1323 = vsel %vm280, %v91, 0
    %v1326 = vsel %vm280, %v92, 0
    %v1329 = vsel %vm280, %v93, 0
    %v1332 = vsel %vm280, %v94, 0
    %v1335 = vsel %vm280, %v95, 0
    %1337 = vmatprep.subr.mxu0 0.0
    %1338 = vmatpush1.msra.mxu0 0.0
    %1339 = vmatprep.subr.mxu0 0.0
    %1340 = vmatpush1.msra.mxu0 0.0
    %1341 = vmatprep.subr.mxu0 0.0
    %1342 = vmatpush1.msra.mxu0 0.0
    %1343 = vmatprep.subr.mxu0 0.0
    %1344 = vmatpush1.msra.mxu0 0.0
    %1345 = vmatprep.subr.mxu0 0.0
    %1346 = vmatpush1.msra.mxu0 0.0
    %1347 = vmatprep.subr.mxu0 0.0
    %1348 = vmatpush1.msra.mxu0 0.0
    %1349 = vmatprep.subr.mxu0 0.0
    %1350 = vmatpush1.msra.mxu0 0.0
    %1351 = vmatprep.subr.mxu0 0.0
    %1352 = vmatpush1.msra.mxu0 0.0
    %1353 = vmatprep.subr.mxu0 0.0
    %1354 = vmatpush1.msra.mxu0 %v223
    %1355 = vmatprep.subr.mxu0 0.0
    %1356 = vmatpush1.msra.mxu0 %v222
    %1357 = vmatprep.subr.mxu0 0.0
    %1358 = vmatpush1.msra.mxu0 %v221
    %1359 = vmatprep.subr.mxu0 0.0
    %1360 = vmatpush1.msra.mxu0 %v220
    %1361 = vmatprep.subr.mxu0 0.0
    %1362 = vmatpush1.msra.mxu0 %v219
    %1363 = vmatprep.subr.mxu0 0.0
    %1364 = vmatpush1.msra.mxu0 %v218
    %1365 = vmatprep.subr.mxu0 0.0
    %1366 = vmatpush1.msra.mxu0 %v217
    %1367 = vmatprep.subr.mxu0 0.0
    %1368 = vmatpush1.msra.mxu0 %v216
    %1369 = vmatprep.subr.mxu0 0.0
    %1370 = vmatpush2.msra.mxu0 0.0
    %1371 = vmatprep.subr.mxu0 0.0
    %1372 = vmatpush2.msra.mxu0 0.0
    %1373 = vmatprep.subr.mxu0 0.0
    %1374 = vmatpush2.msra.mxu0 0.0
    %1375 = vmatprep.subr.mxu0 0.0
    %1376 = vmatpush2.msra.mxu0 0.0
    %1377 = vmatprep.subr.mxu0 0.0
    %1378 = vmatpush2.msra.mxu0 0.0
    %1379 = vmatprep.subr.mxu0 0.0
    %1380 = vmatpush2.msra.mxu0 0.0
    %1381 = vmatprep.subr.mxu0 0.0
    %1382 = vmatpush2.msra.mxu0 0.0
    %1383 = vmatprep.subr.mxu0 0.0
    %1384 = vmatpush2.msra.mxu0 0.0
    %1385 = vmatprep.subr.mxu0 0.0
    %1386 = vmatpush2.msra.mxu0 0.0
    %1387 = vmatprep.subr.mxu0 0.0
    %1388 = vmatpush2.msra.mxu0 0.0
    %1389 = vmatprep.subr.mxu0 0.0
    %1390 = vmatpush2.msra.mxu0 0.0
    %1391 = vmatprep.subr.mxu0 0.0
    %1392 = vmatpush2.msra.mxu0 0.0
    %1393 = vmatprep.subr.mxu0 0.0
    %1394 = vmatpush2.msra.mxu0 0.0
    %1395 = vmatprep.subr.mxu0 0.0
    %1396 = vmatpush2.msra.mxu0 0.0
    %1397 = vmatprep.subr.mxu0 0.0
    %1398 = vmatpush2.msra.mxu0 0.0
    %1399 = vmatprep.subr.mxu0 0.0
    %1400 = vmatpush2.msra.mxu0 0.0
    %1401 = vmatprep.mubr.f32.mxu0 0.0
    %1402 = vmatmul.mubr.f32.gmra.mxu0 %v1314
    %v1403 = vpop.f32.mrf.mxu0
    %v1404 = vadd.f32 0.0, %v1403
    %v1405 = vpop.f32.mrf.mxu0
    %1406 = vmatprep.mubr.f32.mxu0 0.0
    %1407 = vmatmul.mubr.f32.gmra.mxu0 %v1317
    %v1408 = vpop.f32.mrf.mxu0
    %v1409 = vadd.f32 0.0, %v1408
    %v1410 = vpop.f32.mrf.mxu0
    %1411 = vmatprep.mubr.f32.mxu0 0.0
    %1412 = vmatmul.mubr.f32.gmra.mxu0 %v1320
    %v1413 = vpop.f32.mrf.mxu0
    %v1414 = vadd.f32 0.0, %v1413
    %v1415 = vpop.f32.mrf.mxu0
    %1416 = vmatprep.mubr.f32.mxu0 0.0
    %1417 = vmatmul.mubr.f32.gmra.mxu0 %v1323
    %v1418 = vpop.f32.mrf.mxu0
    %v1419 = vadd.f32 0.0, %v1418
    %v1420 = vpop.f32.mrf.mxu0
    %1421 = vmatprep.mubr.f32.mxu0 0.0
    %1422 = vmatmul.mubr.f32.gmra.mxu0 %v1326
    %v1423 = vpop.f32.mrf.mxu0
    %v1424 = vadd.f32 0.0, %v1423
    %v1425 = vpop.f32.mrf.mxu0
    %1426 = vmatprep.mubr.f32.mxu0 0.0
    %1427 = vmatmul.mubr.f32.gmra.mxu0 %v1329
    %v1428 = vpop.f32.mrf.mxu0
    %v1429 = vadd.f32 0.0, %v1428
    %v1430 = vpop.f32.mrf.mxu0
    %1431 = vmatprep.mubr.f32.mxu0 0.0
    %1432 = vmatmul.mubr.f32.gmra.mxu0 %v1332
    %v1433 = vpop.f32.mrf.mxu0
    %v1434 = vadd.f32 0.0, %v1433
    %v1435 = vpop.f32.mrf.mxu0
    %1436 = vmatprep.mubr.f32.mxu0 0.0
    %1437 = vmatmul.mubr.f32.gmra.mxu0 %v1335
    %v1438 = vpop.f32.mrf.mxu0
    %v1439 = vadd.f32 0.0, %v1438
    %v1440 = vpop.f32.mrf.mxu0
    %1441 = vdwg.mxu0
    %v1443 = vsel %vm280, %v96, 0
    %v1446 = vsel %vm280, %v97, 0
    %v1449 = vsel %vm280, %v98, 0
    %v1452 = vsel %vm280, %v99, 0
    %v1455 = vsel %vm280, %v100, 0
    %v1458 = vsel %vm280, %v101, 0
    %v1461 = vsel %vm280, %v102, 0
    %v1464 = vsel %vm280, %v103, 0
    %1466 = vmatprep.subr.mxu0 0.0
    %1467 = vmatpush1.msra.mxu0 0.0
    %1468 = vmatprep.subr.mxu0 0.0
    %1469 = vmatpush1.msra.mxu0 0.0
    %1470 = vmatprep.subr.mxu0 0.0
    %1471 = vmatpush1.msra.mxu0 0.0
    %1472 = vmatprep.subr.mxu0 0.0
    %1473 = vmatpush1.msra.mxu0 0.0
    %1474 = vmatprep.subr.mxu0 0.0
    %1475 = vmatpush1.msra.mxu0 0.0
    %1476 = vmatprep.subr.mxu0 0.0
    %1477 = vmatpush1.msra.mxu0 0.0
    %1478 = vmatprep.subr.mxu0 0.0
    %1479 = vmatpush1.msra.mxu0 0.0
    %1480 = vmatprep.subr.mxu0 0.0
    %1481 = vmatpush1.msra.mxu0 0.0
    %1482 = vmatprep.subr.mxu0 0.0
    %1483 = vmatpush1.msra.mxu0 %v231
    %1484 = vmatprep.subr.mxu0 0.0
    %1485 = vmatpush1.msra.mxu0 %v230
    %1486 = vmatprep.subr.mxu0 0.0
    %1487 = vmatpush1.msra.mxu0 %v229
    %1488 = vmatprep.subr.mxu0 0.0
    %1489 = vmatpush1.msra.mxu0 %v228
    %1490 = vmatprep.subr.mxu0 0.0
    %1491 = vmatpush1.msra.mxu0 %v227
    %1492 = vmatprep.subr.mxu0 0.0
    %1493 = vmatpush1.msra.mxu0 %v226
    %1494 = vmatprep.subr.mxu0 0.0
    %1495 = vmatpush1.msra.mxu0 %v225
    %1496 = vmatprep.subr.mxu0 0.0
    %1497 = vmatpush1.msra.mxu0 %v224
    %1498 = vmatprep.subr.mxu0 0.0
    %1499 = vmatpush2.msra.mxu0 0.0
    %1500 = vmatprep.subr.mxu0 0.0
    %1501 = vmatpush2.msra.mxu0 0.0
    %1502 = vmatprep.subr.mxu0 0.0
    %1503 = vmatpush2.msra.mxu0 0.0
    %1504 = vmatprep.subr.mxu0 0.0
    %1505 = vmatpush2.msra.mxu0 0.0
    %1506 = vmatprep.subr.mxu0 0.0
    %1507 = vmatpush2.msra.mxu0 0.0
    %1508 = vmatprep.subr.mxu0 0.0
    %1509 = vmatpush2.msra.mxu0 0.0
    %1510 = vmatprep.subr.mxu0 0.0
    %1511 = vmatpush2.msra.mxu0 0.0
    %1512 = vmatprep.subr.mxu0 0.0
    %1513 = vmatpush2.msra.mxu0 0.0
    %1514 = vmatprep.subr.mxu0 0.0
    %1515 = vmatpush2.msra.mxu0 0.0
    %1516 = vmatprep.subr.mxu0 0.0
    %1517 = vmatpush2.msra.mxu0 0.0
    %1518 = vmatprep.subr.mxu0 0.0
    %1519 = vmatpush2.msra.mxu0 0.0
    %1520 = vmatprep.subr.mxu0 0.0
    %1521 = vmatpush2.msra.mxu0 0.0
    %1522 = vmatprep.subr.mxu0 0.0
    %1523 = vmatpush2.msra.mxu0 0.0
    %1524 = vmatprep.subr.mxu0 0.0
    %1525 = vmatpush2.msra.mxu0 0.0
    %1526 = vmatprep.subr.mxu0 0.0
    %1527 = vmatpush2.msra.mxu0 0.0
    %1528 = vmatprep.subr.mxu0 0.0
    %1529 = vmatpush2.msra.mxu0 0.0
    %1530 = vmatprep.mubr.f32.mxu0 0.0
    %1531 = vmatmul.mubr.f32.gmra.mxu0 %v1443
    %v1532 = vpop.f32.mrf.mxu0
    %v1533 = vadd.f32 0.0, %v1532
    %v1534 = vpop.f32.mrf.mxu0
    %1535 = vmatprep.mubr.f32.mxu0 0.0
    %1536 = vmatmul.mubr.f32.gmra.mxu0 %v1446
    %v1537 = vpop.f32.mrf.mxu0
    %v1538 = vadd.f32 0.0, %v1537
    %v1539 = vpop.f32.mrf.mxu0
    %1540 = vmatprep.mubr.f32.mxu0 0.0
    %1541 = vmatmul.mubr.f32.gmra.mxu0 %v1449
    %v1542 = vpop.f32.mrf.mxu0
    %v1543 = vadd.f32 0.0, %v1542
    %v1544 = vpop.f32.mrf.mxu0
    %1545 = vmatprep.mubr.f32.mxu0 0.0
    %1546 = vmatmul.mubr.f32.gmra.mxu0 %v1452
    %v1547 = vpop.f32.mrf.mxu0
    %v1548 = vadd.f32 0.0, %v1547
    %v1549 = vpop.f32.mrf.mxu0
    %1550 = vmatprep.mubr.f32.mxu0 0.0
    %1551 = vmatmul.mubr.f32.gmra.mxu0 %v1455
    %v1552 = vpop.f32.mrf.mxu0
    %v1553 = vadd.f32 0.0, %v1552
    %v1554 = vpop.f32.mrf.mxu0
    %1555 = vmatprep.mubr.f32.mxu0 0.0
    %1556 = vmatmul.mubr.f32.gmra.mxu0 %v1458
    %v1557 = vpop.f32.mrf.mxu0
    %v1558 = vadd.f32 0.0, %v1557
    %v1559 = vpop.f32.mrf.mxu0
    %1560 = vmatprep.mubr.f32.mxu0 0.0
    %1561 = vmatmul.mubr.f32.gmra.mxu0 %v1461
    %v1562 = vpop.f32.mrf.mxu0
    %v1563 = vadd.f32 0.0, %v1562
    %v1564 = vpop.f32.mrf.mxu0
    %1565 = vmatprep.mubr.f32.mxu0 0.0
    %1566 = vmatmul.mubr.f32.gmra.mxu0 %v1464
    %v1567 = vpop.f32.mrf.mxu0
    %v1568 = vadd.f32 0.0, %v1567
    %v1569 = vpop.f32.mrf.mxu0
    %1570 = vdwg.mxu0
    %v1572 = vsel %vm280, %v104, 0
    %v1575 = vsel %vm280, %v105, 0
    %v1578 = vsel %vm280, %v106, 0
    %v1581 = vsel %vm280, %v107, 0
    %v1584 = vsel %vm280, %v108, 0
    %v1587 = vsel %vm280, %v109, 0
    %v1590 = vsel %vm280, %v110, 0
    %v1593 = vsel %vm280, %v111, 0
    %1595 = vmatprep.subr.mxu0 0.0
    %1596 = vmatpush1.msra.mxu0 0.0
    %1597 = vmatprep.subr.mxu0 0.0
    %1598 = vmatpush1.msra.mxu0 0.0
    %1599 = vmatprep.subr.mxu0 0.0
    %1600 = vmatpush1.msra.mxu0 0.0
    %1601 = vmatprep.subr.mxu0 0.0
    %1602 = vmatpush1.msra.mxu0 0.0
    %1603 = vmatprep.subr.mxu0 0.0
    %1604 = vmatpush1.msra.mxu0 0.0
    %1605 = vmatprep.subr.mxu0 0.0
    %1606 = vmatpush1.msra.mxu0 0.0
    %1607 = vmatprep.subr.mxu0 0.0
    %1608 = vmatpush1.msra.mxu0 0.0
    %1609 = vmatprep.subr.mxu0 0.0
    %1610 = vmatpush1.msra.mxu0 0.0
    %1611 = vmatprep.subr.mxu0 0.0
    %1612 = vmatpush1.msra.mxu0 %v239
    %1613 = vmatprep.subr.mxu0 0.0
    %1614 = vmatpush1.msra.mxu0 %v238
    %1615 = vmatprep.subr.mxu0 0.0
    %1616 = vmatpush1.msra.mxu0 %v237
    %1617 = vmatprep.subr.mxu0 0.0
    %1618 = vmatpush1.msra.mxu0 %v236
    %1619 = vmatprep.subr.mxu0 0.0
    %1620 = vmatpush1.msra.mxu0 %v235
    %1621 = vmatprep.subr.mxu0 0.0
    %1622 = vmatpush1.msra.mxu0 %v234
    %1623 = vmatprep.subr.mxu0 0.0
    %1624 = vmatpush1.msra.mxu0 %v233
    %1625 = vmatprep.subr.mxu0 0.0
    %1626 = vmatpush1.msra.mxu0 %v232
    %1627 = vmatprep.subr.mxu0 0.0
    %1628 = vmatpush2.msra.mxu0 0.0
    %1629 = vmatprep.subr.mxu0 0.0
    %1630 = vmatpush2.msra.mxu0 0.0
    %1631 = vmatprep.subr.mxu0 0.0
    %1632 = vmatpush2.msra.mxu0 0.0
    %1633 = vmatprep.subr.mxu0 0.0
    %1634 = vmatpush2.msra.mxu0 0.0
    %1635 = vmatprep.subr.mxu0 0.0
    %1636 = vmatpush2.msra.mxu0 0.0
    %1637 = vmatprep.subr.mxu0 0.0
    %1638 = vmatpush2.msra.mxu0 0.0
    %1639 = vmatprep.subr.mxu0 0.0
    %1640 = vmatpush2.msra.mxu0 0.0
    %1641 = vmatprep.subr.mxu0 0.0
    %1642 = vmatpush2.msra.mxu0 0.0
    %1643 = vmatprep.subr.mxu0 0.0
    %1644 = vmatpush2.msra.mxu0 0.0
    %1645 = vmatprep.subr.mxu0 0.0
    %1646 = vmatpush2.msra.mxu0 0.0
    %1647 = vmatprep.subr.mxu0 0.0
    %1648 = vmatpush2.msra.mxu0 0.0
    %1649 = vmatprep.subr.mxu0 0.0
    %1650 = vmatpush2.msra.mxu0 0.0
    %1651 = vmatprep.subr.mxu0 0.0
    %1652 = vmatpush2.msra.mxu0 0.0
    %1653 = vmatprep.subr.mxu0 0.0
    %1654 = vmatpush2.msra.mxu0 0.0
    %1655 = vmatprep.subr.mxu0 0.0
    %1656 = vmatpush2.msra.mxu0 0.0
    %1657 = vmatprep.subr.mxu0 0.0
    %1658 = vmatpush2.msra.mxu0 0.0
    %1659 = vmatprep.mubr.f32.mxu0 0.0
    %1660 = vmatmul.mubr.f32.gmra.mxu0 %v1572
    %v1661 = vpop.f32.mrf.mxu0
    %v1662 = vadd.f32 0.0, %v1661
    %v1663 = vpop.f32.mrf.mxu0
    %1664 = vmatprep.mubr.f32.mxu0 0.0
    %1665 = vmatmul.mubr.f32.gmra.mxu0 %v1575
    %v1666 = vpop.f32.mrf.mxu0
    %v1667 = vadd.f32 0.0, %v1666
    %v1668 = vpop.f32.mrf.mxu0
    %1669 = vmatprep.mubr.f32.mxu0 0.0
    %1670 = vmatmul.mubr.f32.gmra.mxu0 %v1578
    %v1671 = vpop.f32.mrf.mxu0
    %v1672 = vadd.f32 0.0, %v1671
    %v1673 = vpop.f32.mrf.mxu0
    %1674 = vmatprep.mubr.f32.mxu0 0.0
    %1675 = vmatmul.mubr.f32.gmra.mxu0 %v1581
    %v1676 = vpop.f32.mrf.mxu0
    %v1677 = vadd.f32 0.0, %v1676
    %v1678 = vpop.f32.mrf.mxu0
    %1679 = vmatprep.mubr.f32.mxu0 0.0
    %1680 = vmatmul.mubr.f32.gmra.mxu0 %v1584
    %v1681 = vpop.f32.mrf.mxu0
    %v1682 = vadd.f32 0.0, %v1681
    %v1683 = vpop.f32.mrf.mxu0
    %1684 = vmatprep.mubr.f32.mxu0 0.0
    %1685 = vmatmul.mubr.f32.gmra.mxu0 %v1587
    %v1686 = vpop.f32.mrf.mxu0
    %v1687 = vadd.f32 0.0, %v1686
    %v1688 = vpop.f32.mrf.mxu0
    %1689 = vmatprep.mubr.f32.mxu0 0.0
    %1690 = vmatmul.mubr.f32.gmra.mxu0 %v1590
    %v1691 = vpop.f32.mrf.mxu0
    %v1692 = vadd.f32 0.0, %v1691
    %v1693 = vpop.f32.mrf.mxu0
    %1694 = vmatprep.mubr.f32.mxu0 0.0
    %1695 = vmatmul.mubr.f32.gmra.mxu0 %v1593
    %v1696 = vpop.f32.mrf.mxu0
    %v1697 = vadd.f32 0.0, %v1696
    %v1698 = vpop.f32.mrf.mxu0
    %1699 = vdwg.mxu0
    %v1701 = vsel %vm280, %v112, 0
    %v1704 = vsel %vm280, %v113, 0
    %v1707 = vsel %vm280, %v114, 0
    %v1710 = vsel %vm280, %v115, 0
    %v1713 = vsel %vm280, %v116, 0
    %v1716 = vsel %vm280, %v117, 0
    %v1719 = vsel %vm280, %v118, 0
    %v1722 = vsel %vm280, %v119, 0
    %1724 = vmatprep.subr.mxu0 0.0
    %1725 = vmatpush1.msra.mxu0 0.0
    %1726 = vmatprep.subr.mxu0 0.0
    %1727 = vmatpush1.msra.mxu0 0.0
    %1728 = vmatprep.subr.mxu0 0.0
    %1729 = vmatpush1.msra.mxu0 0.0
    %1730 = vmatprep.subr.mxu0 0.0
    %1731 = vmatpush1.msra.mxu0 0.0
    %1732 = vmatprep.subr.mxu0 0.0
    %1733 = vmatpush1.msra.mxu0 0.0
    %1734 = vmatprep.subr.mxu0 0.0
    %1735 = vmatpush1.msra.mxu0 0.0
    %1736 = vmatprep.subr.mxu0 0.0
    %1737 = vmatpush1.msra.mxu0 0.0
    %1738 = vmatprep.subr.mxu0 0.0
    %1739 = vmatpush1.msra.mxu0 0.0
    %1740 = vmatprep.subr.mxu0 0.0
    %1741 = vmatpush1.msra.mxu0 %v247
    %1742 = vmatprep.subr.mxu0 0.0
    %1743 = vmatpush1.msra.mxu0 %v246
    %1744 = vmatprep.subr.mxu0 0.0
    %1745 = vmatpush1.msra.mxu0 %v245
    %1746 = vmatprep.subr.mxu0 0.0
    %1747 = vmatpush1.msra.mxu0 %v244
    %1748 = vmatprep.subr.mxu0 0.0
    %1749 = vmatpush1.msra.mxu0 %v243
    %1750 = vmatprep.subr.mxu0 0.0
    %1751 = vmatpush1.msra.mxu0 %v242
    %1752 = vmatprep.subr.mxu0 0.0
    %1753 = vmatpush1.msra.mxu0 %v241
    %1754 = vmatprep.subr.mxu0 0.0
    %1755 = vmatpush1.msra.mxu0 %v240
    %1756 = vmatprep.subr.mxu0 0.0
    %1757 = vmatpush2.msra.mxu0 0.0
    %1758 = vmatprep.subr.mxu0 0.0
    %1759 = vmatpush2.msra.mxu0 0.0
    %1760 = vmatprep.subr.mxu0 0.0
    %1761 = vmatpush2.msra.mxu0 0.0
    %1762 = vmatprep.subr.mxu0 0.0
    %1763 = vmatpush2.msra.mxu0 0.0
    %1764 = vmatprep.subr.mxu0 0.0
    %1765 = vmatpush2.msra.mxu0 0.0
    %1766 = vmatprep.subr.mxu0 0.0
    %1767 = vmatpush2.msra.mxu0 0.0
    %1768 = vmatprep.subr.mxu0 0.0
    %1769 = vmatpush2.msra.mxu0 0.0
    %1770 = vmatprep.subr.mxu0 0.0
    %1771 = vmatpush2.msra.mxu0 0.0
    %1772 = vmatprep.subr.mxu0 0.0
    %1773 = vmatpush2.msra.mxu0 0.0
    %1774 = vmatprep.subr.mxu0 0.0
    %1775 = vmatpush2.msra.mxu0 0.0
    %1776 = vmatprep.subr.mxu0 0.0
    %1777 = vmatpush2.msra.mxu0 0.0
    %1778 = vmatprep.subr.mxu0 0.0
    %1779 = vmatpush2.msra.mxu0 0.0
    %1780 = vmatprep.subr.mxu0 0.0
    %1781 = vmatpush2.msra.mxu0 0.0
    %1782 = vmatprep.subr.mxu0 0.0
    %1783 = vmatpush2.msra.mxu0 0.0
    %1784 = vmatprep.subr.mxu0 0.0
    %1785 = vmatpush2.msra.mxu0 0.0
    %1786 = vmatprep.subr.mxu0 0.0
    %1787 = vmatpush2.msra.mxu0 0.0
    %1788 = vmatprep.mubr.f32.mxu0 0.0
    %1789 = vmatmul.mubr.f32.gmra.mxu0 %v1701
    %v1790 = vpop.f32.mrf.mxu0
    %v1791 = vadd.f32 0.0, %v1790
    %v1792 = vpop.f32.mrf.mxu0
    %1793 = vmatprep.mubr.f32.mxu0 0.0
    %1794 = vmatmul.mubr.f32.gmra.mxu0 %v1704
    %v1795 = vpop.f32.mrf.mxu0
    %v1796 = vadd.f32 0.0, %v1795
    %v1797 = vpop.f32.mrf.mxu0
    %1798 = vmatprep.mubr.f32.mxu0 0.0
    %1799 = vmatmul.mubr.f32.gmra.mxu0 %v1707
    %v1800 = vpop.f32.mrf.mxu0
    %v1801 = vadd.f32 0.0, %v1800
    %v1802 = vpop.f32.mrf.mxu0
    %1803 = vmatprep.mubr.f32.mxu0 0.0
    %1804 = vmatmul.mubr.f32.gmra.mxu0 %v1710
    %v1805 = vpop.f32.mrf.mxu0
    %v1806 = vadd.f32 0.0, %v1805
    %v1807 = vpop.f32.mrf.mxu0
    %1808 = vmatprep.mubr.f32.mxu0 0.0
    %1809 = vmatmul.mubr.f32.gmra.mxu0 %v1713
    %v1810 = vpop.f32.mrf.mxu0
    %v1811 = vadd.f32 0.0, %v1810
    %v1812 = vpop.f32.mrf.mxu0
    %1813 = vmatprep.mubr.f32.mxu0 0.0
    %1814 = vmatmul.mubr.f32.gmra.mxu0 %v1716
    %v1815 = vpop.f32.mrf.mxu0
    %v1816 = vadd.f32 0.0, %v1815
    %v1817 = vpop.f32.mrf.mxu0
    %1818 = vmatprep.mubr.f32.mxu0 0.0
    %1819 = vmatmul.mubr.f32.gmra.mxu0 %v1719
    %v1820 = vpop.f32.mrf.mxu0
    %v1821 = vadd.f32 0.0, %v1820
    %v1822 = vpop.f32.mrf.mxu0
    %1823 = vmatprep.mubr.f32.mxu0 0.0
    %1824 = vmatmul.mubr.f32.gmra.mxu0 %v1722
    %v1825 = vpop.f32.mrf.mxu0
    %v1826 = vadd.f32 0.0, %v1825
    %v1827 = vpop.f32.mrf.mxu0
    %1828 = vdwg.mxu0
    %v1830 = vsel %vm280, %v120, 0
    %v1833 = vsel %vm280, %v121, 0
    %v1836 = vsel %vm280, %v122, 0
    %v1839 = vsel %vm280, %v123, 0
    %v1842 = vsel %vm280, %v124, 0
    %v1845 = vsel %vm280, %v125, 0
    %v1848 = vsel %vm280, %v126, 0
    %v1851 = vsel %vm280, %v127, 0
    %1853 = vmatprep.subr.mxu0 0.0
    %1854 = vmatpush1.msra.mxu0 0.0
    %1855 = vmatprep.subr.mxu0 0.0
    %1856 = vmatpush1.msra.mxu0 0.0
    %1857 = vmatprep.subr.mxu0 0.0
    %1858 = vmatpush1.msra.mxu0 0.0
    %1859 = vmatprep.subr.mxu0 0.0
    %1860 = vmatpush1.msra.mxu0 0.0
    %1861 = vmatprep.subr.mxu0 0.0
    %1862 = vmatpush1.msra.mxu0 0.0
    %1863 = vmatprep.subr.mxu0 0.0
    %1864 = vmatpush1.msra.mxu0 0.0
    %1865 = vmatprep.subr.mxu0 0.0
    %1866 = vmatpush1.msra.mxu0 0.0
    %1867 = vmatprep.subr.mxu0 0.0
    %1868 = vmatpush1.msra.mxu0 0.0
    %1869 = vmatprep.subr.mxu0 0.0
    %1870 = vmatpush1.msra.mxu0 %v255
    %1871 = vmatprep.subr.mxu0 0.0
    %1872 = vmatpush1.msra.mxu0 %v254
    %1873 = vmatprep.subr.mxu0 0.0
    %1874 = vmatpush1.msra.mxu0 %v253
    %1875 = vmatprep.subr.mxu0 0.0
    %1876 = vmatpush1.msra.mxu0 %v252
    %1877 = vmatprep.subr.mxu0 0.0
    %1878 = vmatpush1.msra.mxu0 %v251
    %1879 = vmatprep.subr.mxu0 0.0
    %1880 = vmatpush1.msra.mxu0 %v250
    %1881 = vmatprep.subr.mxu0 0.0
    %1882 = vmatpush1.msra.mxu0 %v249
    %1883 = vmatprep.subr.mxu0 0.0
    %1884 = vmatpush1.msra.mxu0 %v248
    %1885 = vmatprep.subr.mxu0 0.0
    %1886 = vmatpush2.msra.mxu0 0.0
    %1887 = vmatprep.subr.mxu0 0.0
    %1888 = vmatpush2.msra.mxu0 0.0
    %1889 = vmatprep.subr.mxu0 0.0
    %1890 = vmatpush2.msra.mxu0 0.0
    %1891 = vmatprep.subr.mxu0 0.0
    %1892 = vmatpush2.msra.mxu0 0.0
    %1893 = vmatprep.subr.mxu0 0.0
    %1894 = vmatpush2.msra.mxu0 0.0
    %1895 = vmatprep.subr.mxu0 0.0
    %1896 = vmatpush2.msra.mxu0 0.0
    %1897 = vmatprep.subr.mxu0 0.0
    %1898 = vmatpush2.msra.mxu0 0.0
    %1899 = vmatprep.subr.mxu0 0.0
    %1900 = vmatpush2.msra.mxu0 0.0
    %1901 = vmatprep.subr.mxu0 0.0
    %1902 = vmatpush2.msra.mxu0 0.0
    %1903 = vmatprep.subr.mxu0 0.0
    %1904 = vmatpush2.msra.mxu0 0.0
    %1905 = vmatprep.subr.mxu0 0.0
    %1906 = vmatpush2.msra.mxu0 0.0
    %1907 = vmatprep.subr.mxu0 0.0
    %1908 = vmatpush2.msra.mxu0 0.0
    %1909 = vmatprep.subr.mxu0 0.0
    %1910 = vmatpush2.msra.mxu0 0.0
    %1911 = vmatprep.subr.mxu0 0.0
    %1912 = vmatpush2.msra.mxu0 0.0
    %1913 = vmatprep.subr.mxu0 0.0
    %1914 = vmatpush2.msra.mxu0 0.0
    %1915 = vmatprep.subr.mxu0 0.0
    %1916 = vmatpush2.msra.mxu0 0.0
    %1917 = vmatprep.mubr.f32.mxu0 0.0
    %1918 = vmatmul.mubr.f32.gmra.mxu0 %v1830
    %v1919 = vpop.f32.mrf.mxu0
    %v1920 = vadd.f32 0.0, %v1919
    %v1921 = vpop.f32.mrf.mxu0
    %1922 = vmatprep.mubr.f32.mxu0 0.0
    %1923 = vmatmul.mubr.f32.gmra.mxu0 %v1833
    %v1924 = vpop.f32.mrf.mxu0
    %v1925 = vadd.f32 0.0, %v1924
    %v1926 = vpop.f32.mrf.mxu0
    %1927 = vmatprep.mubr.f32.mxu0 0.0
    %1928 = vmatmul.mubr.f32.gmra.mxu0 %v1836
    %v1929 = vpop.f32.mrf.mxu0
    %v1930 = vadd.f32 0.0, %v1929
    %v1931 = vpop.f32.mrf.mxu0
    %1932 = vmatprep.mubr.f32.mxu0 0.0
    %1933 = vmatmul.mubr.f32.gmra.mxu0 %v1839
    %v1934 = vpop.f32.mrf.mxu0
    %v1935 = vadd.f32 0.0, %v1934
    %v1936 = vpop.f32.mrf.mxu0
    %1937 = vmatprep.mubr.f32.mxu0 0.0
    %1938 = vmatmul.mubr.f32.gmra.mxu0 %v1842
    %v1939 = vpop.f32.mrf.mxu0
    %v1940 = vadd.f32 0.0, %v1939
    %v1941 = vpop.f32.mrf.mxu0
    %1942 = vmatprep.mubr.f32.mxu0 0.0
    %1943 = vmatmul.mubr.f32.gmra.mxu0 %v1845
    %v1944 = vpop.f32.mrf.mxu0
    %v1945 = vadd.f32 0.0, %v1944
    %v1946 = vpop.f32.mrf.mxu0
    %1947 = vmatprep.mubr.f32.mxu0 0.0
    %1948 = vmatmul.mubr.f32.gmra.mxu0 %v1848
    %v1949 = vpop.f32.mrf.mxu0
    %v1950 = vadd.f32 0.0, %v1949
    %v1951 = vpop.f32.mrf.mxu0
    %1952 = vmatprep.mubr.f32.mxu0 0.0
    %1953 = vmatmul.mubr.f32.gmra.mxu0 %v1851
    %v1954 = vpop.f32.mrf.mxu0
    %v1955 = vadd.f32 0.0, %v1954
    %v1956 = vpop.f32.mrf.mxu0
    %1957 = vdwg.mxu0
    %v1959 = vsel %vm280, %v128, 0
    %v1962 = vsel %vm280, %v129, 0
    %v1965 = vsel %vm280, %v130, 0
    %v1968 = vsel %vm280, %v131, 0
    %v1971 = vsel %vm280, %v132, 0
    %v1974 = vsel %vm280, %v133, 0
    %v1977 = vsel %vm280, %v134, 0
    %v1980 = vsel %vm280, %v135, 0
    %1982 = vmatprep.subr.mxu0 0.0
    %1983 = vmatpush1.msra.mxu0 0.0
    %1984 = vmatprep.subr.mxu0 0.0
    %1985 = vmatpush1.msra.mxu0 0.0
    %1986 = vmatprep.subr.mxu0 0.0
    %1987 = vmatpush1.msra.mxu0 0.0
    %1988 = vmatprep.subr.mxu0 0.0
    %1989 = vmatpush1.msra.mxu0 0.0
    %1990 = vmatprep.subr.mxu0 0.0
    %1991 = vmatpush1.msra.mxu0 0.0
    %1992 = vmatprep.subr.mxu0 0.0
    %1993 = vmatpush1.msra.mxu0 0.0
    %1994 = vmatprep.subr.mxu0 0.0
    %1995 = vmatpush1.msra.mxu0 0.0
    %1996 = vmatprep.subr.mxu0 0.0
    %1997 = vmatpush1.msra.mxu0 0.0
    %1998 = vmatprep.subr.mxu0 0.0
    %1999 = vmatpush1.msra.mxu0 %v263
    %2000 = vmatprep.subr.mxu0 0.0
    %2001 = vmatpush1.msra.mxu0 %v262
    %2002 = vmatprep.subr.mxu0 0.0
    %2003 = vmatpush1.msra.mxu0 %v261
    %2004 = vmatprep.subr.mxu0 0.0
    %2005 = vmatpush1.msra.mxu0 %v260
    %2006 = vmatprep.subr.mxu0 0.0
    %2007 = vmatpush1.msra.mxu0 %v259
    %2008 = vmatprep.subr.mxu0 0.0
    %2009 = vmatpush1.msra.mxu0 %v258
    %2010 = vmatprep.subr.mxu0 0.0
    %2011 = vmatpush1.msra.mxu0 %v257
    %2012 = vmatprep.subr.mxu0 0.0
    %2013 = vmatpush1.msra.mxu0 %v256
    %2014 = vmatprep.subr.mxu0 0.0
    %2015 = vmatpush2.msra.mxu0 0.0
    %2016 = vmatprep.subr.mxu0 0.0
    %2017 = vmatpush2.msra.mxu0 0.0
    %2018 = vmatprep.subr.mxu0 0.0
    %2019 = vmatpush2.msra.mxu0 0.0
    %2020 = vmatprep.subr.mxu0 0.0
    %2021 = vmatpush2.msra.mxu0 0.0
    %2022 = vmatprep.subr.mxu0 0.0
    %2023 = vmatpush2.msra.mxu0 0.0
    %2024 = vmatprep.subr.mxu0 0.0
    %2025 = vmatpush2.msra.mxu0 0.0
    %2026 = vmatprep.subr.mxu0 0.0
    %2027 = vmatpush2.msra.mxu0 0.0
    %2028 = vmatprep.subr.mxu0 0.0
    %2029 = vmatpush2.msra.mxu0 0.0
    %2030 = vmatprep.subr.mxu0 0.0
    %2031 = vmatpush2.msra.mxu0 0.0
    %2032 = vmatprep.subr.mxu0 0.0
    %2033 = vmatpush2.msra.mxu0 0.0
    %2034 = vmatprep.subr.mxu0 0.0
    %2035 = vmatpush2.msra.mxu0 0.0
    %2036 = vmatprep.subr.mxu0 0.0
    %2037 = vmatpush2.msra.mxu0 0.0
    %2038 = vmatprep.subr.mxu0 0.0
    %2039 = vmatpush2.msra.mxu0 0.0
    %2040 = vmatprep.subr.mxu0 0.0
    %2041 = vmatpush2.msra.mxu0 0.0
    %2042 = vmatprep.subr.mxu0 0.0
    %2043 = vmatpush2.msra.mxu0 0.0
    %2044 = vmatprep.subr.mxu0 0.0
    %2045 = vmatpush2.msra.mxu0 0.0
    %2046 = vmatprep.mubr.f32.mxu0 0.0
    %2047 = vmatmul.mubr.f32.gmra.mxu0 %v1959
    %v2048 = vpop.f32.mrf.mxu0
    %v2049 = vadd.f32 0.0, %v2048
    %v2050 = vpop.f32.mrf.mxu0
    %2051 = vmatprep.mubr.f32.mxu0 0.0
    %2052 = vmatmul.mubr.f32.gmra.mxu0 %v1962
    %v2053 = vpop.f32.mrf.mxu0
    %v2054 = vadd.f32 0.0, %v2053
    %v2055 = vpop.f32.mrf.mxu0
    %2056 = vmatprep.mubr.f32.mxu0 0.0
    %2057 = vmatmul.mubr.f32.gmra.mxu0 %v1965
    %v2058 = vpop.f32.mrf.mxu0
    %v2059 = vadd.f32 0.0, %v2058
    %v2060 = vpop.f32.mrf.mxu0
    %2061 = vmatprep.mubr.f32.mxu0 0.0
    %2062 = vmatmul.mubr.f32.gmra.mxu0 %v1968
    %v2063 = vpop.f32.mrf.mxu0
    %v2064 = vadd.f32 0.0, %v2063
    %v2065 = vpop.f32.mrf.mxu0
    %2066 = vmatprep.mubr.f32.mxu0 0.0
    %2067 = vmatmul.mubr.f32.gmra.mxu0 %v1971
    %v2068 = vpop.f32.mrf.mxu0
    %v2069 = vadd.f32 0.0, %v2068
    %v2070 = vpop.f32.mrf.mxu0
    %2071 = vmatprep.mubr.f32.mxu0 0.0
    %2072 = vmatmul.mubr.f32.gmra.mxu0 %v1974
    %v2073 = vpop.f32.mrf.mxu0
    %v2074 = vadd.f32 0.0, %v2073
    %v2075 = vpop.f32.mrf.mxu0
    %2076 = vmatprep.mubr.f32.mxu0 0.0
    %2077 = vmatmul.mubr.f32.gmra.mxu0 %v1977
    %v2078 = vpop.f32.mrf.mxu0
    %v2079 = vadd.f32 0.0, %v2078
    %v2080 = vpop.f32.mrf.mxu0
    %2081 = vmatprep.mubr.f32.mxu0 0.0
    %2082 = vmatmul.mubr.f32.gmra.mxu0 %v1980
    %v2083 = vpop.f32.mrf.mxu0
    %v2084 = vadd.f32 0.0, %v2083
    %v2085 = vpop.f32.mrf.mxu0
    %2086 = vdwg.mxu0
    %v2088 = vsel %vm280, %v136, 0
    %v2091 = vsel %vm280, %v137, 0
    %v2094 = vsel %vm280, %v138, 0
    %v2097 = vsel %vm280, %v139, 0
    %v2100 = vsel %vm280, %v140, 0
    %v2103 = vsel %vm280, %v141, 0
    %v2106 = vsel %vm280, %v142, 0
    %v2109 = vsel %vm280, %v143, 0
    %2111 = vmatprep.subr.mxu0 0.0
    %2112 = vmatpush1.msra.mxu0 0.0
    %2113 = vmatprep.subr.mxu0 0.0
    %2114 = vmatpush1.msra.mxu0 0.0
    %2115 = vmatprep.subr.mxu0 0.0
    %2116 = vmatpush1.msra.mxu0 0.0
    %2117 = vmatprep.subr.mxu0 0.0
    %2118 = vmatpush1.msra.mxu0 0.0
    %2119 = vmatprep.subr.mxu0 0.0
    %2120 = vmatpush1.msra.mxu0 0.0
    %2121 = vmatprep.subr.mxu0 0.0
    %2122 = vmatpush1.msra.mxu0 0.0
    %2123 = vmatprep.subr.mxu0 0.0
    %2124 = vmatpush1.msra.mxu0 0.0
    %2125 = vmatprep.subr.mxu0 0.0
    %2126 = vmatpush1.msra.mxu0 0.0
    %2127 = vmatprep.subr.mxu0 0.0
    %2128 = vmatpush1.msra.mxu0 %v271
    %2129 = vmatprep.subr.mxu0 0.0
    %2130 = vmatpush1.msra.mxu0 %v270
    %2131 = vmatprep.subr.mxu0 0.0
    %2132 = vmatpush1.msra.mxu0 %v269
    %2133 = vmatprep.subr.mxu0 0.0
    %2134 = vmatpush1.msra.mxu0 %v268
    %2135 = vmatprep.subr.mxu0 0.0
    %2136 = vmatpush1.msra.mxu0 %v267
    %2137 = vmatprep.subr.mxu0 0.0
    %2138 = vmatpush1.msra.mxu0 %v266
    %2139 = vmatprep.subr.mxu0 0.0
    %2140 = vmatpush1.msra.mxu0 %v265
    %2141 = vmatprep.subr.mxu0 0.0
    %2142 = vmatpush1.msra.mxu0 %v264
    %2143 = vmatprep.subr.mxu0 0.0
    %2144 = vmatpush2.msra.mxu0 0.0
    %2145 = vmatprep.subr.mxu0 0.0
    %2146 = vmatpush2.msra.mxu0 0.0
    %2147 = vmatprep.subr.mxu0 0.0
    %2148 = vmatpush2.msra.mxu0 0.0
    %2149 = vmatprep.subr.mxu0 0.0
    %2150 = vmatpush2.msra.mxu0 0.0
    %2151 = vmatprep.subr.mxu0 0.0
    %2152 = vmatpush2.msra.mxu0 0.0
    %2153 = vmatprep.subr.mxu0 0.0
    %2154 = vmatpush2.msra.mxu0 0.0
    %2155 = vmatprep.subr.mxu0 0.0
    %2156 = vmatpush2.msra.mxu0 0.0
    %2157 = vmatprep.subr.mxu0 0.0
    %2158 = vmatpush2.msra.mxu0 0.0
    %2159 = vmatprep.subr.mxu0 0.0
    %2160 = vmatpush2.msra.mxu0 0.0
    %2161 = vmatprep.subr.mxu0 0.0
    %2162 = vmatpush2.msra.mxu0 0.0
    %2163 = vmatprep.subr.mxu0 0.0
    %2164 = vmatpush2.msra.mxu0 0.0
    %2165 = vmatprep.subr.mxu0 0.0
    %2166 = vmatpush2.msra.mxu0 0.0
    %2167 = vmatprep.subr.mxu0 0.0
    %2168 = vmatpush2.msra.mxu0 0.0
    %2169 = vmatprep.subr.mxu0 0.0
    %2170 = vmatpush2.msra.mxu0 0.0
    %2171 = vmatprep.subr.mxu0 0.0
    %2172 = vmatpush2.msra.mxu0 0.0
    %2173 = vmatprep.subr.mxu0 0.0
    %2174 = vmatpush2.msra.mxu0 0.0
    %2175 = vmatprep.mubr.f32.mxu0 0.0
    %2176 = vmatmul.mubr.f32.gmra.mxu0 %v2088
    %v2177 = vpop.f32.mrf.mxu0
    %v2178 = vadd.f32 0.0, %v2177
    %v2179 = vpop.f32.mrf.mxu0
    %2180 = vmatprep.mubr.f32.mxu0 0.0
    %2181 = vmatmul.mubr.f32.gmra.mxu0 %v2091
    %v2182 = vpop.f32.mrf.mxu0
    %v2183 = vadd.f32 0.0, %v2182
    %v2184 = vpop.f32.mrf.mxu0
    %2185 = vmatprep.mubr.f32.mxu0 0.0
    %2186 = vmatmul.mubr.f32.gmra.mxu0 %v2094
    %v2187 = vpop.f32.mrf.mxu0
    %v2188 = vadd.f32 0.0, %v2187
    %v2189 = vpop.f32.mrf.mxu0
    %2190 = vmatprep.mubr.f32.mxu0 0.0
    %2191 = vmatmul.mubr.f32.gmra.mxu0 %v2097
    %v2192 = vpop.f32.mrf.mxu0
    %v2193 = vadd.f32 0.0, %v2192
    %v2194 = vpop.f32.mrf.mxu0
    %2195 = vmatprep.mubr.f32.mxu0 0.0
    %2196 = vmatmul.mubr.f32.gmra.mxu0 %v2100
    %v2197 = vpop.f32.mrf.mxu0
    %v2198 = vadd.f32 0.0, %v2197
    %v2199 = vpop.f32.mrf.mxu0
    %2200 = vmatprep.mubr.f32.mxu0 0.0
    %2201 = vmatmul.mubr.f32.gmra.mxu0 %v2103
    %v2202 = vpop.f32.mrf.mxu0
    %v2203 = vadd.f32 0.0, %v2202
    %v2204 = vpop.f32.mrf.mxu0
    %2205 = vmatprep.mubr.f32.mxu0 0.0
    %2206 = vmatmul.mubr.f32.gmra.mxu0 %v2106
    %v2207 = vpop.f32.mrf.mxu0
    %v2208 = vadd.f32 0.0, %v2207
    %v2209 = vpop.f32.mrf.mxu0
    %2210 = vmatprep.mubr.f32.mxu0 0.0
    %2211 = vmatmul.mubr.f32.gmra.mxu0 %v2109
    %v2212 = vpop.f32.mrf.mxu0
    %v2213 = vadd.f32 0.0, %v2212
    %v2214 = vpop.f32.mrf.mxu0
    %2215 = vdwg.mxu0
    %v2217 = vsel %vm280, %v144, 0
    %v2220 = vsel %vm280, %v145, 0
    %v2223 = vsel %vm280, %v146, 0
    %v2226 = vsel %vm280, %v147, 0
    %v2229 = vsel %vm280, %v148, 0
    %v2232 = vsel %vm280, %v149, 0
    %v2235 = vsel %vm280, %v150, 0
    %v2238 = vsel %vm280, %v151, 0
    %2240 = vmatprep.subr.mxu0 0.0
    %2241 = vmatpush1.msra.mxu0 0.0
    %2242 = vmatprep.subr.mxu0 0.0
    %2243 = vmatpush1.msra.mxu0 0.0
    %2244 = vmatprep.subr.mxu0 0.0
    %2245 = vmatpush1.msra.mxu0 0.0
    %2246 = vmatprep.subr.mxu0 0.0
    %2247 = vmatpush1.msra.mxu0 0.0
    %2248 = vmatprep.subr.mxu0 0.0
    %2249 = vmatpush1.msra.mxu0 0.0
    %2250 = vmatprep.subr.mxu0 0.0
    %2251 = vmatpush1.msra.mxu0 0.0
    %2252 = vmatprep.subr.mxu0 0.0
    %2253 = vmatpush1.msra.mxu0 0.0
    %2254 = vmatprep.subr.mxu0 0.0
    %2255 = vmatpush1.msra.mxu0 0.0
    %2256 = vmatprep.subr.mxu0 0.0
    %2257 = vmatpush1.msra.mxu0 %v279
    %2258 = vmatprep.subr.mxu0 0.0
    %2259 = vmatpush1.msra.mxu0 %v278
    %2260 = vmatprep.subr.mxu0 0.0
    %2261 = vmatpush1.msra.mxu0 %v277
    %2262 = vmatprep.subr.mxu0 0.0
    %2263 = vmatpush1.msra.mxu0 %v276
    %2264 = vmatprep.subr.mxu0 0.0
    %2265 = vmatpush1.msra.mxu0 %v275
    %2266 = vmatprep.subr.mxu0 0.0
    %2267 = vmatpush1.msra.mxu0 %v274
    %2268 = vmatprep.subr.mxu0 0.0
    %2269 = vmatpush1.msra.mxu0 %v273
    %2270 = vmatprep.subr.mxu0 0.0
    %2271 = vmatpush1.msra.mxu0 %v272
    %2272 = vmatprep.subr.mxu0 0.0
    %2273 = vmatpush2.msra.mxu0 0.0
    %2274 = vmatprep.subr.mxu0 0.0
    %2275 = vmatpush2.msra.mxu0 0.0
    %2276 = vmatprep.subr.mxu0 0.0
    %2277 = vmatpush2.msra.mxu0 0.0
    %2278 = vmatprep.subr.mxu0 0.0
    %2279 = vmatpush2.msra.mxu0 0.0
    %2280 = vmatprep.subr.mxu0 0.0
    %2281 = vmatpush2.msra.mxu0 0.0
    %2282 = vmatprep.subr.mxu0 0.0
    %2283 = vmatpush2.msra.mxu0 0.0
    %2284 = vmatprep.subr.mxu0 0.0
    %2285 = vmatpush2.msra.mxu0 0.0
    %2286 = vmatprep.subr.mxu0 0.0
    %2287 = vmatpush2.msra.mxu0 0.0
    %2288 = vmatprep.subr.mxu0 0.0
    %2289 = vmatpush2.msra.mxu0 0.0
    %2290 = vmatprep.subr.mxu0 0.0
    %2291 = vmatpush2.msra.mxu0 0.0
    %2292 = vmatprep.subr.mxu0 0.0
    %2293 = vmatpush2.msra.mxu0 0.0
    %2294 = vmatprep.subr.mxu0 0.0
    %2295 = vmatpush2.msra.mxu0 0.0
    %2296 = vmatprep.subr.mxu0 0.0
    %2297 = vmatpush2.msra.mxu0 0.0
    %2298 = vmatprep.subr.mxu0 0.0
    %2299 = vmatpush2.msra.mxu0 0.0
    %2300 = vmatprep.subr.mxu0 0.0
    %2301 = vmatpush2.msra.mxu0 0.0
    %2302 = vmatprep.subr.mxu0 0.0
    %2303 = vmatpush2.msra.mxu0 0.0
    %2304 = vmatprep.mubr.f32.mxu0 0.0
    %2305 = vmatmul.mubr.f32.gmra.mxu0 %v2217
    %v2306 = vpop.f32.mrf.mxu0
    %v2307 = vadd.f32 0.0, %v2306
    %v2308 = vpop.f32.mrf.mxu0
    %2309 = vmatprep.mubr.f32.mxu0 0.0
    %2310 = vmatmul.mubr.f32.gmra.mxu0 %v2220
    %v2311 = vpop.f32.mrf.mxu0
    %v2312 = vadd.f32 0.0, %v2311
    %v2313 = vpop.f32.mrf.mxu0
    %2314 = vmatprep.mubr.f32.mxu0 0.0
    %2315 = vmatmul.mubr.f32.gmra.mxu0 %v2223
    %v2316 = vpop.f32.mrf.mxu0
    %v2317 = vadd.f32 0.0, %v2316
    %v2318 = vpop.f32.mrf.mxu0
    %2319 = vmatprep.mubr.f32.mxu0 0.0
    %2320 = vmatmul.mubr.f32.gmra.mxu0 %v2226
    %v2321 = vpop.f32.mrf.mxu0
    %v2322 = vadd.f32 0.0, %v2321
    %v2323 = vpop.f32.mrf.mxu0
    %2324 = vmatprep.mubr.f32.mxu0 0.0
    %2325 = vmatmul.mubr.f32.gmra.mxu0 %v2229
    %v2326 = vpop.f32.mrf.mxu0
    %v2327 = vadd.f32 0.0, %v2326
    %v2328 = vpop.f32.mrf.mxu0
    %2329 = vmatprep.mubr.f32.mxu0 0.0
    %2330 = vmatmul.mubr.f32.gmra.mxu0 %v2232
    %v2331 = vpop.f32.mrf.mxu0
    %v2332 = vadd.f32 0.0, %v2331
    %v2333 = vpop.f32.mrf.mxu0
    %2334 = vmatprep.mubr.f32.mxu0 0.0
    %2335 = vmatmul.mubr.f32.gmra.mxu0 %v2235
    %v2336 = vpop.f32.mrf.mxu0
    %v2337 = vadd.f32 0.0, %v2336
    %v2338 = vpop.f32.mrf.mxu0
    %2339 = vmatprep.mubr.f32.mxu0 0.0
    %2340 = vmatmul.mubr.f32.gmra.mxu0 %v2238
    %v2341 = vpop.f32.mrf.mxu0
    %v2342 = vadd.f32 0.0, %v2341
    %v2343 = vpop.f32.mrf.mxu0
    %2344 = vdwg.mxu0
    %v2345 = vld [vmem:[%s2] sm:$0xff]
    %v2346 = vld [vmem:[%s2 + $0x8] sm:$0xff]
    %v2347 = vld [vmem:[%s3] sm:$0x1]
    %v2349 = vlaneseq
    %v2350 = vshrl.u32 %v2349, 7
    %v2351 = vsub.s32 0, %v2350
    %v2352 = vrot.slane %v2347, %v2351
    %vm2354 = vcmask 130048
    %v2356 = vsel %vm2354, %v372, 0
    %v2359 = vsel %vm2354, %v377, 0
    %v2362 = vsel %vm2354, %v382, 0
    %v2365 = vsel %vm2354, %v387, 0
    %v2368 = vsel %vm2354, %v392, 0
    %v2371 = vsel %vm2354, %v397, 0
    %v2374 = vsel %vm2354, %v402, 0
    %v2377 = vsel %vm2354, %v407, 0
    %v2380 = vsel %vm2354, %v501, 0
    %v2383 = vsel %vm2354, %v506, 0
    %v2386 = vsel %vm2354, %v511, 0
    %v2389 = vsel %vm2354, %v516, 0
    %v2392 = vsel %vm2354, %v521, 0
    %v2395 = vsel %vm2354, %v526, 0
    %v2398 = vsel %vm2354, %v531, 0
    %v2401 = vsel %vm2354, %v536, 0
    %v2404 = vsel %vm2354, %v630, 0
    %v2407 = vsel %vm2354, %v635, 0
    %v2410 = vsel %vm2354, %v640, 0
    %v2413 = vsel %vm2354, %v645, 0
    %v2416 = vsel %vm2354, %v650, 0
    %v2419 = vsel %vm2354, %v655, 0
    %v2422 = vsel %vm2354, %v660, 0
    %v2425 = vsel %vm2354, %v665, 0
    %v2428 = vsel %vm2354, %v759, 0
    %v2431 = vsel %vm2354, %v764, 0
    %v2434 = vsel %vm2354, %v769, 0
    %v2437 = vsel %vm2354, %v774, 0
    %v2440 = vsel %vm2354, %v779, 0
    %v2443 = vsel %vm2354, %v784, 0
    %v2446 = vsel %vm2354, %v789, 0
    %v2449 = vsel %vm2354, %v794, 0
    %v2452 = vsel %vm2354, %v888, 0
    %v2455 = vsel %vm2354, %v893, 0
    %v2458 = vsel %vm2354, %v898, 0
    %v2461 = vsel %vm2354, %v903, 0
    %v2464 = vsel %vm2354, %v908, 0
    %v2467 = vsel %vm2354, %v913, 0
    %v2470 = vsel %vm2354, %v918, 0
    %v2473 = vsel %vm2354, %v923, 0
    %v2476 = vsel %vm2354, %v1017, 0
    %v2479 = vsel %vm2354, %v1022, 0
    %v2482 = vsel %vm2354, %v1027, 0
    %v2485 = vsel %vm2354, %v1032, 0
    %v2488 = vsel %vm2354, %v1037, 0
    %v2491 = vsel %vm2354, %v1042, 0
    %v2494 = vsel %vm2354, %v1047, 0
    %v2497 = vsel %vm2354, %v1052, 0
    %v2500 = vsel %vm2354, %v1146, 0
    %v2503 = vsel %vm2354, %v1151, 0
    %v2506 = vsel %vm2354, %v1156, 0
    %v2509 = vsel %vm2354, %v1161, 0
    %v2512 = vsel %vm2354, %v1166, 0
    %v2515 = vsel %vm2354, %v1171, 0
    %v2518 = vsel %vm2354, %v1176, 0
    %v2521 = vsel %vm2354, %v1181, 0
    %v2524 = vsel %vm2354, %v1275, 0
    %v2527 = vsel %vm2354, %v1280, 0
    %v2530 = vsel %vm2354, %v1285, 0
    %v2533 = vsel %vm2354, %v1290, 0
    %v2536 = vsel %vm2354, %v1295, 0
    %v2539 = vsel %vm2354, %v1300, 0
    %v2542 = vsel %vm2354, %v1305, 0
    %v2545 = vsel %vm2354, %v1310, 0
    %v2548 = vsel %vm2354, %v1404, 0
    %v2551 = vsel %vm2354, %v1409, 0
    %v2554 = vsel %vm2354, %v1414, 0
    %v2557 = vsel %vm2354, %v1419, 0
    %v2560 = vsel %vm2354, %v1424, 0
    %v2563 = vsel %vm2354, %v1429, 0
    %v2566 = vsel %vm2354, %v1434, 0
    %v2569 = vsel %vm2354, %v1439, 0
    %v2572 = vsel %vm2354, %v1533, 0
    %v2575 = vsel %vm2354, %v1538, 0
    %v2578 = vsel %vm2354, %v1543, 0
    %v2581 = vsel %vm2354, %v1548, 0
    %v2584 = vsel %vm2354, %v1553, 0
    %v2587 = vsel %vm2354, %v1558, 0
    %v2590 = vsel %vm2354, %v1563, 0
    %v2593 = vsel %vm2354, %v1568, 0
    %v2596 = vsel %vm2354, %v1662, 0
    %v2599 = vsel %vm2354, %v1667, 0
    %v2602 = vsel %vm2354, %v1672, 0
    %v2605 = vsel %vm2354, %v1677, 0
    %v2608 = vsel %vm2354, %v1682, 0
    %v2611 = vsel %vm2354, %v1687, 0
    %v2614 = vsel %vm2354, %v1692, 0
    %v2617 = vsel %vm2354, %v1697, 0
    %v2620 = vsel %vm2354, %v1791, 0
    %v2623 = vsel %vm2354, %v1796, 0
    %v2626 = vsel %vm2354, %v1801, 0
    %v2629 = vsel %vm2354, %v1806, 0
    %v2632 = vsel %vm2354, %v1811, 0
    %v2635 = vsel %vm2354, %v1816, 0
    %v2638 = vsel %vm2354, %v1821, 0
    %v2641 = vsel %vm2354, %v1826, 0
    %v2644 = vsel %vm2354, %v1920, 0
    %v2647 = vsel %vm2354, %v1925, 0
    %v2650 = vsel %vm2354, %v1930, 0
    %v2653 = vsel %vm2354, %v1935, 0
    %v2656 = vsel %vm2354, %v1940, 0
    %v2659 = vsel %vm2354, %v1945, 0
    %v2662 = vsel %vm2354, %v1950, 0
    %v2665 = vsel %vm2354, %v1955, 0
    %v2668 = vsel %vm2354, %v2049, 0
    %v2671 = vsel %vm2354, %v2054, 0
    %v2674 = vsel %vm2354, %v2059, 0
    %v2677 = vsel %vm2354, %v2064, 0
    %v2680 = vsel %vm2354, %v2069, 0
    %v2683 = vsel %vm2354, %v2074, 0
    %v2686 = vsel %vm2354, %v2079, 0
    %v2689 = vsel %vm2354, %v2084, 0
    %v2692 = vsel %vm2354, %v2178, 0
    %v2695 = vsel %vm2354, %v2183, 0
    %v2698 = vsel %vm2354, %v2188, 0
    %v2701 = vsel %vm2354, %v2193, 0
    %v2704 = vsel %vm2354, %v2198, 0
    %v2707 = vsel %vm2354, %v2203, 0
    %v2710 = vsel %vm2354, %v2208, 0
    %v2713 = vsel %vm2354, %v2213, 0
    %v2716 = vsel %vm2354, %v2307, 0
    %v2719 = vsel %vm2354, %v2312, 0
    %v2722 = vsel %vm2354, %v2317, 0
    %v2725 = vsel %vm2354, %v2322, 0
    %v2728 = vsel %vm2354, %v2327, 0
    %v2731 = vsel %vm2354, %v2332, 0
    %v2734 = vsel %vm2354, %v2337, 0
    %v2737 = vsel %vm2354, %v2342, 0
    %2739 = vmatprep.subr.mxu0 0.0
    %2740 = vmatpush1.msra.mxu0 0.0
    %2741 = vmatprep.subr.mxu0 0.0
    %2742 = vmatpush1.msra.mxu0 0.0
    %2743 = vmatprep.subr.mxu0 0.0
    %2744 = vmatpush1.msra.mxu0 0.0
    %2745 = vmatprep.subr.mxu0 0.0
    %2746 = vmatpush1.msra.mxu0 0.0
    %2747 = vmatprep.subr.mxu0 0.0
    %2748 = vmatpush1.msra.mxu0 0.0
    %2749 = vmatprep.subr.mxu0 0.0
    %2750 = vmatpush1.msra.mxu0 0.0
    %2751 = vmatprep.subr.mxu0 0.0
    %2752 = vmatpush1.msra.mxu0 0.0
    %2753 = vmatprep.subr.mxu0 0.0
    %2754 = vmatpush1.msra.mxu0 0.0
    %2755 = vmatprep.subr.mxu0 0.0
    %2756 = vmatpush1.msra.mxu0 0.0
    %2757 = vmatprep.subr.mxu0 0.0
    %2758 = vmatpush1.msra.mxu0 0.0
    %2759 = vmatprep.subr.mxu0 0.0
    %2760 = vmatpush1.msra.mxu0 0.0
    %2761 = vmatprep.subr.mxu0 0.0
    %2762 = vmatpush1.msra.mxu0 0.0
    %2763 = vmatprep.subr.mxu0 0.0
    %2764 = vmatpush1.msra.mxu0 0.0
    %2765 = vmatprep.subr.mxu0 0.0
    %2766 = vmatpush1.msra.mxu0 0.0
    %2767 = vmatprep.subr.mxu0 0.0
    %2768 = vmatpush1.msra.mxu0 %v2346
    %2769 = vmatprep.subr.mxu0 0.0
    %2770 = vmatpush1.msra.mxu0 %v2345
    %2771 = vmatprep.subr.mxu0 0.0
    %2772 = vmatpush2.msra.mxu0 0.0
    %2773 = vmatprep.subr.mxu0 0.0
    %2774 = vmatpush2.msra.mxu0 0.0
    %2775 = vmatprep.subr.mxu0 0.0
    %2776 = vmatpush2.msra.mxu0 0.0
    %2777 = vmatprep.subr.mxu0 0.0
    %2778 = vmatpush2.msra.mxu0 0.0
    %2779 = vmatprep.subr.mxu0 0.0
    %2780 = vmatpush2.msra.mxu0 0.0
    %2781 = vmatprep.subr.mxu0 0.0
    %2782 = vmatpush2.msra.mxu0 0.0
    %2783 = vmatprep.subr.mxu0 0.0
    %2784 = vmatpush2.msra.mxu0 0.0
    %2785 = vmatprep.subr.mxu0 0.0
    %2786 = vmatpush2.msra.mxu0 0.0
    %2787 = vmatprep.subr.mxu0 0.0
    %2788 = vmatpush2.msra.mxu0 0.0
    %2789 = vmatprep.subr.mxu0 0.0
    %2790 = vmatpush2.msra.mxu0 0.0
    %2791 = vmatprep.subr.mxu0 0.0
    %2792 = vmatpush2.msra.mxu0 0.0
    %2793 = vmatprep.subr.mxu0 0.0
    %2794 = vmatpush2.msra.mxu0 0.0
    %2795 = vmatprep.subr.mxu0 0.0
    %2796 = vmatpush2.msra.mxu0 0.0
    %2797 = vmatprep.subr.mxu0 0.0
    %2798 = vmatpush2.msra.mxu0 0.0
    %2799 = vmatprep.subr.mxu0 0.0
    %2800 = vmatpush2.msra.mxu0 0.0
    %2801 = vmatprep.subr.mxu0 0.0
    %2802 = vmatpush2.msra.mxu0 0.0
    %2803 = vmatprep.mubr.f32.mxu0 0.0
    %2804 = vmatmul.mubr.f32.gmra.mxu0 %v2356
    %v2805 = vpop.f32.mrf.mxu0
    %v2806 = vadd.f32 %v2352, %v2805
    %v2807 = vpop.f32.mrf.mxu0
    %2808 = vmatprep.mubr.f32.mxu0 0.0
    %2809 = vmatmul.mubr.f32.gmra.mxu0 %v2359
    %v2810 = vpop.f32.mrf.mxu0
    %v2811 = vadd.f32 %v2352, %v2810
    %v2812 = vpop.f32.mrf.mxu0
    %2813 = vmatprep.mubr.f32.mxu0 0.0
    %2814 = vmatmul.mubr.f32.gmra.mxu0 %v2362
    %v2815 = vpop.f32.mrf.mxu0
    %v2816 = vadd.f32 %v2352, %v2815
    %v2817 = vpop.f32.mrf.mxu0
    %2818 = vmatprep.mubr.f32.mxu0 0.0
    %2819 = vmatmul.mubr.f32.gmra.mxu0 %v2365
    %v2820 = vpop.f32.mrf.mxu0
    %v2821 = vadd.f32 %v2352, %v2820
    %v2822 = vpop.f32.mrf.mxu0
    %2823 = vmatprep.mubr.f32.mxu0 0.0
    %2824 = vmatmul.mubr.f32.gmra.mxu0 %v2368
    %v2825 = vpop.f32.mrf.mxu0
    %v2826 = vadd.f32 %v2352, %v2825
    %v2827 = vpop.f32.mrf.mxu0
    %2828 = vmatprep.mubr.f32.mxu0 0.0
    %2829 = vmatmul.mubr.f32.gmra.mxu0 %v2371
    %v2830 = vpop.f32.mrf.mxu0
    %v2831 = vadd.f32 %v2352, %v2830
    %v2832 = vpop.f32.mrf.mxu0
    %2833 = vmatprep.mubr.f32.mxu0 0.0
    %2834 = vmatmul.mubr.f32.gmra.mxu0 %v2374
    %v2835 = vpop.f32.mrf.mxu0
    %v2836 = vadd.f32 %v2352, %v2835
    %v2837 = vpop.f32.mrf.mxu0
    %2838 = vmatprep.mubr.f32.mxu0 0.0
    %2839 = vmatmul.mubr.f32.gmra.mxu0 %v2377
    %v2840 = vpop.f32.mrf.mxu0
    %v2841 = vadd.f32 %v2352, %v2840
    %v2842 = vpop.f32.mrf.mxu0
    %2843 = vmatprep.mubr.f32.mxu0 0.0
    %2844 = vmatmul.mubr.f32.gmra.mxu0 %v2380
    %v2845 = vpop.f32.mrf.mxu0
    %v2846 = vadd.f32 %v2352, %v2845
    %v2847 = vpop.f32.mrf.mxu0
    %2848 = vmatprep.mubr.f32.mxu0 0.0
    %2849 = vmatmul.mubr.f32.gmra.mxu0 %v2383
    %v2850 = vpop.f32.mrf.mxu0
    %v2851 = vadd.f32 %v2352, %v2850
    %v2852 = vpop.f32.mrf.mxu0
    %2853 = vmatprep.mubr.f32.mxu0 0.0
    %2854 = vmatmul.mubr.f32.gmra.mxu0 %v2386
    %v2855 = vpop.f32.mrf.mxu0
    %v2856 = vadd.f32 %v2352, %v2855
    %v2857 = vpop.f32.mrf.mxu0
    %2858 = vmatprep.mubr.f32.mxu0 0.0
    %2859 = vmatmul.mubr.f32.gmra.mxu0 %v2389
    %v2860 = vpop.f32.mrf.mxu0
    %v2861 = vadd.f32 %v2352, %v2860
    %v2862 = vpop.f32.mrf.mxu0
    %2863 = vmatprep.mubr.f32.mxu0 0.0
    %2864 = vmatmul.mubr.f32.gmra.mxu0 %v2392
    %v2865 = vpop.f32.mrf.mxu0
    %v2866 = vadd.f32 %v2352, %v2865
    %v2867 = vpop.f32.mrf.mxu0
    %2868 = vmatprep.mubr.f32.mxu0 0.0
    %2869 = vmatmul.mubr.f32.gmra.mxu0 %v2395
    %v2870 = vpop.f32.mrf.mxu0
    %v2871 = vadd.f32 %v2352, %v2870
    %v2872 = vpop.f32.mrf.mxu0
    %2873 = vmatprep.mubr.f32.mxu0 0.0
    %2874 = vmatmul.mubr.f32.gmra.mxu0 %v2398
    %v2875 = vpop.f32.mrf.mxu0
    %v2876 = vadd.f32 %v2352, %v2875
    %v2877 = vpop.f32.mrf.mxu0
    %2878 = vmatprep.mubr.f32.mxu0 0.0
    %2879 = vmatmul.mubr.f32.gmra.mxu0 %v2401
    %v2880 = vpop.f32.mrf.mxu0
    %v2881 = vadd.f32 %v2352, %v2880
    %v2882 = vpop.f32.mrf.mxu0
    %2883 = vmatprep.mubr.f32.mxu0 0.0
    %2884 = vmatmul.mubr.f32.gmra.mxu0 %v2404
    %v2885 = vpop.f32.mrf.mxu0
    %v2886 = vadd.f32 %v2352, %v2885
    %v2887 = vpop.f32.mrf.mxu0
    %2888 = vmatprep.mubr.f32.mxu0 0.0
    %2889 = vmatmul.mubr.f32.gmra.mxu0 %v2407
    %v2890 = vpop.f32.mrf.mxu0
    %v2891 = vadd.f32 %v2352, %v2890
    %v2892 = vpop.f32.mrf.mxu0
    %2893 = vmatprep.mubr.f32.mxu0 0.0
    %2894 = vmatmul.mubr.f32.gmra.mxu0 %v2410
    %v2895 = vpop.f32.mrf.mxu0
    %v2896 = vadd.f32 %v2352, %v2895
    %v2897 = vpop.f32.mrf.mxu0
    %2898 = vmatprep.mubr.f32.mxu0 0.0
    %2899 = vmatmul.mubr.f32.gmra.mxu0 %v2413
    %v2900 = vpop.f32.mrf.mxu0
    %v2901 = vadd.f32 %v2352, %v2900
    %v2902 = vpop.f32.mrf.mxu0
    %2903 = vmatprep.mubr.f32.mxu0 0.0
    %2904 = vmatmul.mubr.f32.gmra.mxu0 %v2416
    %v2905 = vpop.f32.mrf.mxu0
    %v2906 = vadd.f32 %v2352, %v2905
    %v2907 = vpop.f32.mrf.mxu0
    %2908 = vmatprep.mubr.f32.mxu0 0.0
    %2909 = vmatmul.mubr.f32.gmra.mxu0 %v2419
    %v2910 = vpop.f32.mrf.mxu0
    %v2911 = vadd.f32 %v2352, %v2910
    %v2912 = vpop.f32.mrf.mxu0
    %2913 = vmatprep.mubr.f32.mxu0 0.0
    %2914 = vmatmul.mubr.f32.gmra.mxu0 %v2422
    %v2915 = vpop.f32.mrf.mxu0
    %v2916 = vadd.f32 %v2352, %v2915
    %v2917 = vpop.f32.mrf.mxu0
    %2918 = vmatprep.mubr.f32.mxu0 0.0
    %2919 = vmatmul.mubr.f32.gmra.mxu0 %v2425
    %v2920 = vpop.f32.mrf.mxu0
    %v2921 = vadd.f32 %v2352, %v2920
    %v2922 = vpop.f32.mrf.mxu0
    %2923 = vmatprep.mubr.f32.mxu0 0.0
    %2924 = vmatmul.mubr.f32.gmra.mxu0 %v2428
    %v2925 = vpop.f32.mrf.mxu0
    %v2926 = vadd.f32 %v2352, %v2925
    %v2927 = vpop.f32.mrf.mxu0
    %2928 = vmatprep.mubr.f32.mxu0 0.0
    %2929 = vmatmul.mubr.f32.gmra.mxu0 %v2431
    %v2930 = vpop.f32.mrf.mxu0
    %v2931 = vadd.f32 %v2352, %v2930
    %v2932 = vpop.f32.mrf.mxu0
    %2933 = vmatprep.mubr.f32.mxu0 0.0
    %2934 = vmatmul.mubr.f32.gmra.mxu0 %v2434
    %v2935 = vpop.f32.mrf.mxu0
    %v2936 = vadd.f32 %v2352, %v2935
    %v2937 = vpop.f32.mrf.mxu0
    %2938 = vmatprep.mubr.f32.mxu0 0.0
    %2939 = vmatmul.mubr.f32.gmra.mxu0 %v2437
    %v2940 = vpop.f32.mrf.mxu0
    %v2941 = vadd.f32 %v2352, %v2940
    %v2942 = vpop.f32.mrf.mxu0
    %2943 = vmatprep.mubr.f32.mxu0 0.0
    %2944 = vmatmul.mubr.f32.gmra.mxu0 %v2440
    %v2945 = vpop.f32.mrf.mxu0
    %v2946 = vadd.f32 %v2352, %v2945
    %v2947 = vpop.f32.mrf.mxu0
    %2948 = vmatprep.mubr.f32.mxu0 0.0
    %2949 = vmatmul.mubr.f32.gmra.mxu0 %v2443
    %v2950 = vpop.f32.mrf.mxu0
    %v2951 = vadd.f32 %v2352, %v2950
    %v2952 = vpop.f32.mrf.mxu0
    %2953 = vmatprep.mubr.f32.mxu0 0.0
    %2954 = vmatmul.mubr.f32.gmra.mxu0 %v2446
    %v2955 = vpop.f32.mrf.mxu0
    %v2956 = vadd.f32 %v2352, %v2955
    %v2957 = vpop.f32.mrf.mxu0
    %2958 = vmatprep.mubr.f32.mxu0 0.0
    %2959 = vmatmul.mubr.f32.gmra.mxu0 %v2449
    %v2960 = vpop.f32.mrf.mxu0
    %v2961 = vadd.f32 %v2352, %v2960
    %v2962 = vpop.f32.mrf.mxu0
    %2963 = vmatprep.mubr.f32.mxu0 0.0
    %2964 = vmatmul.mubr.f32.gmra.mxu0 %v2452
    %v2965 = vpop.f32.mrf.mxu0
    %v2966 = vadd.f32 %v2352, %v2965
    %v2967 = vpop.f32.mrf.mxu0
    %2968 = vmatprep.mubr.f32.mxu0 0.0
    %2969 = vmatmul.mubr.f32.gmra.mxu0 %v2455
    %v2970 = vpop.f32.mrf.mxu0
    %v2971 = vadd.f32 %v2352, %v2970
    %v2972 = vpop.f32.mrf.mxu0
    %2973 = vmatprep.mubr.f32.mxu0 0.0
    %2974 = vmatmul.mubr.f32.gmra.mxu0 %v2458
    %v2975 = vpop.f32.mrf.mxu0
    %v2976 = vadd.f32 %v2352, %v2975
    %v2977 = vpop.f32.mrf.mxu0
    %2978 = vmatprep.mubr.f32.mxu0 0.0
    %2979 = vmatmul.mubr.f32.gmra.mxu0 %v2461
    %v2980 = vpop.f32.mrf.mxu0
    %v2981 = vadd.f32 %v2352, %v2980
    %v2982 = vpop.f32.mrf.mxu0
    %2983 = vmatprep.mubr.f32.mxu0 0.0
    %2984 = vmatmul.mubr.f32.gmra.mxu0 %v2464
    %v2985 = vpop.f32.mrf.mxu0
    %v2986 = vadd.f32 %v2352, %v2985
    %v2987 = vpop.f32.mrf.mxu0
    %2988 = vmatprep.mubr.f32.mxu0 0.0
    %2989 = vmatmul.mubr.f32.gmra.mxu0 %v2467
    %v2990 = vpop.f32.mrf.mxu0
    %v2991 = vadd.f32 %v2352, %v2990
    %v2992 = vpop.f32.mrf.mxu0
    %2993 = vmatprep.mubr.f32.mxu0 0.0
    %2994 = vmatmul.mubr.f32.gmra.mxu0 %v2470
    %v2995 = vpop.f32.mrf.mxu0
    %v2996 = vadd.f32 %v2352, %v2995
    %v2997 = vpop.f32.mrf.mxu0
    %2998 = vmatprep.mubr.f32.mxu0 0.0
    %2999 = vmatmul.mubr.f32.gmra.mxu0 %v2473
    %v3000 = vpop.f32.mrf.mxu0
    %v3001 = vadd.f32 %v2352, %v3000
    %v3002 = vpop.f32.mrf.mxu0
    %3003 = vmatprep.mubr.f32.mxu0 0.0
    %3004 = vmatmul.mubr.f32.gmra.mxu0 %v2476
    %v3005 = vpop.f32.mrf.mxu0
    %v3006 = vadd.f32 %v2352, %v3005
    %v3007 = vpop.f32.mrf.mxu0
    %3008 = vmatprep.mubr.f32.mxu0 0.0
    %3009 = vmatmul.mubr.f32.gmra.mxu0 %v2479
    %v3010 = vpop.f32.mrf.mxu0
    %v3011 = vadd.f32 %v2352, %v3010
    %v3012 = vpop.f32.mrf.mxu0
    %3013 = vmatprep.mubr.f32.mxu0 0.0
    %3014 = vmatmul.mubr.f32.gmra.mxu0 %v2482
    %v3015 = vpop.f32.mrf.mxu0
    %v3016 = vadd.f32 %v2352, %v3015
    %v3017 = vpop.f32.mrf.mxu0
    %3018 = vmatprep.mubr.f32.mxu0 0.0
    %3019 = vmatmul.mubr.f32.gmra.mxu0 %v2485
    %v3020 = vpop.f32.mrf.mxu0
    %v3021 = vadd.f32 %v2352, %v3020
    %v3022 = vpop.f32.mrf.mxu0
    %3023 = vmatprep.mubr.f32.mxu0 0.0
    %3024 = vmatmul.mubr.f32.gmra.mxu0 %v2488
    %v3025 = vpop.f32.mrf.mxu0
    %v3026 = vadd.f32 %v2352, %v3025
    %v3027 = vpop.f32.mrf.mxu0
    %3028 = vmatprep.mubr.f32.mxu0 0.0
    %3029 = vmatmul.mubr.f32.gmra.mxu0 %v2491
    %v3030 = vpop.f32.mrf.mxu0
    %v3031 = vadd.f32 %v2352, %v3030
    %v3032 = vpop.f32.mrf.mxu0
    %3033 = vmatprep.mubr.f32.mxu0 0.0
    %3034 = vmatmul.mubr.f32.gmra.mxu0 %v2494
    %v3035 = vpop.f32.mrf.mxu0
    %v3036 = vadd.f32 %v2352, %v3035
    %v3037 = vpop.f32.mrf.mxu0
    %3038 = vmatprep.mubr.f32.mxu0 0.0
    %3039 = vmatmul.mubr.f32.gmra.mxu0 %v2497
    %v3040 = vpop.f32.mrf.mxu0
    %v3041 = vadd.f32 %v2352, %v3040
    %v3042 = vpop.f32.mrf.mxu0
    %3043 = vmatprep.mubr.f32.mxu0 0.0
    %3044 = vmatmul.mubr.f32.gmra.mxu0 %v2500
    %v3045 = vpop.f32.mrf.mxu0
    %v3046 = vadd.f32 %v2352, %v3045
    %v3047 = vpop.f32.mrf.mxu0
    %3048 = vmatprep.mubr.f32.mxu0 0.0
    %3049 = vmatmul.mubr.f32.gmra.mxu0 %v2503
    %v3050 = vpop.f32.mrf.mxu0
    %v3051 = vadd.f32 %v2352, %v3050
    %v3052 = vpop.f32.mrf.mxu0
    %3053 = vmatprep.mubr.f32.mxu0 0.0
    %3054 = vmatmul.mubr.f32.gmra.mxu0 %v2506
    %v3055 = vpop.f32.mrf.mxu0
    %v3056 = vadd.f32 %v2352, %v3055
    %v3057 = vpop.f32.mrf.mxu0
    %3058 = vmatprep.mubr.f32.mxu0 0.0
    %3059 = vmatmul.mubr.f32.gmra.mxu0 %v2509
    %v3060 = vpop.f32.mrf.mxu0
    %v3061 = vadd.f32 %v2352, %v3060
    %v3062 = vpop.f32.mrf.mxu0
    %3063 = vmatprep.mubr.f32.mxu0 0.0
    %3064 = vmatmul.mubr.f32.gmra.mxu0 %v2512
    %v3065 = vpop.f32.mrf.mxu0
    %v3066 = vadd.f32 %v2352, %v3065
    %v3067 = vpop.f32.mrf.mxu0
    %3068 = vmatprep.mubr.f32.mxu0 0.0
    %3069 = vmatmul.mubr.f32.gmra.mxu0 %v2515
    %v3070 = vpop.f32.mrf.mxu0
    %v3071 = vadd.f32 %v2352, %v3070
    %v3072 = vpop.f32.mrf.mxu0
    %3073 = vmatprep.mubr.f32.mxu0 0.0
    %3074 = vmatmul.mubr.f32.gmra.mxu0 %v2518
    %v3075 = vpop.f32.mrf.mxu0
    %v3076 = vadd.f32 %v2352, %v3075
    %v3077 = vpop.f32.mrf.mxu0
    %3078 = vmatprep.mubr.f32.mxu0 0.0
    %3079 = vmatmul.mubr.f32.gmra.mxu0 %v2521
    %v3080 = vpop.f32.mrf.mxu0
    %v3081 = vadd.f32 %v2352, %v3080
    %v3082 = vpop.f32.mrf.mxu0
    %3083 = vmatprep.mubr.f32.mxu0 0.0
    %3084 = vmatmul.mubr.f32.gmra.mxu0 %v2524
    %v3085 = vpop.f32.mrf.mxu0
    %v3086 = vadd.f32 %v2352, %v3085
    %v3087 = vpop.f32.mrf.mxu0
    %3088 = vmatprep.mubr.f32.mxu0 0.0
    %3089 = vmatmul.mubr.f32.gmra.mxu0 %v2527
    %v3090 = vpop.f32.mrf.mxu0
    %v3091 = vadd.f32 %v2352, %v3090
    %v3092 = vpop.f32.mrf.mxu0
    %3093 = vmatprep.mubr.f32.mxu0 0.0
    %3094 = vmatmul.mubr.f32.gmra.mxu0 %v2530
    %v3095 = vpop.f32.mrf.mxu0
    %v3096 = vadd.f32 %v2352, %v3095
    %v3097 = vpop.f32.mrf.mxu0
    %3098 = vmatprep.mubr.f32.mxu0 0.0
    %3099 = vmatmul.mubr.f32.gmra.mxu0 %v2533
    %v3100 = vpop.f32.mrf.mxu0
    %v3101 = vadd.f32 %v2352, %v3100
    %v3102 = vpop.f32.mrf.mxu0
    %3103 = vmatprep.mubr.f32.mxu0 0.0
    %3104 = vmatmul.mubr.f32.gmra.mxu0 %v2536
    %v3105 = vpop.f32.mrf.mxu0
    %v3106 = vadd.f32 %v2352, %v3105
    %v3107 = vpop.f32.mrf.mxu0
    %3108 = vmatprep.mubr.f32.mxu0 0.0
    %3109 = vmatmul.mubr.f32.gmra.mxu0 %v2539
    %v3110 = vpop.f32.mrf.mxu0
    %v3111 = vadd.f32 %v2352, %v3110
    %v3112 = vpop.f32.mrf.mxu0
    %3113 = vmatprep.mubr.f32.mxu0 0.0
    %3114 = vmatmul.mubr.f32.gmra.mxu0 %v2542
    %v3115 = vpop.f32.mrf.mxu0
    %v3116 = vadd.f32 %v2352, %v3115
    %v3117 = vpop.f32.mrf.mxu0
    %3118 = vmatprep.mubr.f32.mxu0 0.0
    %3119 = vmatmul.mubr.f32.gmra.mxu0 %v2545
    %v3120 = vpop.f32.mrf.mxu0
    %v3121 = vadd.f32 %v2352, %v3120
    %v3122 = vpop.f32.mrf.mxu0
    %3123 = vmatprep.mubr.f32.mxu0 0.0
    %3124 = vmatmul.mubr.f32.gmra.mxu0 %v2548
    %v3125 = vpop.f32.mrf.mxu0
    %v3126 = vadd.f32 %v2352, %v3125
    %v3127 = vpop.f32.mrf.mxu0
    %3128 = vmatprep.mubr.f32.mxu0 0.0
    %3129 = vmatmul.mubr.f32.gmra.mxu0 %v2551
    %v3130 = vpop.f32.mrf.mxu0
    %v3131 = vadd.f32 %v2352, %v3130
    %v3132 = vpop.f32.mrf.mxu0
    %3133 = vmatprep.mubr.f32.mxu0 0.0
    %3134 = vmatmul.mubr.f32.gmra.mxu0 %v2554
    %v3135 = vpop.f32.mrf.mxu0
    %v3136 = vadd.f32 %v2352, %v3135
    %v3137 = vpop.f32.mrf.mxu0
    %3138 = vmatprep.mubr.f32.mxu0 0.0
    %3139 = vmatmul.mubr.f32.gmra.mxu0 %v2557
    %v3140 = vpop.f32.mrf.mxu0
    %v3141 = vadd.f32 %v2352, %v3140
    %v3142 = vpop.f32.mrf.mxu0
    %3143 = vmatprep.mubr.f32.mxu0 0.0
    %3144 = vmatmul.mubr.f32.gmra.mxu0 %v2560
    %v3145 = vpop.f32.mrf.mxu0
    %v3146 = vadd.f32 %v2352, %v3145
    %v3147 = vpop.f32.mrf.mxu0
    %3148 = vmatprep.mubr.f32.mxu0 0.0
    %3149 = vmatmul.mubr.f32.gmra.mxu0 %v2563
    %v3150 = vpop.f32.mrf.mxu0
    %v3151 = vadd.f32 %v2352, %v3150
    %v3152 = vpop.f32.mrf.mxu0
    %3153 = vmatprep.mubr.f32.mxu0 0.0
    %3154 = vmatmul.mubr.f32.gmra.mxu0 %v2566
    %v3155 = vpop.f32.mrf.mxu0
    %v3156 = vadd.f32 %v2352, %v3155
    %v3157 = vpop.f32.mrf.mxu0
    %3158 = vmatprep.mubr.f32.mxu0 0.0
    %3159 = vmatmul.mubr.f32.gmra.mxu0 %v2569
    %v3160 = vpop.f32.mrf.mxu0
    %v3161 = vadd.f32 %v2352, %v3160
    %v3162 = vpop.f32.mrf.mxu0
    %3163 = vmatprep.mubr.f32.mxu0 0.0
    %3164 = vmatmul.mubr.f32.gmra.mxu0 %v2572
    %v3165 = vpop.f32.mrf.mxu0
    %v3166 = vadd.f32 %v2352, %v3165
    %v3167 = vpop.f32.mrf.mxu0
    %3168 = vmatprep.mubr.f32.mxu0 0.0
    %3169 = vmatmul.mubr.f32.gmra.mxu0 %v2575
    %v3170 = vpop.f32.mrf.mxu0
    %v3171 = vadd.f32 %v2352, %v3170
    %v3172 = vpop.f32.mrf.mxu0
    %3173 = vmatprep.mubr.f32.mxu0 0.0
    %3174 = vmatmul.mubr.f32.gmra.mxu0 %v2578
    %v3175 = vpop.f32.mrf.mxu0
    %v3176 = vadd.f32 %v2352, %v3175
    %v3177 = vpop.f32.mrf.mxu0
    %3178 = vmatprep.mubr.f32.mxu0 0.0
    %3179 = vmatmul.mubr.f32.gmra.mxu0 %v2581
    %v3180 = vpop.f32.mrf.mxu0
    %v3181 = vadd.f32 %v2352, %v3180
    %v3182 = vpop.f32.mrf.mxu0
    %3183 = vmatprep.mubr.f32.mxu0 0.0
    %3184 = vmatmul.mubr.f32.gmra.mxu0 %v2584
    %v3185 = vpop.f32.mrf.mxu0
    %v3186 = vadd.f32 %v2352, %v3185
    %v3187 = vpop.f32.mrf.mxu0
    %3188 = vmatprep.mubr.f32.mxu0 0.0
    %3189 = vmatmul.mubr.f32.gmra.mxu0 %v2587
    %v3190 = vpop.f32.mrf.mxu0
    %v3191 = vadd.f32 %v2352, %v3190
    %v3192 = vpop.f32.mrf.mxu0
    %3193 = vmatprep.mubr.f32.mxu0 0.0
    %3194 = vmatmul.mubr.f32.gmra.mxu0 %v2590
    %v3195 = vpop.f32.mrf.mxu0
    %v3196 = vadd.f32 %v2352, %v3195
    %v3197 = vpop.f32.mrf.mxu0
    %3198 = vmatprep.mubr.f32.mxu0 0.0
    %3199 = vmatmul.mubr.f32.gmra.mxu0 %v2593
    %v3200 = vpop.f32.mrf.mxu0
    %v3201 = vadd.f32 %v2352, %v3200
    %v3202 = vpop.f32.mrf.mxu0
    %3203 = vmatprep.mubr.f32.mxu0 0.0
    %3204 = vmatmul.mubr.f32.gmra.mxu0 %v2596
    %v3205 = vpop.f32.mrf.mxu0
    %v3206 = vadd.f32 %v2352, %v3205
    %v3207 = vpop.f32.mrf.mxu0
    %3208 = vmatprep.mubr.f32.mxu0 0.0
    %3209 = vmatmul.mubr.f32.gmra.mxu0 %v2599
    %v3210 = vpop.f32.mrf.mxu0
    %v3211 = vadd.f32 %v2352, %v3210
    %v3212 = vpop.f32.mrf.mxu0
    %3213 = vmatprep.mubr.f32.mxu0 0.0
    %3214 = vmatmul.mubr.f32.gmra.mxu0 %v2602
    %v3215 = vpop.f32.mrf.mxu0
    %v3216 = vadd.f32 %v2352, %v3215
    %v3217 = vpop.f32.mrf.mxu0
    %3218 = vmatprep.mubr.f32.mxu0 0.0
    %3219 = vmatmul.mubr.f32.gmra.mxu0 %v2605
    %v3220 = vpop.f32.mrf.mxu0
    %v3221 = vadd.f32 %v2352, %v3220
    %v3222 = vpop.f32.mrf.mxu0
    %3223 = vmatprep.mubr.f32.mxu0 0.0
    %3224 = vmatmul.mubr.f32.gmra.mxu0 %v2608
    %v3225 = vpop.f32.mrf.mxu0
    %v3226 = vadd.f32 %v2352, %v3225
    %v3227 = vpop.f32.mrf.mxu0
    %3228 = vmatprep.mubr.f32.mxu0 0.0
    %3229 = vmatmul.mubr.f32.gmra.mxu0 %v2611
    %v3230 = vpop.f32.mrf.mxu0
    %v3231 = vadd.f32 %v2352, %v3230
    %v3232 = vpop.f32.mrf.mxu0
    %3233 = vmatprep.mubr.f32.mxu0 0.0
    %3234 = vmatmul.mubr.f32.gmra.mxu0 %v2614
    %v3235 = vpop.f32.mrf.mxu0
    %v3236 = vadd.f32 %v2352, %v3235
    %v3237 = vpop.f32.mrf.mxu0
    %3238 = vmatprep.mubr.f32.mxu0 0.0
    %3239 = vmatmul.mubr.f32.gmra.mxu0 %v2617
    %v3240 = vpop.f32.mrf.mxu0
    %v3241 = vadd.f32 %v2352, %v3240
    %v3242 = vpop.f32.mrf.mxu0
    %3243 = vmatprep.mubr.f32.mxu0 0.0
    %3244 = vmatmul.mubr.f32.gmra.mxu0 %v2620
    %v3245 = vpop.f32.mrf.mxu0
    %v3246 = vadd.f32 %v2352, %v3245
    %v3247 = vpop.f32.mrf.mxu0
    %3248 = vmatprep.mubr.f32.mxu0 0.0
    %3249 = vmatmul.mubr.f32.gmra.mxu0 %v2623
    %v3250 = vpop.f32.mrf.mxu0
    %v3251 = vadd.f32 %v2352, %v3250
    %v3252 = vpop.f32.mrf.mxu0
    %3253 = vmatprep.mubr.f32.mxu0 0.0
    %3254 = vmatmul.mubr.f32.gmra.mxu0 %v2626
    %v3255 = vpop.f32.mrf.mxu0
    %v3256 = vadd.f32 %v2352, %v3255
    %v3257 = vpop.f32.mrf.mxu0
    %3258 = vmatprep.mubr.f32.mxu0 0.0
    %3259 = vmatmul.mubr.f32.gmra.mxu0 %v2629
    %v3260 = vpop.f32.mrf.mxu0
    %v3261 = vadd.f32 %v2352, %v3260
    %v3262 = vpop.f32.mrf.mxu0
    %3263 = vmatprep.mubr.f32.mxu0 0.0
    %3264 = vmatmul.mubr.f32.gmra.mxu0 %v2632
    %v3265 = vpop.f32.mrf.mxu0
    %v3266 = vadd.f32 %v2352, %v3265
    %v3267 = vpop.f32.mrf.mxu0
    %3268 = vmatprep.mubr.f32.mxu0 0.0
    %3269 = vmatmul.mubr.f32.gmra.mxu0 %v2635
    %v3270 = vpop.f32.mrf.mxu0
    %v3271 = vadd.f32 %v2352, %v3270
    %v3272 = vpop.f32.mrf.mxu0
    %3273 = vmatprep.mubr.f32.mxu0 0.0
    %3274 = vmatmul.mubr.f32.gmra.mxu0 %v2638
    %v3275 = vpop.f32.mrf.mxu0
    %v3276 = vadd.f32 %v2352, %v3275
    %v3277 = vpop.f32.mrf.mxu0
    %3278 = vmatprep.mubr.f32.mxu0 0.0
    %3279 = vmatmul.mubr.f32.gmra.mxu0 %v2641
    %v3280 = vpop.f32.mrf.mxu0
    %v3281 = vadd.f32 %v2352, %v3280
    %v3282 = vpop.f32.mrf.mxu0
    %3283 = vmatprep.mubr.f32.mxu0 0.0
    %3284 = vmatmul.mubr.f32.gmra.mxu0 %v2644
    %v3285 = vpop.f32.mrf.mxu0
    %v3286 = vadd.f32 %v2352, %v3285
    %v3287 = vpop.f32.mrf.mxu0
    %3288 = vmatprep.mubr.f32.mxu0 0.0
    %3289 = vmatmul.mubr.f32.gmra.mxu0 %v2647
    %v3290 = vpop.f32.mrf.mxu0
    %v3291 = vadd.f32 %v2352, %v3290
    %v3292 = vpop.f32.mrf.mxu0
    %3293 = vmatprep.mubr.f32.mxu0 0.0
    %3294 = vmatmul.mubr.f32.gmra.mxu0 %v2650
    %v3295 = vpop.f32.mrf.mxu0
    %v3296 = vadd.f32 %v2352, %v3295
    %v3297 = vpop.f32.mrf.mxu0
    %3298 = vmatprep.mubr.f32.mxu0 0.0
    %3299 = vmatmul.mubr.f32.gmra.mxu0 %v2653
    %v3300 = vpop.f32.mrf.mxu0
    %v3301 = vadd.f32 %v2352, %v3300
    %v3302 = vpop.f32.mrf.mxu0
    %3303 = vmatprep.mubr.f32.mxu0 0.0
    %3304 = vmatmul.mubr.f32.gmra.mxu0 %v2656
    %v3305 = vpop.f32.mrf.mxu0
    %v3306 = vadd.f32 %v2352, %v3305
    %v3307 = vpop.f32.mrf.mxu0
    %3308 = vmatprep.mubr.f32.mxu0 0.0
    %3309 = vmatmul.mubr.f32.gmra.mxu0 %v2659
    %v3310 = vpop.f32.mrf.mxu0
    %v3311 = vadd.f32 %v2352, %v3310
    %v3312 = vpop.f32.mrf.mxu0
    %3313 = vmatprep.mubr.f32.mxu0 0.0
    %3314 = vmatmul.mubr.f32.gmra.mxu0 %v2662
    %v3315 = vpop.f32.mrf.mxu0
    %v3316 = vadd.f32 %v2352, %v3315
    %v3317 = vpop.f32.mrf.mxu0
    %3318 = vmatprep.mubr.f32.mxu0 0.0
    %3319 = vmatmul.mubr.f32.gmra.mxu0 %v2665
    %v3320 = vpop.f32.mrf.mxu0
    %v3321 = vadd.f32 %v2352, %v3320
    %v3322 = vpop.f32.mrf.mxu0
    %3323 = vmatprep.mubr.f32.mxu0 0.0
    %3324 = vmatmul.mubr.f32.gmra.mxu0 %v2668
    %v3325 = vpop.f32.mrf.mxu0
    %v3326 = vadd.f32 %v2352, %v3325
    %v3327 = vpop.f32.mrf.mxu0
    %3328 = vmatprep.mubr.f32.mxu0 0.0
    %3329 = vmatmul.mubr.f32.gmra.mxu0 %v2671
    %v3330 = vpop.f32.mrf.mxu0
    %v3331 = vadd.f32 %v2352, %v3330
    %v3332 = vpop.f32.mrf.mxu0
    %3333 = vmatprep.mubr.f32.mxu0 0.0
    %3334 = vmatmul.mubr.f32.gmra.mxu0 %v2674
    %v3335 = vpop.f32.mrf.mxu0
    %v3336 = vadd.f32 %v2352, %v3335
    %v3337 = vpop.f32.mrf.mxu0
    %3338 = vmatprep.mubr.f32.mxu0 0.0
    %3339 = vmatmul.mubr.f32.gmra.mxu0 %v2677
    %v3340 = vpop.f32.mrf.mxu0
    %v3341 = vadd.f32 %v2352, %v3340
    %v3342 = vpop.f32.mrf.mxu0
    %3343 = vmatprep.mubr.f32.mxu0 0.0
    %3344 = vmatmul.mubr.f32.gmra.mxu0 %v2680
    %v3345 = vpop.f32.mrf.mxu0
    %v3346 = vadd.f32 %v2352, %v3345
    %v3347 = vpop.f32.mrf.mxu0
    %3348 = vmatprep.mubr.f32.mxu0 0.0
    %3349 = vmatmul.mubr.f32.gmra.mxu0 %v2683
    %v3350 = vpop.f32.mrf.mxu0
    %v3351 = vadd.f32 %v2352, %v3350
    %v3352 = vpop.f32.mrf.mxu0
    %3353 = vmatprep.mubr.f32.mxu0 0.0
    %3354 = vmatmul.mubr.f32.gmra.mxu0 %v2686
    %v3355 = vpop.f32.mrf.mxu0
    %v3356 = vadd.f32 %v2352, %v3355
    %v3357 = vpop.f32.mrf.mxu0
    %3358 = vmatprep.mubr.f32.mxu0 0.0
    %3359 = vmatmul.mubr.f32.gmra.mxu0 %v2689
    %v3360 = vpop.f32.mrf.mxu0
    %v3361 = vadd.f32 %v2352, %v3360
    %v3362 = vpop.f32.mrf.mxu0
    %3363 = vmatprep.mubr.f32.mxu0 0.0
    %3364 = vmatmul.mubr.f32.gmra.mxu0 %v2692
    %v3365 = vpop.f32.mrf.mxu0
    %v3366 = vadd.f32 %v2352, %v3365
    %v3367 = vpop.f32.mrf.mxu0
    %3368 = vmatprep.mubr.f32.mxu0 0.0
    %3369 = vmatmul.mubr.f32.gmra.mxu0 %v2695
    %v3370 = vpop.f32.mrf.mxu0
    %v3371 = vadd.f32 %v2352, %v3370
    %v3372 = vpop.f32.mrf.mxu0
    %3373 = vmatprep.mubr.f32.mxu0 0.0
    %3374 = vmatmul.mubr.f32.gmra.mxu0 %v2698
    %v3375 = vpop.f32.mrf.mxu0
    %v3376 = vadd.f32 %v2352, %v3375
    %v3377 = vpop.f32.mrf.mxu0
    %3378 = vmatprep.mubr.f32.mxu0 0.0
    %3379 = vmatmul.mubr.f32.gmra.mxu0 %v2701
    %v3380 = vpop.f32.mrf.mxu0
    %v3381 = vadd.f32 %v2352, %v3380
    %v3382 = vpop.f32.mrf.mxu0
    %3383 = vmatprep.mubr.f32.mxu0 0.0
    %3384 = vmatmul.mubr.f32.gmra.mxu0 %v2704
    %v3385 = vpop.f32.mrf.mxu0
    %v3386 = vadd.f32 %v2352, %v3385
    %v3387 = vpop.f32.mrf.mxu0
    %3388 = vmatprep.mubr.f32.mxu0 0.0
    %3389 = vmatmul.mubr.f32.gmra.mxu0 %v2707
    %v3390 = vpop.f32.mrf.mxu0
    %v3391 = vadd.f32 %v2352, %v3390
    %v3392 = vpop.f32.mrf.mxu0
    %3393 = vmatprep.mubr.f32.mxu0 0.0
    %3394 = vmatmul.mubr.f32.gmra.mxu0 %v2710
    %v3395 = vpop.f32.mrf.mxu0
    %v3396 = vadd.f32 %v2352, %v3395
    %v3397 = vpop.f32.mrf.mxu0
    %3398 = vmatprep.mubr.f32.mxu0 0.0
    %3399 = vmatmul.mubr.f32.gmra.mxu0 %v2713
    %v3400 = vpop.f32.mrf.mxu0
    %v3401 = vadd.f32 %v2352, %v3400
    %v3402 = vpop.f32.mrf.mxu0
    %3403 = vmatprep.mubr.f32.mxu0 0.0
    %3404 = vmatmul.mubr.f32.gmra.mxu0 %v2716
    %v3405 = vpop.f32.mrf.mxu0
    %v3406 = vadd.f32 %v2352, %v3405
    %v3407 = vpop.f32.mrf.mxu0
    %3408 = vmatprep.mubr.f32.mxu0 0.0
    %3409 = vmatmul.mubr.f32.gmra.mxu0 %v2719
    %v3410 = vpop.f32.mrf.mxu0
    %v3411 = vadd.f32 %v2352, %v3410
    %v3412 = vpop.f32.mrf.mxu0
    %3413 = vmatprep.mubr.f32.mxu0 0.0
    %3414 = vmatmul.mubr.f32.gmra.mxu0 %v2722
    %v3415 = vpop.f32.mrf.mxu0
    %v3416 = vadd.f32 %v2352, %v3415
    %v3417 = vpop.f32.mrf.mxu0
    %3418 = vmatprep.mubr.f32.mxu0 0.0
    %3419 = vmatmul.mubr.f32.gmra.mxu0 %v2725
    %v3420 = vpop.f32.mrf.mxu0
    %v3421 = vadd.f32 %v2352, %v3420
    %v3422 = vpop.f32.mrf.mxu0
    %3423 = vmatprep.mubr.f32.mxu0 0.0
    %3424 = vmatmul.mubr.f32.gmra.mxu0 %v2728
    %v3425 = vpop.f32.mrf.mxu0
    %v3426 = vadd.f32 %v2352, %v3425
    %v3427 = vpop.f32.mrf.mxu0
    %3428 = vmatprep.mubr.f32.mxu0 0.0
    %3429 = vmatmul.mubr.f32.gmra.mxu0 %v2731
    %v3430 = vpop.f32.mrf.mxu0
    %v3431 = vadd.f32 %v2352, %v3430
    %v3432 = vpop.f32.mrf.mxu0
    %3433 = vmatprep.mubr.f32.mxu0 0.0
    %3434 = vmatmul.mubr.f32.gmra.mxu0 %v2734
    %v3435 = vpop.f32.mrf.mxu0
    %v3436 = vadd.f32 %v2352, %v3435
    %v3437 = vpop.f32.mrf.mxu0
    %3438 = vmatprep.mubr.f32.mxu0 0.0
    %3439 = vmatmul.mubr.f32.gmra.mxu0 %v2737
    %v3440 = vpop.f32.mrf.mxu0
    %v3441 = vadd.f32 %v2352, %v3440
    %v3442 = vpop.f32.mrf.mxu0
    %3443 = vdwg.mxu0
    %v3444 = vmax.f32 %v2806, 0.0
    %v3445 = vmax.f32 %v2811, 0.0
    %v3446 = vmax.f32 %v2816, 0.0
    %v3447 = vmax.f32 %v2821, 0.0
    %v3448 = vmax.f32 %v2826, 0.0
    %v3449 = vmax.f32 %v2831, 0.0
    %v3450 = vmax.f32 %v2836, 0.0
    %v3451 = vmax.f32 %v2841, 0.0
    %v3452 = vmax.f32 %v2846, 0.0
    %v3453 = vmax.f32 %v2851, 0.0
    %v3454 = vmax.f32 %v2856, 0.0
    %v3455 = vmax.f32 %v2861, 0.0
    %v3456 = vmax.f32 %v2866, 0.0
    %v3457 = vmax.f32 %v2871, 0.0
    %v3458 = vmax.f32 %v2876, 0.0
    %v3459 = vmax.f32 %v2881, 0.0
    %v3460 = vmax.f32 %v2886, 0.0
    %v3461 = vmax.f32 %v2891, 0.0
    %v3462 = vmax.f32 %v2896, 0.0
    %v3463 = vmax.f32 %v2901, 0.0
    %v3464 = vmax.f32 %v2906, 0.0
    %v3465 = vmax.f32 %v2911, 0.0
    %v3466 = vmax.f32 %v2916, 0.0
    %v3467 = vmax.f32 %v2921, 0.0
    %v3468 = vmax.f32 %v2926, 0.0
    %v3469 = vmax.f32 %v2931, 0.0
    %v3470 = vmax.f32 %v2936, 0.0
    %v3471 = vmax.f32 %v2941, 0.0
    %v3472 = vmax.f32 %v2946, 0.0
    %v3473 = vmax.f32 %v2951, 0.0
    %v3474 = vmax.f32 %v2956, 0.0
    %v3475 = vmax.f32 %v2961, 0.0
    %v3476 = vmax.f32 %v2966, 0.0
    %v3477 = vmax.f32 %v2971, 0.0
    %v3478 = vmax.f32 %v2976, 0.0
    %v3479 = vmax.f32 %v2981, 0.0
    %v3480 = vmax.f32 %v2986, 0.0
    %v3481 = vmax.f32 %v2991, 0.0
    %v3482 = vmax.f32 %v2996, 0.0
    %v3483 = vmax.f32 %v3001, 0.0
    %v3484 = vmax.f32 %v3006, 0.0
    %v3485 = vmax.f32 %v3011, 0.0
    %v3486 = vmax.f32 %v3016, 0.0
    %v3487 = vmax.f32 %v3021, 0.0
    %v3488 = vmax.f32 %v3026, 0.0
    %v3489 = vmax.f32 %v3031, 0.0
    %v3490 = vmax.f32 %v3036, 0.0
    %v3491 = vmax.f32 %v3041, 0.0
    %v3492 = vmax.f32 %v3046, 0.0
    %v3493 = vmax.f32 %v3051, 0.0
    %v3494 = vmax.f32 %v3056, 0.0
    %v3495 = vmax.f32 %v3061, 0.0
    %v3496 = vmax.f32 %v3066, 0.0
    %v3497 = vmax.f32 %v3071, 0.0
    %v3498 = vmax.f32 %v3076, 0.0
    %v3499 = vmax.f32 %v3081, 0.0
    %v3500 = vmax.f32 %v3086, 0.0
    %v3501 = vmax.f32 %v3091, 0.0
    %v3502 = vmax.f32 %v3096, 0.0
    %v3503 = vmax.f32 %v3101, 0.0
    %v3504 = vmax.f32 %v3106, 0.0
    %v3505 = vmax.f32 %v3111, 0.0
    %v3506 = vmax.f32 %v3116, 0.0
    %v3507 = vmax.f32 %v3121, 0.0
    %v3508 = vmax.f32 %v3126, 0.0
    %v3509 = vmax.f32 %v3131, 0.0
    %v3510 = vmax.f32 %v3136, 0.0
    %v3511 = vmax.f32 %v3141, 0.0
    %v3512 = vmax.f32 %v3146, 0.0
    %v3513 = vmax.f32 %v3151, 0.0
    %v3514 = vmax.f32 %v3156, 0.0
    %v3515 = vmax.f32 %v3161, 0.0
    %v3516 = vmax.f32 %v3166, 0.0
    %v3517 = vmax.f32 %v3171, 0.0
    %v3518 = vmax.f32 %v3176, 0.0
    %v3519 = vmax.f32 %v3181, 0.0
    %v3520 = vmax.f32 %v3186, 0.0
    %v3521 = vmax.f32 %v3191, 0.0
    %v3522 = vmax.f32 %v3196, 0.0
    %v3523 = vmax.f32 %v3201, 0.0
    %v3524 = vmax.f32 %v3206, 0.0
    %v3525 = vmax.f32 %v3211, 0.0
    %v3526 = vmax.f32 %v3216, 0.0
    %v3527 = vmax.f32 %v3221, 0.0
    %v3528 = vmax.f32 %v3226, 0.0
    %v3529 = vmax.f32 %v3231, 0.0
    %v3530 = vmax.f32 %v3236, 0.0
    %v3531 = vmax.f32 %v3241, 0.0
    %v3532 = vmax.f32 %v3246, 0.0
    %v3533 = vmax.f32 %v3251, 0.0
    %v3534 = vmax.f32 %v3256, 0.0
    %v3535 = vmax.f32 %v3261, 0.0
    %v3536 = vmax.f32 %v3266, 0.0
    %v3537 = vmax.f32 %v3271, 0.0
    %v3538 = vmax.f32 %v3276, 0.0
    %v3539 = vmax.f32 %v3281, 0.0
    %v3540 = vmax.f32 %v3286, 0.0
    %v3541 = vmax.f32 %v3291, 0.0
    %v3542 = vmax.f32 %v3296, 0.0
    %v3543 = vmax.f32 %v3301, 0.0
    %v3544 = vmax.f32 %v3306, 0.0
    %v3545 = vmax.f32 %v3311, 0.0
    %v3546 = vmax.f32 %v3316, 0.0
    %v3547 = vmax.f32 %v3321, 0.0
    %v3548 = vmax.f32 %v3326, 0.0
    %v3549 = vmax.f32 %v3331, 0.0
    %v3550 = vmax.f32 %v3336, 0.0
    %v3551 = vmax.f32 %v3341, 0.0
    %v3552 = vmax.f32 %v3346, 0.0
    %v3553 = vmax.f32 %v3351, 0.0
    %v3554 = vmax.f32 %v3356, 0.0
    %v3555 = vmax.f32 %v3361, 0.0
    %v3556 = vmax.f32 %v3366, 0.0
    %v3557 = vmax.f32 %v3371, 0.0
    %v3558 = vmax.f32 %v3376, 0.0
    %v3559 = vmax.f32 %v3381, 0.0
    %v3560 = vmax.f32 %v3386, 0.0
    %v3561 = vmax.f32 %v3391, 0.0
    %v3562 = vmax.f32 %v3396, 0.0
    %v3563 = vmax.f32 %v3401, 0.0
    %v3564 = vmax.f32 %v3406, 0.0
    %v3565 = vmax.f32 %v3411, 0.0
    %v3566 = vmax.f32 %v3416, 0.0
    %v3567 = vmax.f32 %v3421, 0.0
    %v3568 = vmax.f32 %v3426, 0.0
    %v3569 = vmax.f32 %v3431, 0.0
    %v3570 = vmax.f32 %v3436, 0.0
    %v3571 = vmax.f32 %v3441, 0.0
    %v3572 = vsel %vm280, %v24, 0.0
    %3573 = vadd.xlane.f32.xlu0 %v3572
    %v3574 = vpop.xlane.xlu0 %3573
    %v3575 = vsel %vm280, %v25, 0.0
    %3576 = vadd.xlane.f32.xlu0 %v3575
    %v3577 = vpop.xlane.xlu0 %3576
    %v3578 = vsel %vm280, %v26, 0.0
    %3579 = vadd.xlane.f32.xlu0 %v3578
    %v3580 = vpop.xlane.xlu0 %3579
    %v3581 = vsel %vm280, %v27, 0.0
    %3582 = vadd.xlane.f32.xlu0 %v3581
    %v3583 = vpop.xlane.xlu0 %3582
    %v3584 = vsel %vm280, %v28, 0.0
    %3585 = vadd.xlane.f32.xlu0 %v3584
    %v3586 = vpop.xlane.xlu0 %3585
    %v3587 = vsel %vm280, %v29, 0.0
    %3588 = vadd.xlane.f32.xlu0 %v3587
    %v3589 = vpop.xlane.xlu0 %3588
    %v3590 = vsel %vm280, %v30, 0.0
    %3591 = vadd.xlane.f32.xlu0 %v3590
    %v3592 = vpop.xlane.xlu0 %3591
    %v3593 = vsel %vm280, %v31, 0.0
    %3594 = vadd.xlane.f32.xlu0 %v3593
    %v3595 = vpop.xlane.xlu0 %3594
    %v3596 = vsel %vm280, %v32, 0.0
    %3597 = vadd.xlane.f32.xlu0 %v3596
    %v3598 = vpop.xlane.xlu0 %3597
    %v3599 = vsel %vm280, %v33, 0.0
    %3600 = vadd.xlane.f32.xlu0 %v3599
    %v3601 = vpop.xlane.xlu0 %3600
    %v3602 = vsel %vm280, %v34, 0.0
    %3603 = vadd.xlane.f32.xlu0 %v3602
    %v3604 = vpop.xlane.xlu0 %3603
    %v3605 = vsel %vm280, %v35, 0.0
    %3606 = vadd.xlane.f32.xlu0 %v3605
    %v3607 = vpop.xlane.xlu0 %3606
    %v3608 = vsel %vm280, %v36, 0.0
    %3609 = vadd.xlane.f32.xlu0 %v3608
    %v3610 = vpop.xlane.xlu0 %3609
    %v3611 = vsel %vm280, %v37, 0.0
    %3612 = vadd.xlane.f32.xlu0 %v3611
    %v3613 = vpop.xlane.xlu0 %3612
    %v3614 = vsel %vm280, %v38, 0.0
    %3615 = vadd.xlane.f32.xlu0 %v3614
    %v3616 = vpop.xlane.xlu0 %3615
    %v3617 = vsel %vm280, %v39, 0.0
    %3618 = vadd.xlane.f32.xlu0 %v3617
    %v3619 = vpop.xlane.xlu0 %3618
    %v3620 = vsel %vm280, %v40, 0.0
    %3621 = vadd.xlane.f32.xlu0 %v3620
    %v3622 = vpop.xlane.xlu0 %3621
    %v3623 = vsel %vm280, %v41, 0.0
    %3624 = vadd.xlane.f32.xlu0 %v3623
    %v3625 = vpop.xlane.xlu0 %3624
    %v3626 = vsel %vm280, %v42, 0.0
    %3627 = vadd.xlane.f32.xlu0 %v3626
    %v3628 = vpop.xlane.xlu0 %3627
    %v3629 = vsel %vm280, %v43, 0.0
    %3630 = vadd.xlane.f32.xlu0 %v3629
    %v3631 = vpop.xlane.xlu0 %3630
    %v3632 = vsel %vm280, %v44, 0.0
    %3633 = vadd.xlane.f32.xlu0 %v3632
    %v3634 = vpop.xlane.xlu0 %3633
    %v3635 = vsel %vm280, %v45, 0.0
    %3636 = vadd.xlane.f32.xlu0 %v3635
    %v3637 = vpop.xlane.xlu0 %3636
    %v3638 = vsel %vm280, %v46, 0.0
    %3639 = vadd.xlane.f32.xlu0 %v3638
    %v3640 = vpop.xlane.xlu0 %3639
    %v3641 = vsel %vm280, %v47, 0.0
    %3642 = vadd.xlane.f32.xlu0 %v3641
    %v3643 = vpop.xlane.xlu0 %3642
    %v3644 = vsel %vm280, %v48, 0.0
    %3645 = vadd.xlane.f32.xlu0 %v3644
    %v3646 = vpop.xlane.xlu0 %3645
    %v3647 = vsel %vm280, %v49, 0.0
    %3648 = vadd.xlane.f32.xlu0 %v3647
    %v3649 = vpop.xlane.xlu0 %3648
    %v3650 = vsel %vm280, %v50, 0.0
    %3651 = vadd.xlane.f32.xlu0 %v3650
    %v3652 = vpop.xlane.xlu0 %3651
    %v3653 = vsel %vm280, %v51, 0.0
    %3654 = vadd.xlane.f32.xlu0 %v3653
    %v3655 = vpop.xlane.xlu0 %3654
    %v3656 = vsel %vm280, %v52, 0.0
    %3657 = vadd.xlane.f32.xlu0 %v3656
    %v3658 = vpop.xlane.xlu0 %3657
    %v3659 = vsel %vm280, %v53, 0.0
    %3660 = vadd.xlane.f32.xlu0 %v3659
    %v3661 = vpop.xlane.xlu0 %3660
    %v3662 = vsel %vm280, %v54, 0.0
    %3663 = vadd.xlane.f32.xlu0 %v3662
    %v3664 = vpop.xlane.xlu0 %3663
    %v3665 = vsel %vm280, %v55, 0.0
    %3666 = vadd.xlane.f32.xlu0 %v3665
    %v3667 = vpop.xlane.xlu0 %3666
    %v3668 = vsel %vm280, %v56, 0.0
    %3669 = vadd.xlane.f32.xlu0 %v3668
    %v3670 = vpop.xlane.xlu0 %3669
    %v3671 = vsel %vm280, %v57, 0.0
    %3672 = vadd.xlane.f32.xlu0 %v3671
    %v3673 = vpop.xlane.xlu0 %3672
    %v3674 = vsel %vm280, %v58, 0.0
    %3675 = vadd.xlane.f32.xlu0 %v3674
    %v3676 = vpop.xlane.xlu0 %3675
    %v3677 = vsel %vm280, %v59, 0.0
    %3678 = vadd.xlane.f32.xlu0 %v3677
    %v3679 = vpop.xlane.xlu0 %3678
    %v3680 = vsel %vm280, %v60, 0.0
    %3681 = vadd.xlane.f32.xlu0 %v3680
    %v3682 = vpop.xlane.xlu0 %3681
    %v3683 = vsel %vm280, %v61, 0.0
    %3684 = vadd.xlane.f32.xlu0 %v3683
    %v3685 = vpop.xlane.xlu0 %3684
    %v3686 = vsel %vm280, %v62, 0.0
    %3687 = vadd.xlane.f32.xlu0 %v3686
    %v3688 = vpop.xlane.xlu0 %3687
    %v3689 = vsel %vm280, %v63, 0.0
    %3690 = vadd.xlane.f32.xlu0 %v3689
    %v3691 = vpop.xlane.xlu0 %3690
    %v3692 = vsel %vm280, %v64, 0.0
    %3693 = vadd.xlane.f32.xlu0 %v3692
    %v3694 = vpop.xlane.xlu0 %3693
    %v3695 = vsel %vm280, %v65, 0.0
    %3696 = vadd.xlane.f32.xlu0 %v3695
    %v3697 = vpop.xlane.xlu0 %3696
    %v3698 = vsel %vm280, %v66, 0.0
    %3699 = vadd.xlane.f32.xlu0 %v3698
    %v3700 = vpop.xlane.xlu0 %3699
    %v3701 = vsel %vm280, %v67, 0.0
    %3702 = vadd.xlane.f32.xlu0 %v3701
    %v3703 = vpop.xlane.xlu0 %3702
    %v3704 = vsel %vm280, %v68, 0.0
    %3705 = vadd.xlane.f32.xlu0 %v3704
    %v3706 = vpop.xlane.xlu0 %3705
    %v3707 = vsel %vm280, %v69, 0.0
    %3708 = vadd.xlane.f32.xlu0 %v3707
    %v3709 = vpop.xlane.xlu0 %3708
    %v3710 = vsel %vm280, %v70, 0.0
    %3711 = vadd.xlane.f32.xlu0 %v3710
    %v3712 = vpop.xlane.xlu0 %3711
    %v3713 = vsel %vm280, %v71, 0.0
    %3714 = vadd.xlane.f32.xlu0 %v3713
    %v3715 = vpop.xlane.xlu0 %3714
    %v3716 = vsel %vm280, %v72, 0.0
    %3717 = vadd.xlane.f32.xlu0 %v3716
    %v3718 = vpop.xlane.xlu0 %3717
    %v3719 = vsel %vm280, %v73, 0.0
    %3720 = vadd.xlane.f32.xlu0 %v3719
    %v3721 = vpop.xlane.xlu0 %3720
    %v3722 = vsel %vm280, %v74, 0.0
    %3723 = vadd.xlane.f32.xlu0 %v3722
    %v3724 = vpop.xlane.xlu0 %3723
    %v3725 = vsel %vm280, %v75, 0.0
    %3726 = vadd.xlane.f32.xlu0 %v3725
    %v3727 = vpop.xlane.xlu0 %3726
    %v3728 = vsel %vm280, %v76, 0.0
    %3729 = vadd.xlane.f32.xlu0 %v3728
    %v3730 = vpop.xlane.xlu0 %3729
    %v3731 = vsel %vm280, %v77, 0.0
    %3732 = vadd.xlane.f32.xlu0 %v3731
    %v3733 = vpop.xlane.xlu0 %3732
    %v3734 = vsel %vm280, %v78, 0.0
    %3735 = vadd.xlane.f32.xlu0 %v3734
    %v3736 = vpop.xlane.xlu0 %3735
    %v3737 = vsel %vm280, %v79, 0.0
    %3738 = vadd.xlane.f32.xlu0 %v3737
    %v3739 = vpop.xlane.xlu0 %3738
    %v3740 = vsel %vm280, %v80, 0.0
    %3741 = vadd.xlane.f32.xlu0 %v3740
    %v3742 = vpop.xlane.xlu0 %3741
    %v3743 = vsel %vm280, %v81, 0.0
    %3744 = vadd.xlane.f32.xlu0 %v3743
    %v3745 = vpop.xlane.xlu0 %3744
    %v3746 = vsel %vm280, %v82, 0.0
    %3747 = vadd.xlane.f32.xlu0 %v3746
    %v3748 = vpop.xlane.xlu0 %3747
    %v3749 = vsel %vm280, %v83, 0.0
    %3750 = vadd.xlane.f32.xlu0 %v3749
    %v3751 = vpop.xlane.xlu0 %3750
    %v3752 = vsel %vm280, %v84, 0.0
    %3753 = vadd.xlane.f32.xlu0 %v3752
    %v3754 = vpop.xlane.xlu0 %3753
    %v3755 = vsel %vm280, %v85, 0.0
    %3756 = vadd.xlane.f32.xlu0 %v3755
    %v3757 = vpop.xlane.xlu0 %3756
    %v3758 = vsel %vm280, %v86, 0.0
    %3759 = vadd.xlane.f32.xlu0 %v3758
    %v3760 = vpop.xlane.xlu0 %3759
    %v3761 = vsel %vm280, %v87, 0.0
    %3762 = vadd.xlane.f32.xlu0 %v3761
    %v3763 = vpop.xlane.xlu0 %3762
    %v3764 = vsel %vm280, %v88, 0.0
    %3765 = vadd.xlane.f32.xlu0 %v3764
    %v3766 = vpop.xlane.xlu0 %3765
    %v3767 = vsel %vm280, %v89, 0.0
    %3768 = vadd.xlane.f32.xlu0 %v3767
    %v3769 = vpop.xlane.xlu0 %3768
    %v3770 = vsel %vm280, %v90, 0.0
    %3771 = vadd.xlane.f32.xlu0 %v3770
    %v3772 = vpop.xlane.xlu0 %3771
    %v3773 = vsel %vm280, %v91, 0.0
    %3774 = vadd.xlane.f32.xlu0 %v3773
    %v3775 = vpop.xlane.xlu0 %3774
    %v3776 = vsel %vm280, %v92, 0.0
    %3777 = vadd.xlane.f32.xlu0 %v3776
    %v3778 = vpop.xlane.xlu0 %3777
    %v3779 = vsel %vm280, %v93, 0.0
    %3780 = vadd.xlane.f32.xlu0 %v3779
    %v3781 = vpop.xlane.xlu0 %3780
    %v3782 = vsel %vm280, %v94, 0.0
    %3783 = vadd.xlane.f32.xlu0 %v3782
    %v3784 = vpop.xlane.xlu0 %3783
    %v3785 = vsel %vm280, %v95, 0.0
    %3786 = vadd.xlane.f32.xlu0 %v3785
    %v3787 = vpop.xlane.xlu0 %3786
    %v3788 = vsel %vm280, %v96, 0.0
    %3789 = vadd.xlane.f32.xlu0 %v3788
    %v3790 = vpop.xlane.xlu0 %3789
    %v3791 = vsel %vm280, %v97, 0.0
    %3792 = vadd.xlane.f32.xlu0 %v3791
    %v3793 = vpop.xlane.xlu0 %3792
    %v3794 = vsel %vm280, %v98, 0.0
    %3795 = vadd.xlane.f32.xlu0 %v3794
    %v3796 = vpop.xlane.xlu0 %3795
    %v3797 = vsel %vm280, %v99, 0.0
    %3798 = vadd.xlane.f32.xlu0 %v3797
    %v3799 = vpop.xlane.xlu0 %3798
    %v3800 = vsel %vm280, %v100, 0.0
    %3801 = vadd.xlane.f32.xlu0 %v3800
    %v3802 = vpop.xlane.xlu0 %3801
    %v3803 = vsel %vm280, %v101, 0.0
    %3804 = vadd.xlane.f32.xlu0 %v3803
    %v3805 = vpop.xlane.xlu0 %3804
    %v3806 = vsel %vm280, %v102, 0.0
    %3807 = vadd.xlane.f32.xlu0 %v3806
    %v3808 = vpop.xlane.xlu0 %3807
    %v3809 = vsel %vm280, %v103, 0.0
    %3810 = vadd.xlane.f32.xlu0 %v3809
    %v3811 = vpop.xlane.xlu0 %3810
    %v3812 = vsel %vm280, %v104, 0.0
    %3813 = vadd.xlane.f32.xlu0 %v3812
    %v3814 = vpop.xlane.xlu0 %3813
    %v3815 = vsel %vm280, %v105, 0.0
    %3816 = vadd.xlane.f32.xlu0 %v3815
    %v3817 = vpop.xlane.xlu0 %3816
    %v3818 = vsel %vm280, %v106, 0.0
    %3819 = vadd.xlane.f32.xlu0 %v3818
    %v3820 = vpop.xlane.xlu0 %3819
    %v3821 = vsel %vm280, %v107, 0.0
    %3822 = vadd.xlane.f32.xlu0 %v3821
    %v3823 = vpop.xlane.xlu0 %3822
    %v3824 = vsel %vm280, %v108, 0.0
    %3825 = vadd.xlane.f32.xlu0 %v3824
    %v3826 = vpop.xlane.xlu0 %3825
    %v3827 = vsel %vm280, %v109, 0.0
    %3828 = vadd.xlane.f32.xlu0 %v3827
    %v3829 = vpop.xlane.xlu0 %3828
    %v3830 = vsel %vm280, %v110, 0.0
    %3831 = vadd.xlane.f32.xlu0 %v3830
    %v3832 = vpop.xlane.xlu0 %3831
    %v3833 = vsel %vm280, %v111, 0.0
    %3834 = vadd.xlane.f32.xlu0 %v3833
    %v3835 = vpop.xlane.xlu0 %3834
    %v3836 = vsel %vm280, %v112, 0.0
    %3837 = vadd.xlane.f32.xlu0 %v3836
    %v3838 = vpop.xlane.xlu0 %3837
    %v3839 = vsel %vm280, %v113, 0.0
    %3840 = vadd.xlane.f32.xlu0 %v3839
    %v3841 = vpop.xlane.xlu0 %3840
    %v3842 = vsel %vm280, %v114, 0.0
    %3843 = vadd.xlane.f32.xlu0 %v3842
    %v3844 = vpop.xlane.xlu0 %3843
    %v3845 = vsel %vm280, %v115, 0.0
    %3846 = vadd.xlane.f32.xlu0 %v3845
    %v3847 = vpop.xlane.xlu0 %3846
    %v3848 = vsel %vm280, %v116, 0.0
    %3849 = vadd.xlane.f32.xlu0 %v3848
    %v3850 = vpop.xlane.xlu0 %3849
    %v3851 = vsel %vm280, %v117, 0.0
    %3852 = vadd.xlane.f32.xlu0 %v3851
    %v3853 = vpop.xlane.xlu0 %3852
    %v3854 = vsel %vm280, %v118, 0.0
    %3855 = vadd.xlane.f32.xlu0 %v3854
    %v3856 = vpop.xlane.xlu0 %3855
    %v3857 = vsel %vm280, %v119, 0.0
    %3858 = vadd.xlane.f32.xlu0 %v3857
    %v3859 = vpop.xlane.xlu0 %3858
    %v3860 = vsel %vm280, %v120, 0.0
    %3861 = vadd.xlane.f32.xlu0 %v3860
    %v3862 = vpop.xlane.xlu0 %3861
    %v3863 = vsel %vm280, %v121, 0.0
    %3864 = vadd.xlane.f32.xlu0 %v3863
    %v3865 = vpop.xlane.xlu0 %3864
    %v3866 = vsel %vm280, %v122, 0.0
    %3867 = vadd.xlane.f32.xlu0 %v3866
    %v3868 = vpop.xlane.xlu0 %3867
    %v3869 = vsel %vm280, %v123, 0.0
    %3870 = vadd.xlane.f32.xlu0 %v3869
    %v3871 = vpop.xlane.xlu0 %3870
    %v3872 = vsel %vm280, %v124, 0.0
    %3873 = vadd.xlane.f32.xlu0 %v3872
    %v3874 = vpop.xlane.xlu0 %3873
    %v3875 = vsel %vm280, %v125, 0.0
    %3876 = vadd.xlane.f32.xlu0 %v3875
    %v3877 = vpop.xlane.xlu0 %3876
    %v3878 = vsel %vm280, %v126, 0.0
    %3879 = vadd.xlane.f32.xlu0 %v3878
    %v3880 = vpop.xlane.xlu0 %3879
    %v3881 = vsel %vm280, %v127, 0.0
    %3882 = vadd.xlane.f32.xlu0 %v3881
    %v3883 = vpop.xlane.xlu0 %3882
    %v3884 = vsel %vm280, %v128, 0.0
    %3885 = vadd.xlane.f32.xlu0 %v3884
    %v3886 = vpop.xlane.xlu0 %3885
    %v3887 = vsel %vm280, %v129, 0.0
    %3888 = vadd.xlane.f32.xlu0 %v3887
    %v3889 = vpop.xlane.xlu0 %3888
    %v3890 = vsel %vm280, %v130, 0.0
    %3891 = vadd.xlane.f32.xlu0 %v3890
    %v3892 = vpop.xlane.xlu0 %3891
    %v3893 = vsel %vm280, %v131, 0.0
    %3894 = vadd.xlane.f32.xlu0 %v3893
    %v3895 = vpop.xlane.xlu0 %3894
    %v3896 = vsel %vm280, %v132, 0.0
    %3897 = vadd.xlane.f32.xlu0 %v3896
    %v3898 = vpop.xlane.xlu0 %3897
    %v3899 = vsel %vm280, %v133, 0.0
    %3900 = vadd.xlane.f32.xlu0 %v3899
    %v3901 = vpop.xlane.xlu0 %3900
    %v3902 = vsel %vm280, %v134, 0.0
    %3903 = vadd.xlane.f32.xlu0 %v3902
    %v3904 = vpop.xlane.xlu0 %3903
    %v3905 = vsel %vm280, %v135, 0.0
    %3906 = vadd.xlane.f32.xlu0 %v3905
    %v3907 = vpop.xlane.xlu0 %3906
    %v3908 = vsel %vm280, %v136, 0.0
    %3909 = vadd.xlane.f32.xlu0 %v3908
    %v3910 = vpop.xlane.xlu0 %3909
    %v3911 = vsel %vm280, %v137, 0.0
    %3912 = vadd.xlane.f32.xlu0 %v3911
    %v3913 = vpop.xlane.xlu0 %3912
    %v3914 = vsel %vm280, %v138, 0.0
    %3915 = vadd.xlane.f32.xlu0 %v3914
    %v3916 = vpop.xlane.xlu0 %3915
    %v3917 = vsel %vm280, %v139, 0.0
    %3918 = vadd.xlane.f32.xlu0 %v3917
    %v3919 = vpop.xlane.xlu0 %3918
    %v3920 = vsel %vm280, %v140, 0.0
    %3921 = vadd.xlane.f32.xlu0 %v3920
    %v3922 = vpop.xlane.xlu0 %3921
    %v3923 = vsel %vm280, %v141, 0.0
    %3924 = vadd.xlane.f32.xlu0 %v3923
    %v3925 = vpop.xlane.xlu0 %3924
    %v3926 = vsel %vm280, %v142, 0.0
    %3927 = vadd.xlane.f32.xlu0 %v3926
    %v3928 = vpop.xlane.xlu0 %3927
    %v3929 = vsel %vm280, %v143, 0.0
    %3930 = vadd.xlane.f32.xlu0 %v3929
    %v3931 = vpop.xlane.xlu0 %3930
    %v3932 = vsel %vm280, %v144, 0.0
    %3933 = vadd.xlane.f32.xlu0 %v3932
    %v3934 = vpop.xlane.xlu0 %3933
    %v3935 = vsel %vm280, %v145, 0.0
    %3936 = vadd.xlane.f32.xlu0 %v3935
    %v3937 = vpop.xlane.xlu0 %3936
    %v3938 = vsel %vm280, %v146, 0.0
    %3939 = vadd.xlane.f32.xlu0 %v3938
    %v3940 = vpop.xlane.xlu0 %3939
    %v3941 = vsel %vm280, %v147, 0.0
    %3942 = vadd.xlane.f32.xlu0 %v3941
    %v3943 = vpop.xlane.xlu0 %3942
    %v3944 = vsel %vm280, %v148, 0.0
    %3945 = vadd.xlane.f32.xlu0 %v3944
    %v3946 = vpop.xlane.xlu0 %3945
    %v3947 = vsel %vm280, %v149, 0.0
    %3948 = vadd.xlane.f32.xlu0 %v3947
    %v3949 = vpop.xlane.xlu0 %3948
    %v3950 = vsel %vm280, %v150, 0.0
    %3951 = vadd.xlane.f32.xlu0 %v3950
    %v3952 = vpop.xlane.xlu0 %3951
    %v3953 = vsel %vm280, %v151, 0.0
    %3954 = vadd.xlane.f32.xlu0 %v3953
    %v3955 = vpop.xlane.xlu0 %3954
    %v3956 = vmul.f32 %v3574, 0.015625
    %v3957 = vmul.f32 %v3577, 0.015625
    %v3958 = vmul.f32 %v3580, 0.015625
    %v3959 = vmul.f32 %v3583, 0.015625
    %v3960 = vmul.f32 %v3586, 0.015625
    %v3961 = vmul.f32 %v3589, 0.015625
    %v3962 = vmul.f32 %v3592, 0.015625
    %v3963 = vmul.f32 %v3595, 0.015625
    %v3964 = vmul.f32 %v3598, 0.015625
    %v3965 = vmul.f32 %v3601, 0.015625
    %v3966 = vmul.f32 %v3604, 0.015625
    %v3967 = vmul.f32 %v3607, 0.015625
    %v3968 = vmul.f32 %v3610, 0.015625
    %v3969 = vmul.f32 %v3613, 0.015625
    %v3970 = vmul.f32 %v3616, 0.015625
    %v3971 = vmul.f32 %v3619, 0.015625
    %v3972 = vmul.f32 %v3622, 0.015625
    %v3973 = vmul.f32 %v3625, 0.015625
    %v3974 = vmul.f32 %v3628, 0.015625
    %v3975 = vmul.f32 %v3631, 0.015625
    %v3976 = vmul.f32 %v3634, 0.015625
    %v3977 = vmul.f32 %v3637, 0.015625
    %v3978 = vmul.f32 %v3640, 0.015625
    %v3979 = vmul.f32 %v3643, 0.015625
    %v3980 = vmul.f32 %v3646, 0.015625
    %v3981 = vmul.f32 %v3649, 0.015625
    %v3982 = vmul.f32 %v3652, 0.015625
    %v3983 = vmul.f32 %v3655, 0.015625
    %v3984 = vmul.f32 %v3658, 0.015625
    %v3985 = vmul.f32 %v3661, 0.015625
    %v3986 = vmul.f32 %v3664, 0.015625
    %v3987 = vmul.f32 %v3667, 0.015625
    %v3988 = vmul.f32 %v3670, 0.015625
    %v3989 = vmul.f32 %v3673, 0.015625
    %v3990 = vmul.f32 %v3676, 0.015625
    %v3991 = vmul.f32 %v3679, 0.015625
    %v3992 = vmul.f32 %v3682, 0.015625
    %v3993 = vmul.f32 %v3685, 0.015625
    %v3994 = vmul.f32 %v3688, 0.015625
    %v3995 = vmul.f32 %v3691, 0.015625
    %v3996 = vmul.f32 %v3694, 0.015625
    %v3997 = vmul.f32 %v3697, 0.015625
    %v3998 = vmul.f32 %v3700, 0.015625
    %v3999 = vmul.f32 %v3703, 0.015625
    %v4000 = vmul.f32 %v3706, 0.015625
    %v4001 = vmul.f32 %v3709, 0.015625
    %v4002 = vmul.f32 %v3712, 0.015625
    %v4003 = vmul.f32 %v3715, 0.015625
    %v4004 = vmul.f32 %v3718, 0.015625
    %v4005 = vmul.f32 %v3721, 0.015625
    %v4006 = vmul.f32 %v3724, 0.015625
    %v4007 = vmul.f32 %v3727, 0.015625
    %v4008 = vmul.f32 %v3730, 0.015625
    %v4009 = vmul.f32 %v3733, 0.015625
    %v4010 = vmul.f32 %v3736, 0.015625
    %v4011 = vmul.f32 %v3739, 0.015625
    %v4012 = vmul.f32 %v3742, 0.015625
    %v4013 = vmul.f32 %v3745, 0.015625
    %v4014 = vmul.f32 %v3748, 0.015625
    %v4015 = vmul.f32 %v3751, 0.015625
    %v4016 = vmul.f32 %v3754, 0.015625
    %v4017 = vmul.f32 %v3757, 0.015625
    %v4018 = vmul.f32 %v3760, 0.015625
    %v4019 = vmul.f32 %v3763, 0.015625
    %v4020 = vmul.f32 %v3766, 0.015625
    %v4021 = vmul.f32 %v3769, 0.015625
    %v4022 = vmul.f32 %v3772, 0.015625
    %v4023 = vmul.f32 %v3775, 0.015625
    %v4024 = vmul.f32 %v3778, 0.015625
    %v4025 = vmul.f32 %v3781, 0.015625
    %v4026 = vmul.f32 %v3784, 0.015625
    %v4027 = vmul.f32 %v3787, 0.015625
    %v4028 = vmul.f32 %v3790, 0.015625
    %v4029 = vmul.f32 %v3793, 0.015625
    %v4030 = vmul.f32 %v3796, 0.015625
    %v4031 = vmul.f32 %v3799, 0.015625
    %v4032 = vmul.f32 %v3802, 0.015625
    %v4033 = vmul.f32 %v3805, 0.015625
    %v4034 = vmul.f32 %v3808, 0.015625
    %v4035 = vmul.f32 %v3811, 0.015625
    %v4036 = vmul.f32 %v3814, 0.015625
    %v4037 = vmul.f32 %v3817, 0.015625
    %v4038 = vmul.f32 %v3820, 0.015625
    %v4039 = vmul.f32 %v3823, 0.015625
    %v4040 = vmul.f32 %v3826, 0.015625
    %v4041 = vmul.f32 %v3829, 0.015625
    %v4042 = vmul.f32 %v3832, 0.015625
    %v4043 = vmul.f32 %v3835, 0.015625
    %v4044 = vmul.f32 %v3838, 0.015625
    %v4045 = vmul.f32 %v3841, 0.015625
    %v4046 = vmul.f32 %v3844, 0.015625
    %v4047 = vmul.f32 %v3847, 0.015625
    %v4048 = vmul.f32 %v3850, 0.015625
    %v4049 = vmul.f32 %v3853, 0.015625
    %v4050 = vmul.f32 %v3856, 0.015625
    %v4051 = vmul.f32 %v3859, 0.015625
    %v4052 = vmul.f32 %v3862, 0.015625
    %v4053 = vmul.f32 %v3865, 0.015625
    %v4054 = vmul.f32 %v3868, 0.015625
    %v4055 = vmul.f32 %v3871, 0.015625
    %v4056 = vmul.f32 %v3874, 0.015625
    %v4057 = vmul.f32 %v3877, 0.015625
    %v4058 = vmul.f32 %v3880, 0.015625
    %v4059 = vmul.f32 %v3883, 0.015625
    %v4060 = vmul.f32 %v3886, 0.015625
    %v4061 = vmul.f32 %v3889, 0.015625
    %v4062 = vmul.f32 %v3892, 0.015625
    %v4063 = vmul.f32 %v3895, 0.015625
    %v4064 = vmul.f32 %v3898, 0.015625
    %v4065 = vmul.f32 %v3901, 0.015625
    %v4066 = vmul.f32 %v3904, 0.015625
    %v4067 = vmul.f32 %v3907, 0.015625
    %v4068 = vmul.f32 %v3910, 0.015625
    %v4069 = vmul.f32 %v3913, 0.015625
    %v4070 = vmul.f32 %v3916, 0.015625
    %v4071 = vmul.f32 %v3919, 0.015625
    %v4072 = vmul.f32 %v3922, 0.015625
    %v4073 = vmul.f32 %v3925, 0.015625
    %v4074 = vmul.f32 %v3928, 0.015625
    %v4075 = vmul.f32 %v3931, 0.015625
    %v4076 = vmul.f32 %v3934, 0.015625
    %v4077 = vmul.f32 %v3937, 0.015625
    %v4078 = vmul.f32 %v3940, 0.015625
    %v4079 = vmul.f32 %v3943, 0.015625
    %v4080 = vmul.f32 %v3946, 0.015625
    %v4081 = vmul.f32 %v3949, 0.015625
    %v4082 = vmul.f32 %v3952, 0.015625
    %v4083 = vmul.f32 %v3955, 0.015625
    %v4084 = vmul.f32 %v3956, %v3444
    %v4085 = vmul.f32 %v3957, %v3445
    %v4086 = vmul.f32 %v3958, %v3446
    %v4087 = vmul.f32 %v3959, %v3447
    %v4088 = vmul.f32 %v3960, %v3448
    %v4089 = vmul.f32 %v3961, %v3449
    %v4090 = vmul.f32 %v3962, %v3450
    %v4091 = vmul.f32 %v3963, %v3451
    %v4092 = vmul.f32 %v3964, %v3452
    %v4093 = vmul.f32 %v3965, %v3453
    %v4094 = vmul.f32 %v3966, %v3454
    %v4095 = vmul.f32 %v3967, %v3455
    %v4096 = vmul.f32 %v3968, %v3456
    %v4097 = vmul.f32 %v3969, %v3457
    %v4098 = vmul.f32 %v3970, %v3458
    %v4099 = vmul.f32 %v3971, %v3459
    %v4100 = vmul.f32 %v3972, %v3460
    %v4101 = vmul.f32 %v3973, %v3461
    %v4102 = vmul.f32 %v3974, %v3462
    %v4103 = vmul.f32 %v3975, %v3463
    %v4104 = vmul.f32 %v3976, %v3464
    %v4105 = vmul.f32 %v3977, %v3465
    %v4106 = vmul.f32 %v3978, %v3466
    %v4107 = vmul.f32 %v3979, %v3467
    %v4108 = vmul.f32 %v3980, %v3468
    %v4109 = vmul.f32 %v3981, %v3469
    %v4110 = vmul.f32 %v3982, %v3470
    %v4111 = vmul.f32 %v3983, %v3471
    %v4112 = vmul.f32 %v3984, %v3472
    %v4113 = vmul.f32 %v3985, %v3473
    %v4114 = vmul.f32 %v3986, %v3474
    %v4115 = vmul.f32 %v3987, %v3475
    %v4116 = vmul.f32 %v3988, %v3476
    %v4117 = vmul.f32 %v3989, %v3477
    %v4118 = vmul.f32 %v3990, %v3478
    %v4119 = vmul.f32 %v3991, %v3479
    %v4120 = vmul.f32 %v3992, %v3480
    %v4121 = vmul.f32 %v3993, %v3481
    %v4122 = vmul.f32 %v3994, %v3482
    %v4123 = vmul.f32 %v3995, %v3483
    %v4124 = vmul.f32 %v3996, %v3484
    %v4125 = vmul.f32 %v3997, %v3485
    %v4126 = vmul.f32 %v3998, %v3486
    %v4127 = vmul.f32 %v3999, %v3487
    %v4128 = vmul.f32 %v4000, %v3488
    %v4129 = vmul.f32 %v4001, %v3489
    %v4130 = vmul.f32 %v4002, %v3490
    %v4131 = vmul.f32 %v4003, %v3491
    %v4132 = vmul.f32 %v4004, %v3492
    %v4133 = vmul.f32 %v4005, %v3493
    %v4134 = vmul.f32 %v4006, %v3494
    %v4135 = vmul.f32 %v4007, %v3495
    %v4136 = vmul.f32 %v4008, %v3496
    %v4137 = vmul.f32 %v4009, %v3497
    %v4138 = vmul.f32 %v4010, %v3498
    %v4139 = vmul.f32 %v4011, %v3499
    %v4140 = vmul.f32 %v4012, %v3500
    %v4141 = vmul.f32 %v4013, %v3501
    %v4142 = vmul.f32 %v4014, %v3502
    %v4143 = vmul.f32 %v4015, %v3503
    %v4144 = vmul.f32 %v4016, %v3504
    %v4145 = vmul.f32 %v4017, %v3505
    %v4146 = vmul.f32 %v4018, %v3506
    %v4147 = vmul.f32 %v4019, %v3507
    %v4148 = vmul.f32 %v4020, %v3508
    %v4149 = vmul.f32 %v4021, %v3509
    %v4150 = vmul.f32 %v4022, %v3510
    %v4151 = vmul.f32 %v4023, %v3511
    %v4152 = vmul.f32 %v4024, %v3512
    %v4153 = vmul.f32 %v4025, %v3513
    %v4154 = vmul.f32 %v4026, %v3514
    %v4155 = vmul.f32 %v4027, %v3515
    %v4156 = vmul.f32 %v4028, %v3516
    %v4157 = vmul.f32 %v4029, %v3517
    %v4158 = vmul.f32 %v4030, %v3518
    %v4159 = vmul.f32 %v4031, %v3519
    %v4160 = vmul.f32 %v4032, %v3520
    %v4161 = vmul.f32 %v4033, %v3521
    %v4162 = vmul.f32 %v4034, %v3522
    %v4163 = vmul.f32 %v4035, %v3523
    %v4164 = vmul.f32 %v4036, %v3524
    %v4165 = vmul.f32 %v4037, %v3525
    %v4166 = vmul.f32 %v4038, %v3526
    %v4167 = vmul.f32 %v4039, %v3527
    %v4168 = vmul.f32 %v4040, %v3528
    %v4169 = vmul.f32 %v4041, %v3529
    %v4170 = vmul.f32 %v4042, %v3530
    %v4171 = vmul.f32 %v4043, %v3531
    %v4172 = vmul.f32 %v4044, %v3532
    %v4173 = vmul.f32 %v4045, %v3533
    %v4174 = vmul.f32 %v4046, %v3534
    %v4175 = vmul.f32 %v4047, %v3535
    %v4176 = vmul.f32 %v4048, %v3536
    %v4177 = vmul.f32 %v4049, %v3537
    %v4178 = vmul.f32 %v4050, %v3538
    %v4179 = vmul.f32 %v4051, %v3539
    %v4180 = vmul.f32 %v4052, %v3540
    %v4181 = vmul.f32 %v4053, %v3541
    %v4182 = vmul.f32 %v4054, %v3542
    %v4183 = vmul.f32 %v4055, %v3543
    %v4184 = vmul.f32 %v4056, %v3544
    %v4185 = vmul.f32 %v4057, %v3545
    %v4186 = vmul.f32 %v4058, %v3546
    %v4187 = vmul.f32 %v4059, %v3547
    %v4188 = vmul.f32 %v4060, %v3548
    %v4189 = vmul.f32 %v4061, %v3549
    %v4190 = vmul.f32 %v4062, %v3550
    %v4191 = vmul.f32 %v4063, %v3551
    %v4192 = vmul.f32 %v4064, %v3552
    %v4193 = vmul.f32 %v4065, %v3553
    %v4194 = vmul.f32 %v4066, %v3554
    %v4195 = vmul.f32 %v4067, %v3555
    %v4196 = vmul.f32 %v4068, %v3556
    %v4197 = vmul.f32 %v4069, %v3557
    %v4198 = vmul.f32 %v4070, %v3558
    %v4199 = vmul.f32 %v4071, %v3559
    %v4200 = vmul.f32 %v4072, %v3560
    %v4201 = vmul.f32 %v4073, %v3561
    %v4202 = vmul.f32 %v4074, %v3562
    %v4203 = vmul.f32 %v4075, %v3563
    %v4204 = vmul.f32 %v4076, %v3564
    %v4205 = vmul.f32 %v4077, %v3565
    %v4206 = vmul.f32 %v4078, %v3566
    %v4207 = vmul.f32 %v4079, %v3567
    %v4208 = vmul.f32 %v4080, %v3568
    %v4209 = vmul.f32 %v4081, %v3569
    %v4210 = vmul.f32 %v4082, %v3570
    %v4211 = vmul.f32 %v4083, %v3571
    %vm4212 = vcmask 261120
    %v4213 = vsel %vm4212, %v4084, 0.0
    %v4214 = vsel %vm4212, %v4085, 0.0
    %v4215 = vadd.f32 %v4213, %v4214
    %v4216 = vsel %vm4212, %v4086, 0.0
    %v4217 = vadd.f32 %v4215, %v4216
    %v4218 = vsel %vm4212, %v4087, 0.0
    %v4219 = vadd.f32 %v4217, %v4218
    %v4220 = vsel %vm4212, %v4088, 0.0
    %v4221 = vadd.f32 %v4219, %v4220
    %v4222 = vsel %vm4212, %v4089, 0.0
    %v4223 = vadd.f32 %v4221, %v4222
    %v4224 = vsel %vm4212, %v4090, 0.0
    %v4225 = vadd.f32 %v4223, %v4224
    %v4226 = vsel %vm4212, %v4091, 0.0
    %v4227 = vadd.f32 %v4225, %v4226
    %v4228 = vrot.slane %v4227, 4
    %v4229 = vadd.f32 %v4227, %v4228
    %v4230 = vrot.slane %v4229, 2
    %v4231 = vadd.f32 %v4229, %v4230
    %v4232 = vrot.slane %v4231, 1
    %v4233 = vadd.f32 %v4231, %v4232
    %v4234 = vsel %vm4212, %v4092, 0.0
    %v4235 = vsel %vm4212, %v4093, 0.0
    %v4236 = vadd.f32 %v4234, %v4235
    %v4237 = vsel %vm4212, %v4094, 0.0
    %v4238 = vadd.f32 %v4236, %v4237
    %v4239 = vsel %vm4212, %v4095, 0.0
    %v4240 = vadd.f32 %v4238, %v4239
    %v4241 = vsel %vm4212, %v4096, 0.0
    %v4242 = vadd.f32 %v4240, %v4241
    %v4243 = vsel %vm4212, %v4097, 0.0
    %v4244 = vadd.f32 %v4242, %v4243
    %v4245 = vsel %vm4212, %v4098, 0.0
    %v4246 = vadd.f32 %v4244, %v4245
    %v4247 = vsel %vm4212, %v4099, 0.0
    %v4248 = vadd.f32 %v4246, %v4247
    %v4249 = vrot.slane %v4248, 4
    %v4250 = vadd.f32 %v4248, %v4249
    %v4251 = vrot.slane %v4250, 2
    %v4252 = vadd.f32 %v4250, %v4251
    %v4253 = vrot.slane %v4252, 1
    %v4254 = vadd.f32 %v4252, %v4253
    %v4255 = vsel %vm4212, %v4100, 0.0
    %v4256 = vsel %vm4212, %v4101, 0.0
    %v4257 = vadd.f32 %v4255, %v4256
    %v4258 = vsel %vm4212, %v4102, 0.0
    %v4259 = vadd.f32 %v4257, %v4258
    %v4260 = vsel %vm4212, %v4103, 0.0
    %v4261 = vadd.f32 %v4259, %v4260
    %v4262 = vsel %vm4212, %v4104, 0.0
    %v4263 = vadd.f32 %v4261, %v4262
    %v4264 = vsel %vm4212, %v4105, 0.0
    %v4265 = vadd.f32 %v4263, %v4264
    %v4266 = vsel %vm4212, %v4106, 0.0
    %v4267 = vadd.f32 %v4265, %v4266
    %v4268 = vsel %vm4212, %v4107, 0.0
    %v4269 = vadd.f32 %v4267, %v4268
    %v4270 = vrot.slane %v4269, 4
    %v4271 = vadd.f32 %v4269, %v4270
    %v4272 = vrot.slane %v4271, 2
    %v4273 = vadd.f32 %v4271, %v4272
    %v4274 = vrot.slane %v4273, 1
    %v4275 = vadd.f32 %v4273, %v4274
    %v4276 = vsel %vm4212, %v4108, 0.0
    %v4277 = vsel %vm4212, %v4109, 0.0
    %v4278 = vadd.f32 %v4276, %v4277
    %v4279 = vsel %vm4212, %v4110, 0.0
    %v4280 = vadd.f32 %v4278, %v4279
    %v4281 = vsel %vm4212, %v4111, 0.0
    %v4282 = vadd.f32 %v4280, %v4281
    %v4283 = vsel %vm4212, %v4112, 0.0
    %v4284 = vadd.f32 %v4282, %v4283
    %v4285 = vsel %vm4212, %v4113, 0.0
    %v4286 = vadd.f32 %v4284, %v4285
    %v4287 = vsel %vm4212, %v4114, 0.0
    %v4288 = vadd.f32 %v4286, %v4287
    %v4289 = vsel %vm4212, %v4115, 0.0
    %v4290 = vadd.f32 %v4288, %v4289
    %v4291 = vrot.slane %v4290, 4
    %v4292 = vadd.f32 %v4290, %v4291
    %v4293 = vrot.slane %v4292, 2
    %v4294 = vadd.f32 %v4292, %v4293
    %v4295 = vrot.slane %v4294, 1
    %v4296 = vadd.f32 %v4294, %v4295
    %v4297 = vsel %vm4212, %v4116, 0.0
    %v4298 = vsel %vm4212, %v4117, 0.0
    %v4299 = vadd.f32 %v4297, %v4298
    %v4300 = vsel %vm4212, %v4118, 0.0
    %v4301 = vadd.f32 %v4299, %v4300
    %v4302 = vsel %vm4212, %v4119, 0.0
    %v4303 = vadd.f32 %v4301, %v4302
    %v4304 = vsel %vm4212, %v4120, 0.0
    %v4305 = vadd.f32 %v4303, %v4304
    %v4306 = vsel %vm4212, %v4121, 0.0
    %v4307 = vadd.f32 %v4305, %v4306
    %v4308 = vsel %vm4212, %v4122, 0.0
    %v4309 = vadd.f32 %v4307, %v4308
    %v4310 = vsel %vm4212, %v4123, 0.0
    %v4311 = vadd.f32 %v4309, %v4310
    %v4312 = vrot.slane %v4311, 4
    %v4313 = vadd.f32 %v4311, %v4312
    %v4314 = vrot.slane %v4313, 2
    %v4315 = vadd.f32 %v4313, %v4314
    %v4316 = vrot.slane %v4315, 1
    %v4317 = vadd.f32 %v4315, %v4316
    %v4318 = vsel %vm4212, %v4124, 0.0
    %v4319 = vsel %vm4212, %v4125, 0.0
    %v4320 = vadd.f32 %v4318, %v4319
    %v4321 = vsel %vm4212, %v4126, 0.0
    %v4322 = vadd.f32 %v4320, %v4321
    %v4323 = vsel %vm4212, %v4127, 0.0
    %v4324 = vadd.f32 %v4322, %v4323
    %v4325 = vsel %vm4212, %v4128, 0.0
    %v4326 = vadd.f32 %v4324, %v4325
    %v4327 = vsel %vm4212, %v4129, 0.0
    %v4328 = vadd.f32 %v4326, %v4327
    %v4329 = vsel %vm4212, %v4130, 0.0
    %v4330 = vadd.f32 %v4328, %v4329
    %v4331 = vsel %vm4212, %v4131, 0.0
    %v4332 = vadd.f32 %v4330, %v4331
    %v4333 = vrot.slane %v4332, 4
    %v4334 = vadd.f32 %v4332, %v4333
    %v4335 = vrot.slane %v4334, 2
    %v4336 = vadd.f32 %v4334, %v4335
    %v4337 = vrot.slane %v4336, 1
    %v4338 = vadd.f32 %v4336, %v4337
    %v4339 = vsel %vm4212, %v4132, 0.0
    %v4340 = vsel %vm4212, %v4133, 0.0
    %v4341 = vadd.f32 %v4339, %v4340
    %v4342 = vsel %vm4212, %v4134, 0.0
    %v4343 = vadd.f32 %v4341, %v4342
    %v4344 = vsel %vm4212, %v4135, 0.0
    %v4345 = vadd.f32 %v4343, %v4344
    %v4346 = vsel %vm4212, %v4136, 0.0
    %v4347 = vadd.f32 %v4345, %v4346
    %v4348 = vsel %vm4212, %v4137, 0.0
    %v4349 = vadd.f32 %v4347, %v4348
    %v4350 = vsel %vm4212, %v4138, 0.0
    %v4351 = vadd.f32 %v4349, %v4350
    %v4352 = vsel %vm4212, %v4139, 0.0
    %v4353 = vadd.f32 %v4351, %v4352
    %v4354 = vrot.slane %v4353, 4
    %v4355 = vadd.f32 %v4353, %v4354
    %v4356 = vrot.slane %v4355, 2
    %v4357 = vadd.f32 %v4355, %v4356
    %v4358 = vrot.slane %v4357, 1
    %v4359 = vadd.f32 %v4357, %v4358
    %v4360 = vsel %vm4212, %v4140, 0.0
    %v4361 = vsel %vm4212, %v4141, 0.0
    %v4362 = vadd.f32 %v4360, %v4361
    %v4363 = vsel %vm4212, %v4142, 0.0
    %v4364 = vadd.f32 %v4362, %v4363
    %v4365 = vsel %vm4212, %v4143, 0.0
    %v4366 = vadd.f32 %v4364, %v4365
    %v4367 = vsel %vm4212, %v4144, 0.0
    %v4368 = vadd.f32 %v4366, %v4367
    %v4369 = vsel %vm4212, %v4145, 0.0
    %v4370 = vadd.f32 %v4368, %v4369
    %v4371 = vsel %vm4212, %v4146, 0.0
    %v4372 = vadd.f32 %v4370, %v4371
    %v4373 = vsel %vm4212, %v4147, 0.0
    %v4374 = vadd.f32 %v4372, %v4373
    %v4375 = vrot.slane %v4374, 4
    %v4376 = vadd.f32 %v4374, %v4375
    %v4377 = vrot.slane %v4376, 2
    %v4378 = vadd.f32 %v4376, %v4377
    %v4379 = vrot.slane %v4378, 1
    %v4380 = vadd.f32 %v4378, %v4379
    %v4381 = vsel %vm4212, %v4148, 0.0
    %v4382 = vsel %vm4212, %v4149, 0.0
    %v4383 = vadd.f32 %v4381, %v4382
    %v4384 = vsel %vm4212, %v4150, 0.0
    %v4385 = vadd.f32 %v4383, %v4384
    %v4386 = vsel %vm4212, %v4151, 0.0
    %v4387 = vadd.f32 %v4385, %v4386
    %v4388 = vsel %vm4212, %v4152, 0.0
    %v4389 = vadd.f32 %v4387, %v4388
    %v4390 = vsel %vm4212, %v4153, 0.0
    %v4391 = vadd.f32 %v4389, %v4390
    %v4392 = vsel %vm4212, %v4154, 0.0
    %v4393 = vadd.f32 %v4391, %v4392
    %v4394 = vsel %vm4212, %v4155, 0.0
    %v4395 = vadd.f32 %v4393, %v4394
    %v4396 = vrot.slane %v4395, 4
    %v4397 = vadd.f32 %v4395, %v4396
    %v4398 = vrot.slane %v4397, 2
    %v4399 = vadd.f32 %v4397, %v4398
    %v4400 = vrot.slane %v4399, 1
    %v4401 = vadd.f32 %v4399, %v4400
    %v4402 = vsel %vm4212, %v4156, 0.0
    %v4403 = vsel %vm4212, %v4157, 0.0
    %v4404 = vadd.f32 %v4402, %v4403
    %v4405 = vsel %vm4212, %v4158, 0.0
    %v4406 = vadd.f32 %v4404, %v4405
    %v4407 = vsel %vm4212, %v4159, 0.0
    %v4408 = vadd.f32 %v4406, %v4407
    %v4409 = vsel %vm4212, %v4160, 0.0
    %v4410 = vadd.f32 %v4408, %v4409
    %v4411 = vsel %vm4212, %v4161, 0.0
    %v4412 = vadd.f32 %v4410, %v4411
    %v4413 = vsel %vm4212, %v4162, 0.0
    %v4414 = vadd.f32 %v4412, %v4413
    %v4415 = vsel %vm4212, %v4163, 0.0
    %v4416 = vadd.f32 %v4414, %v4415
    %v4417 = vrot.slane %v4416, 4
    %v4418 = vadd.f32 %v4416, %v4417
    %v4419 = vrot.slane %v4418, 2
    %v4420 = vadd.f32 %v4418, %v4419
    %v4421 = vrot.slane %v4420, 1
    %v4422 = vadd.f32 %v4420, %v4421
    %v4423 = vsel %vm4212, %v4164, 0.0
    %v4424 = vsel %vm4212, %v4165, 0.0
    %v4425 = vadd.f32 %v4423, %v4424
    %v4426 = vsel %vm4212, %v4166, 0.0
    %v4427 = vadd.f32 %v4425, %v4426
    %v4428 = vsel %vm4212, %v4167, 0.0
    %v4429 = vadd.f32 %v4427, %v4428
    %v4430 = vsel %vm4212, %v4168, 0.0
    %v4431 = vadd.f32 %v4429, %v4430
    %v4432 = vsel %vm4212, %v4169, 0.0
    %v4433 = vadd.f32 %v4431, %v4432
    %v4434 = vsel %vm4212, %v4170, 0.0
    %v4435 = vadd.f32 %v4433, %v4434
    %v4436 = vsel %vm4212, %v4171, 0.0
    %v4437 = vadd.f32 %v4435, %v4436
    %v4438 = vrot.slane %v4437, 4
    %v4439 = vadd.f32 %v4437, %v4438
    %v4440 = vrot.slane %v4439, 2
    %v4441 = vadd.f32 %v4439, %v4440
    %v4442 = vrot.slane %v4441, 1
    %v4443 = vadd.f32 %v4441, %v4442
    %v4444 = vsel %vm4212, %v4172, 0.0
    %v4445 = vsel %vm4212, %v4173, 0.0
    %v4446 = vadd.f32 %v4444, %v4445
    %v4447 = vsel %vm4212, %v4174, 0.0
    %v4448 = vadd.f32 %v4446, %v4447
    %v4449 = vsel %vm4212, %v4175, 0.0
    %v4450 = vadd.f32 %v4448, %v4449
    %v4451 = vsel %vm4212, %v4176, 0.0
    %v4452 = vadd.f32 %v4450, %v4451
    %v4453 = vsel %vm4212, %v4177, 0.0
    %v4454 = vadd.f32 %v4452, %v4453
    %v4455 = vsel %vm4212, %v4178, 0.0
    %v4456 = vadd.f32 %v4454, %v4455
    %v4457 = vsel %vm4212, %v4179, 0.0
    %v4458 = vadd.f32 %v4456, %v4457
    %v4459 = vrot.slane %v4458, 4
    %v4460 = vadd.f32 %v4458, %v4459
    %v4461 = vrot.slane %v4460, 2
    %v4462 = vadd.f32 %v4460, %v4461
    %v4463 = vrot.slane %v4462, 1
    %v4464 = vadd.f32 %v4462, %v4463
    %v4465 = vsel %vm4212, %v4180, 0.0
    %v4466 = vsel %vm4212, %v4181, 0.0
    %v4467 = vadd.f32 %v4465, %v4466
    %v4468 = vsel %vm4212, %v4182, 0.0
    %v4469 = vadd.f32 %v4467, %v4468
    %v4470 = vsel %vm4212, %v4183, 0.0
    %v4471 = vadd.f32 %v4469, %v4470
    %v4472 = vsel %vm4212, %v4184, 0.0
    %v4473 = vadd.f32 %v4471, %v4472
    %v4474 = vsel %vm4212, %v4185, 0.0
    %v4475 = vadd.f32 %v4473, %v4474
    %v4476 = vsel %vm4212, %v4186, 0.0
    %v4477 = vadd.f32 %v4475, %v4476
    %v4478 = vsel %vm4212, %v4187, 0.0
    %v4479 = vadd.f32 %v4477, %v4478
    %v4480 = vrot.slane %v4479, 4
    %v4481 = vadd.f32 %v4479, %v4480
    %v4482 = vrot.slane %v4481, 2
    %v4483 = vadd.f32 %v4481, %v4482
    %v4484 = vrot.slane %v4483, 1
    %v4485 = vadd.f32 %v4483, %v4484
    %v4486 = vsel %vm4212, %v4188, 0.0
    %v4487 = vsel %vm4212, %v4189, 0.0
    %v4488 = vadd.f32 %v4486, %v4487
    %v4489 = vsel %vm4212, %v4190, 0.0
    %v4490 = vadd.f32 %v4488, %v4489
    %v4491 = vsel %vm4212, %v4191, 0.0
    %v4492 = vadd.f32 %v4490, %v4491
    %v4493 = vsel %vm4212, %v4192, 0.0
    %v4494 = vadd.f32 %v4492, %v4493
    %v4495 = vsel %vm4212, %v4193, 0.0
    %v4496 = vadd.f32 %v4494, %v4495
    %v4497 = vsel %vm4212, %v4194, 0.0
    %v4498 = vadd.f32 %v4496, %v4497
    %v4499 = vsel %vm4212, %v4195, 0.0
    %v4500 = vadd.f32 %v4498, %v4499
    %v4501 = vrot.slane %v4500, 4
    %v4502 = vadd.f32 %v4500, %v4501
    %v4503 = vrot.slane %v4502, 2
    %v4504 = vadd.f32 %v4502, %v4503
    %v4505 = vrot.slane %v4504, 1
    %v4506 = vadd.f32 %v4504, %v4505
    %v4507 = vsel %vm4212, %v4196, 0.0
    %v4508 = vsel %vm4212, %v4197, 0.0
    %v4509 = vadd.f32 %v4507, %v4508
    %v4510 = vsel %vm4212, %v4198, 0.0
    %v4511 = vadd.f32 %v4509, %v4510
    %v4512 = vsel %vm4212, %v4199, 0.0
    %v4513 = vadd.f32 %v4511, %v4512
    %v4514 = vsel %vm4212, %v4200, 0.0
    %v4515 = vadd.f32 %v4513, %v4514
    %v4516 = vsel %vm4212, %v4201, 0.0
    %v4517 = vadd.f32 %v4515, %v4516
    %v4518 = vsel %vm4212, %v4202, 0.0
    %v4519 = vadd.f32 %v4517, %v4518
    %v4520 = vsel %vm4212, %v4203, 0.0
    %v4521 = vadd.f32 %v4519, %v4520
    %v4522 = vrot.slane %v4521, 4
    %v4523 = vadd.f32 %v4521, %v4522
    %v4524 = vrot.slane %v4523, 2
    %v4525 = vadd.f32 %v4523, %v4524
    %v4526 = vrot.slane %v4525, 1
    %v4527 = vadd.f32 %v4525, %v4526
    %v4528 = vsel %vm4212, %v4204, 0.0
    %v4529 = vsel %vm4212, %v4205, 0.0
    %v4530 = vadd.f32 %v4528, %v4529
    %v4531 = vsel %vm4212, %v4206, 0.0
    %v4532 = vadd.f32 %v4530, %v4531
    %v4533 = vsel %vm4212, %v4207, 0.0
    %v4534 = vadd.f32 %v4532, %v4533
    %v4535 = vsel %vm4212, %v4208, 0.0
    %v4536 = vadd.f32 %v4534, %v4535
    %v4537 = vsel %vm4212, %v4209, 0.0
    %v4538 = vadd.f32 %v4536, %v4537
    %v4539 = vsel %vm4212, %v4210, 0.0
    %v4540 = vadd.f32 %v4538, %v4539
    %v4541 = vsel %vm4212, %v4211, 0.0
    %v4542 = vadd.f32 %v4540, %v4541
    %v4543 = vrot.slane %v4542, 4
    %v4544 = vadd.f32 %v4542, %v4543
    %v4545 = vrot.slane %v4544, 2
    %v4546 = vadd.f32 %v4544, %v4545
    %v4547 = vrot.slane %v4546, 1
    %v4548 = vadd.f32 %v4546, %v4547
    %v4549 = vld [vmem:[%s4] sm:$0xff]
    %v4550 = vld [vmem:[%s4 + $0x8] sm:$0xff]
    %v4551 = vld [vmem:[%s4 + $0x10] sm:$0xff]
    %v4552 = vld [vmem:[%s4 + $0x18] sm:$0xff]
    %v4553 = vld [vmem:[%s5] sm:$0x1]
    %v4555 = vlaneseq
    %v4556 = vshrl.u32 %v4555, 7
    %v4557 = vsub.s32 0, %v4556
    %v4558 = vrot.slane %v4553, %v4557
    %vm4576 = vcmask 1041409
    %v4577 = vsel %vm4576, %v4254, %v4233
    %vm4578 = vcmask 1042434
    %v4579 = vsel %vm4578, %v4275, %v4577
    %vm4580 = vcmask 1043459
    %v4581 = vsel %vm4580, %v4296, %v4579
    %vm4582 = vcmask 1044484
    %v4583 = vsel %vm4582, %v4317, %v4581
    %vm4584 = vcmask 1045509
    %v4585 = vsel %vm4584, %v4338, %v4583
    %vm4586 = vcmask 1046534
    %v4587 = vsel %vm4586, %v4359, %v4585
    %vm4588 = vcmask 1047559
    %v4589 = vsel %vm4588, %v4380, %v4587
    %v4590 = vsel %vm4576, %v4422, %v4401
    %v4591 = vsel %vm4578, %v4443, %v4590
    %v4592 = vsel %vm4580, %v4464, %v4591
    %v4593 = vsel %vm4582, %v4485, %v4592
    %v4594 = vsel %vm4584, %v4506, %v4593
    %v4595 = vsel %vm4586, %v4527, %v4594
    %v4596 = vsel %vm4588, %v4548, %v4595
    %v4597 = vsel %vm4212, %v4589, 0
    %v4599 = vsel %vm4212, %v4596, 0
    %4601 = vmatprep.subr.mxu0 0.0
    %4602 = vmatpush1.msra.mxu0 0.0
    %4603 = vmatprep.subr.mxu0 0.0
    %4604 = vmatpush1.msra.mxu0 0.0
    %4605 = vmatprep.subr.mxu0 0.0
    %4606 = vmatpush1.msra.mxu0 0.0
    %4607 = vmatprep.subr.mxu0 0.0
    %4608 = vmatpush1.msra.mxu0 0.0
    %4609 = vmatprep.subr.mxu0 0.0
    %4610 = vmatpush1.msra.mxu0 0.0
    %4611 = vmatprep.subr.mxu0 0.0
    %4612 = vmatpush1.msra.mxu0 0.0
    %4613 = vmatprep.subr.mxu0 0.0
    %4614 = vmatpush1.msra.mxu0 0.0
    %4615 = vmatprep.subr.mxu0 0.0
    %4616 = vmatpush1.msra.mxu0 0.0
    %4617 = vmatprep.subr.mxu0 0.0
    %4618 = vmatpush1.msra.mxu0 0.0
    %4619 = vmatprep.subr.mxu0 0.0
    %4620 = vmatpush1.msra.mxu0 0.0
    %4621 = vmatprep.subr.mxu0 0.0
    %4622 = vmatpush1.msra.mxu0 0.0
    %4623 = vmatprep.subr.mxu0 0.0
    %4624 = vmatpush1.msra.mxu0 0.0
    %4625 = vmatprep.subr.mxu0 0.0
    %4626 = vmatpush1.msra.mxu0 %v4552
    %4627 = vmatprep.subr.mxu0 0.0
    %4628 = vmatpush1.msra.mxu0 %v4551
    %4629 = vmatprep.subr.mxu0 0.0
    %4630 = vmatpush1.msra.mxu0 %v4550
    %4631 = vmatprep.subr.mxu0 0.0
    %4632 = vmatpush1.msra.mxu0 %v4549
    %4633 = vmatprep.subr.mxu0 0.0
    %4634 = vmatpush2.msra.mxu0 0.0
    %4635 = vmatprep.subr.mxu0 0.0
    %4636 = vmatpush2.msra.mxu0 0.0
    %4637 = vmatprep.subr.mxu0 0.0
    %4638 = vmatpush2.msra.mxu0 0.0
    %4639 = vmatprep.subr.mxu0 0.0
    %4640 = vmatpush2.msra.mxu0 0.0
    %4641 = vmatprep.subr.mxu0 0.0
    %4642 = vmatpush2.msra.mxu0 0.0
    %4643 = vmatprep.subr.mxu0 0.0
    %4644 = vmatpush2.msra.mxu0 0.0
    %4645 = vmatprep.subr.mxu0 0.0
    %4646 = vmatpush2.msra.mxu0 0.0
    %4647 = vmatprep.subr.mxu0 0.0
    %4648 = vmatpush2.msra.mxu0 0.0
    %4649 = vmatprep.subr.mxu0 0.0
    %4650 = vmatpush2.msra.mxu0 0.0
    %4651 = vmatprep.subr.mxu0 0.0
    %4652 = vmatpush2.msra.mxu0 0.0
    %4653 = vmatprep.subr.mxu0 0.0
    %4654 = vmatpush2.msra.mxu0 0.0
    %4655 = vmatprep.subr.mxu0 0.0
    %4656 = vmatpush2.msra.mxu0 0.0
    %4657 = vmatprep.subr.mxu0 0.0
    %4658 = vmatpush2.msra.mxu0 0.0
    %4659 = vmatprep.subr.mxu0 0.0
    %4660 = vmatpush2.msra.mxu0 0.0
    %4661 = vmatprep.subr.mxu0 0.0
    %4662 = vmatpush2.msra.mxu0 0.0
    %4663 = vmatprep.subr.mxu0 0.0
    %4664 = vmatpush2.msra.mxu0 0.0
    %4665 = vmatprep.mubr.f32.mxu0 0.0
    %4666 = vmatmul.mubr.f32.gmra.mxu0 %v4597
    %v4667 = vpop.f32.mrf.mxu0
    %v4668 = vadd.f32 %v4558, %v4667
    %v4669 = vpop.f32.mrf.mxu0
    %4670 = vmatprep.mubr.f32.mxu0 0.0
    %4671 = vmatmul.mubr.f32.gmra.mxu0 %v4599
    %v4672 = vpop.f32.mrf.mxu0
    %v4673 = vadd.f32 %v4558, %v4672
    %v4674 = vpop.f32.mrf.mxu0
    %4675 = vdwg.mxu0
    %4676 = vst [vmem:[#allocation2] sm:$0xff] %v4668
    %4677 = vst [vmem:[#allocation2 + $0x8] sm:$0xff] %v4673
    // Predicated region
    $region26: #{tpu_custom_call.1} parent=1 // pred_check
      _
    $region27: #{tpu_custom_call.1} parent=1 // pred_check_branch
      %4679 = sbr.rel (0) target = $region29
    $region28: #{tpu_custom_call.1} parent=1 // pred_region
      %s4681 = ssub.s32 256, 256
      %4682 = vsyncadd [#allocation3], %s4681
      %s4683 = sshll.u32 [#allocation2], 4
      %s4684 = int_to_ptr.vmem [resolvable:$true] %s4683
      %4689 = dma.vmem_to_hbm [thread:$0]  %s4684, 256, %s6, [#allocation3], 128, 128, 8
    $region29: #{tpu_custom_call.1} parent=1 // pred_fallthru
      _
    // Predicated region
    $region30: #{tpu_custom_call.1} parent=1 // pred_check
      _
    $region31: #{tpu_custom_call.1} parent=1 // pred_check_branch
      %4691 = sbr.rel (0) target = $region33
    $region32: #{tpu_custom_call.1} parent=1 // pred_region
      %4692 = dma.done [#allocation3], 256
    $region33: #{tpu_custom_call.1} parent=1 // pred_fallthru
      _
    %4693 = vsyncpa [#allocation3], 1

</llo_original>
